<compile_context>
chip_gen: v5e
topology: v5e:2x2
jax: 0.10.0
libtpu: 0.0.40
codegen_flags: <defaults>
</compile_context>

<pallas_src>
import functools

import numpy as np
import jax
import jax.numpy as jnp
from jax.experimental import pallas as pl
from jax.experimental.pallas import tpu as pltpu


_COMPUTE_DTYPE = jnp.bfloat16   # MXU operand / scratch dtype (accumulation is f32)
_PAD_ALIGN = 16                 # sublane-aligned interior column origin of pad scratch

_VMEM_LIMIT = None


def _vmem_limit_bytes():
    """Generation-aware scoped-VMEM limit (e.g. ~48 MiB on v7x, 64 MiB on v5e/v6e)."""
    global _VMEM_LIMIT
    if _VMEM_LIMIT is None:
        try:
            cap = pltpu.get_tpu_info().vmem_capacity_bytes
            _VMEM_LIMIT = min(int(cap * 3 // 4), 64 * 1024 * 1024)
        except Exception:
            _VMEM_LIMIT = 0
    return _VMEM_LIMIT or None


def _compiler_params(n_grid_axes=1):
    kwargs = dict(dimension_semantics=("parallel",) * n_grid_axes)
    lim = _vmem_limit_bytes()
    if lim is not None:
        kwargs["vmem_limit_bytes"] = lim
    return pltpu.CompilerParams(**kwargs)


# --------------------------------------------------------------------------- #
# in-kernel helpers
# --------------------------------------------------------------------------- #
def _zero_halo(ref, r0, nr, c0, nc):
    """Zero the frame around the interior [r0:r0+nr, c0:c0+nc] (trailing dims full).

    Done every grid step (cheap: halo strips only) so it stays correct when the
    batch grid axis is sharded across TensorCores ("parallel" semantics).
    """
    shape, dt = ref.shape, ref.dtype
    rows, cols = shape[0], shape[1]
    rest = tuple(shape[2:])
    if r0 > 0:
        ref[:r0] = jnp.zeros((r0, cols) + rest, dt)
    if r0 + nr < rows:
        ref[r0 + nr:] = jnp.zeros((rows - (r0 + nr), cols) + rest, dt)
    if c0 > 0:
        ref[r0:r0 + nr, :c0] = jnp.zeros((nr, c0) + rest, dt)
    if c0 + nc < cols:
        ref[r0:r0 + nr, c0 + nc:] = jnp.zeros((nr, cols - (c0 + nc)) + rest, dt)


def _im2col_conv(pad_ref, col_ref, w_ref, row0, col0, halo, H, W, cin, k):
    """k x k 'same' conv as ONE full-depth MXU dot.

    pad_ref : zero-haloed plane with the interior at [row0:row0+H, col0:col0+W, :]
    col_ref : (H*W, >= k*k*cin) bf16 im2col slab (shared across convs)
    w_ref   : (k*k*cin, cout) tap-major matmul weight
    """
    for dy in range(k):
        for dx in range(k):
            t = dy * k + dx
            win = pad_ref[row0 - halo + dy: row0 - halo + dy + H,
                          col0 - halo + dx: col0 - halo + dx + W, :]
            col_ref[:, t * cin:(t + 1) * cin] = win.reshape(H * W, cin)
    depth = k * k * cin
    return jnp.dot(col_ref[:, :depth], w_ref[...],
                   preferred_element_type=jnp.float32)


# --------------------------------------------------------------------------- #
# fully fused WaveletBlock kernel (one half-resolution plane per grid step)
# --------------------------------------------------------------------------- #
def _wavelet_block_kernel(x_ref, w1_ref, w2_ref, ca1_ref, ca2_ref, wa_ref, wb_ref,
                          w3p_ref, wskip_ref, wsal_ref, o_ref,
                          padA, padB, col, pmax, pavg,
                          *, H, W, C, k, OF):
    f32 = jnp.float32
    cdt = padA.dtype
    C4, C8 = 4 * C, 8 * C
    HW = H * W
    p = k // 2
    PH = max(p, 1)          # shared halo of padA (conv1 uses p, final patch conv uses 1)
    A0 = _PAD_ALIGN         # aligned interior column origin

    # -- zero only the halo frames (interiors are fully overwritten below) --
    _zero_halo(padA, PH, H, A0, W)
    _zero_halo(padB, p, H, A0, W)
    _zero_halo(pmax, 2, H, A0, W)
    _zero_halo(pavg, 2, H, A0, W)

    # ---- body conv1 (BWT folded into the weights): 4C patch ch -> C ch, ReLU ----
    padA[PH:PH + H, A0:A0 + W, :] = x_ref[0].astype(cdt)
    r1 = _im2col_conv(padA, col, w1_ref, PH, A0, p, H, W, C4, k)        # (HW, C) f32
    r1 = jnp.maximum(r1, 0.0)

    # ---- body conv2: C -> 8C band channels ----
    padB[p:p + H, A0:A0 + W, :] = r1.reshape(H, W, C).astype(cdt)
    res = _im2col_conv(padB, col, w2_ref, p, A0, p, H, W, C, k)         # (HW, 8C) f32

    # ---- SALayer: channel max/mean -> 5x5 conv (lane-dense 2-D planes, SMEM taps) ----
    res3 = res.reshape(H, W, C8)
    pmax[2:2 + H, A0:A0 + W] = jnp.max(res3, axis=-1)
    pavg[2:2 + H, A0:A0 + W] = jnp.mean(res3, axis=-1)
    sa = jnp.zeros((H, W), f32)
    for dy in range(5):
        for dx in range(5):
            t = 2 * (dy * 5 + dx)
            sa = (sa
                  + pmax[dy:dy + H, A0 - 2 + dx:A0 - 2 + dx + W] * wsal_ref[t]
                  + pavg[dy:dy + H, A0 - 2 + dx:A0 - 2 + dx + W] * wsal_ref[t + 1])
    res3 = res3 * jax.nn.sigmoid(sa)[:, :, None]
    rows = res3.reshape(HW, C8)                                          # (HW, 8C) f32

    # ---- CALayer: GAP -> 1x1 ReLU -> 1x1 sigmoid -> per-channel scale ----
    gap = jnp.mean(rows, axis=0, keepdims=True)                          # (1, 8C)
    z = jnp.maximum(jnp.dot(gap, ca1_ref[...], preferred_element_type=f32), 0.0)
    caw = jax.nn.sigmoid(jnp.dot(z, ca2_ref[...], preferred_element_type=f32))
    rows = (rows * caw).astype(cdt)                                      # (HW, 8C) bf16

    # ---- conv1x1(res) + BWT(x) residual, then IBWT (all folded into wa / wb) ----
    x4_rows = x_ref[0].reshape(HW, C4).astype(cdt)
    wvl = (jnp.dot(rows, wa_ref[...], preferred_element_type=f32)
           + jnp.dot(x4_rows, wb_ref[...], preferred_element_type=f32))  # (HW, 4C)

    # ---- final: full-res conv3x3 folded to a 3x3 patch-space conv (IBWT pixel
    #      interleave folded into w3p), ReLU, + conv1x1_final skip on the input ----
    padA[PH:PH + H, A0:A0 + W, :] = wvl.reshape(H, W, C4).astype(cdt)
    y = _im2col_conv(padA, col, w3p_ref, PH, A0, 1, H, W, C4, 3)         # (HW, 4*OF)
    y = jnp.maximum(y, 0.0)
    y = y + jnp.dot(x4_rows, wskip_ref[...], preferred_element_type=f32)
    o_ref[0] = y.astype(o_ref.dtype)


def _fused_block(x4c, w, H, W, C, k, OF, compute_dtype):
    """x4c: (B, H, W, 4C) half-res 2x2-patch layout -> (B, H*W, 4*OF) patch output."""
    B = x4c.shape[0]
    C4, C8 = 4 * C, 8 * C
    HW = H * W
    p = k // 2
    PH = max(p, 1)
    A0 = _PAD_ALIGN
    col_w = max(k * k, 9) * C4

    kern = functools.partial(_wavelet_block_kernel, H=H, W=W, C=C, k=k, OF=OF)

    flops = 2 * B * HW * (k * k * C4 * C + k * k * C * C8 + C8 * C4 + C4 * C4
                          + 9 * C4 * 4 * OF + C4 * 4 * OF + 50)
    weight_bytes = sum(
        int(np.prod(w[name].shape)) * jnp.dtype(w[name].dtype).itemsize
        for name in ("w1", "w2", "ca1", "ca2", "wa", "wb", "w3p", "wskip", "wsal"))
    bytes_accessed = (int(np.prod(x4c.shape)) * jnp.dtype(x4c.dtype).itemsize
                      + B * HW * 4 * OF * 4 + weight_bytes)
    cost = pl.CostEstimate(flops=int(flops), transcendentals=int(B * (HW + C8)),
                           bytes_accessed=int(bytes_accessed))

    return pl.pallas_call(
        kern,
        grid=(B,),
        in_specs=[
            pl.BlockSpec((1, H, W, C4), lambda b: (b, 0, 0, 0)),
            pl.BlockSpec(w["w1"].shape, lambda b: (0, 0)),
            pl.BlockSpec(w["w2"].shape, lambda b: (0, 0)),
            pl.BlockSpec(w["ca1"].shape, lambda b: (0, 0)),
            pl.BlockSpec(w["ca2"].shape, lambda b: (0, 0)),
            pl.BlockSpec(w["wa"].shape, lambda b: (0, 0)),
            pl.BlockSpec(w["wb"].shape, lambda b: (0, 0)),
            pl.BlockSpec(w["w3p"].shape, lambda b: (0, 0)),
            pl.BlockSpec(w["wskip"].shape, lambda b: (0, 0)),
            pl.BlockSpec(memory_space=pltpu.MemorySpace.SMEM),   # 50 SA conv taps
        ],
        out_specs=pl.BlockSpec((1, HW, 4 * OF), lambda b: (b, 0, 0)),
        out_shape=jax.ShapeDtypeStruct((B, HW, 4 * OF), jnp.float32),
        scratch_shapes=[
            pltpu.VMEM((H + 2 * PH, A0 + W + PH, C4), compute_dtype),  # padA (x4c / wvl)
            pltpu.VMEM((H + 2 * p, A0 + W + p, C), compute_dtype),     # padB (r1)
            pltpu.VMEM((HW, col_w), compute_dtype),                    # shared im2col slab
            pltpu.VMEM((H + 4, A0 + W + 2), jnp.float32),              # SA max plane
            pltpu.VMEM((H + 4, A0 + W + 2), jnp.float32),              # SA avg plane
        ],
        compiler_params=_compiler_params(1),
        cost_estimate=cost,
    )(x4c, w["w1"], w["w2"], w["ca1"], w["ca2"], w["wa"], w["wb"],
      w["w3p"], w["wskip"], w["wsal"])


# --------------------------------------------------------------------------- #
# weight preparation: fold BWT / IBWT / pixel-interleave into matmul weights
# --------------------------------------------------------------------------- #
def _prepare_weights(params, compute_dtype):
    C = params["body1"].shape[0]                       # n_feat
    k = params["body1"].shape[-1]
    OF = params["conv3x3"].shape[0]
    C4, C8 = 4 * C, 8 * C
    eye_c = jnp.eye(C, dtype=jnp.float32)

    # BWT: patch-slot order (ri,rj) = (0,0)=x1, (0,1)=x3, (1,0)=x2, (1,1)=x4;
    # band order (LL, HL, LH, HH, HD, LV, LD, HV); all scaled by 1/2.
    bp = jnp.array([[1, -1, -1,  1,  1, -1,  1, -1],   # x1
                    [1,  1, -1, -1, -1,  1,  1, -1],   # x3
                    [1, -1,  1, -1,  1,  1, -1, -1],   # x2
                    [1,  1,  1,  1, -1, -1, -1, -1]],  # x4
                   jnp.float32)
    w_bwt = 0.5 * jnp.kron(bp, eye_c)                                   # (4C, 8C)

    # IBWT: output-parity order (0,0), (0,1), (1,0), (1,1); scaled by 1/2.
    ic = jnp.array([[1, -1, -1,  1,  1, -1,  1, -1],
                    [1,  1, -1, -1, -1, -1,  1,  1],
                    [1, -1,  1, -1, -1,  1, -1,  1],
                    [1,  1,  1,  1,  1,  1,  1,  1]], jnp.float32)
    w_ibwt = 0.5 * jnp.kron(ic.T, eye_c)                                # (8C, 4C)

    def taps(wt):   # PyTorch (cout, cin, kh, kw) -> tap-major (kh*kw, cin, cout)
        co, ci, kh, kw = wt.shape
        return jnp.transpose(wt, (2, 3, 1, 0)).reshape(kh * kw, ci, co)

    # conv1 with the BWT folded in -> acts directly on the 4C patch channels.
    w1 = jnp.einsum("pb,tbo->tpo", w_bwt, taps(params["body1"])).reshape(k * k * C4, C)
    w2 = taps(params["body2"]).reshape(k * k * C, C8)

    # SA 5x5 taps as SMEM scalars, flattened [tap, (max, avg)].
    wsal = jnp.transpose(params["sal"][0], (1, 2, 0)).reshape(50)

    ca1 = params["ca1"][:, :, 0, 0].T                                   # (8C, 8C/r)
    ca2 = params["ca2"][:, :, 0, 0].T                                   # (8C/r, 8C)

    w1x1 = params["conv1x1"][:, :, 0, 0].T                              # (8C, 8C)
    wa = w1x1 @ w_ibwt                                                  # conv1x1 ∘ IBWT
    wb = w_bwt @ w_ibwt                                                 # BWT skip ∘ IBWT

    # Full-res conv3x3 folded onto the 2x2-patch layout (IBWT pixel interleave folded):
    # selector S[a, r, s, dy] = 1 iff  s + dy - 1 == 2*(a-1) + r  (a = patch tap 0..2).
    S = np.zeros((3, 2, 2, 3), np.float32)
    for a in range(3):
        for r in range(2):
            for s in range(2):
                dy = 2 * (a - 1) + r - s + 1
                if 0 <= dy <= 2:
                    S[a, r, s, dy] = 1.0
    S = jnp.asarray(S)
    w3p = jnp.einsum("arsy,bqtx,ocyx->abrqcsto", S, S, params["conv3x3"])
    w3p = w3p.reshape(9 * C4, 4 * OF)

    wf = params["conv1x1_final"][:, :, 0, 0].T                          # (C, OF)
    wskip = jnp.kron(jnp.eye(4, dtype=jnp.float32), wf)                 # (4C, 4*OF)

    cd = compute_dtype
    return dict(
        w1=w1.astype(cd), w2=w2.astype(cd),
        wa=wa.astype(cd), wb=wb.astype(cd),
        w3p=w3p.astype(cd), wskip=wskip.astype(cd),
        ca1=ca1.astype(jnp.float32), ca2=ca2.astype(jnp.float32),
        wsal=wsal.astype(jnp.float32),
        n_feat=C, k=k, o_feat=OF,
    )


# --------------------------------------------------------------------------- #
# parameters (PyTorch conv weight layouts, no biases: bias=False)
# --------------------------------------------------------------------------- #
def init_params(key, n_feat, o_feat, kernel_size, reduction):
    c8 = n_feat * 8
    keys = jax.random.split(key, 8)

    def w(k, shape):
        fan_in = shape[1] * shape[2] * shape[3]
        return jax.random.normal(k, shape, jnp.float32) / jnp.sqrt(float(fan_in))

    return {
        "body1": w(keys[0], (n_feat, c8, kernel_size, kernel_size)),
        "body2": w(keys[1], (c8, n_feat, kernel_size, kernel_size)),
        "sal": w(keys[2], (1, 2, 5, 5)),
        "ca1": w(keys[3], (c8 // reduction, c8, 1, 1)),
        "ca2": w(keys[4], (c8, c8 // reduction, 1, 1)),
        "conv1x1": w(keys[5], (c8, c8, 1, 1)),
        "conv3x3": w(keys[6], (o_feat, n_feat, 3, 3)),
        "conv1x1_final": w(keys[7], (o_feat, n_feat, 1, 1)),
    }


# --------------------------------------------------------------------------- #
# forward
# --------------------------------------------------------------------------- #
def wavelet_block_forward(x, params, compute_dtype=_COMPUTE_DTYPE):
    B, C, H, W = x.shape
    H2, W2 = H // 2, W // 2
    w = _prepare_weights(params, compute_dtype)
    assert w["n_feat"] == C
    OF, k = w["o_feat"], w["k"]

    # NCHW -> half-res 2x2-patch layout (B, H2, W2, 4C).  The BWT itself is folded
    # into the conv / residual weights, so no wavelet kernel runs.
    x4c = (jnp.transpose(x, (0, 2, 3, 1))
           .reshape(B, H2, 2, W2, 2, C)
           .transpose(0, 1, 3, 2, 4, 5)
           .reshape(B, H2, W2, 4 * C)
           .astype(compute_dtype))

    # single fused kernel: conv body + SAL + CAL + conv1x1 + BWT skip + IBWT +
    # conv3x3 (folded to patch space) + final 1x1 skip.
    out4 = _fused_block(x4c, w, H2, W2, C, k, OF, compute_dtype)   # (B, H2*W2, 4*OF)

    # patch layout -> NCHW full resolution (the only remaining output relayout).
    out = (out4.reshape(B, H2, W2, 2, 2, OF)
           .transpose(0, 5, 1, 3, 2, 4)
           .reshape(B, OF, H, W))
    return out


if __name__ == "__main__":
    B, n_feat, o_feat = 2, 4, 4
    kernel_size, reduction = 3, 16
    H = W = 16

    key = jax.random.PRNGKey(0)
    kx, kp = jax.random.split(key)
    x = jax.random.normal(kx, (B, n_feat, H, W), jnp.float32)
    params = init_params(kp, n_feat, o_feat, kernel_size, reduction)

    fwd = jax.jit(wavelet_block_forward)
    out = fwd(x, params)
    jax.block_until_ready(out)
    assert out.shape == (B, o_feat, H, W)
    print("KERNEL_OK")
</pallas_src>

<mosaic_0001>
module attributes {stable_mosaic.version = 11 : i64} {
  func.func @_wavelet_block_kernel(%arg0: i32, %arg1: memref<1x8x8x16xbf16, #tpu.memory_space<vmem>>, %arg2: memref<144x4xbf16, #tpu.memory_space<vmem>>, %arg3: memref<36x32xbf16, #tpu.memory_space<vmem>>, %arg4: memref<32x2xf32, #tpu.memory_space<vmem>>, %arg5: memref<2x32xf32, #tpu.memory_space<vmem>>, %arg6: memref<32x16xbf16, #tpu.memory_space<vmem>>, %arg7: memref<16x16xbf16, #tpu.memory_space<vmem>>, %arg8: memref<144x16xbf16, #tpu.memory_space<vmem>>, %arg9: memref<16x16xbf16, #tpu.memory_space<vmem>>, %arg10: memref<50xf32, #tpu.memory_space<smem>>, %arg11: memref<1x64x16xf32, #tpu.memory_space<vmem>>, %arg12: memref<10x25x16xbf16, #tpu.memory_space<vmem>>, %arg13: memref<10x25x4xbf16, #tpu.memory_space<vmem>>, %arg14: memref<64x144xbf16, #tpu.memory_space<vmem>>, %arg15: memref<12x26xf32, #tpu.memory_space<vmem>>, %arg16: memref<12x26xf32, #tpu.memory_space<vmem>>) attributes {dimension_semantics = [#tpu.dimension_semantics<parallel>], iteration_bounds = array<i64: 2>, scalar_prefetch = 0 : i64, scratch_operands = 5 : i64, tpu.core_type = #tpu.core_type<tc>, window_params = [{transform_indices = @transform_0, window_bounds = array<i64: 1, 8, 8, 16>}, {pipeline_mode = #tpu.pipeline_mode<synchronous>, transform_indices = @transform_1, window_bounds = array<i64: 144, 4>}, {pipeline_mode = #tpu.pipeline_mode<synchronous>, transform_indices = @transform_2, window_bounds = array<i64: 36, 32>}, {pipeline_mode = #tpu.pipeline_mode<synchronous>, transform_indices = @transform_3, window_bounds = array<i64: 32, 2>}, {pipeline_mode = #tpu.pipeline_mode<synchronous>, transform_indices = @transform_4, window_bounds = array<i64: 2, 32>}, {pipeline_mode = #tpu.pipeline_mode<synchronous>, transform_indices = @transform_5, window_bounds = array<i64: 32, 16>}, {pipeline_mode = #tpu.pipeline_mode<synchronous>, transform_indices = @transform_6, window_bounds = array<i64: 16, 16>}, {pipeline_mode = #tpu.pipeline_mode<synchronous>, transform_indices = @transform_7, window_bounds = array<i64: 144, 16>}, {pipeline_mode = #tpu.pipeline_mode<synchronous>, transform_indices = @transform_8, window_bounds = array<i64: 16, 16>}, {transform_indices = @transform_9, window_bounds = array<i64: 50>}, {transform_indices = @transform_10, window_bounds = array<i64: 1, 64, 16>}]} {
    %cst = arith.constant 0.000000e+00 : bf16
    %0 = vector.broadcast %cst : bf16 to vector<1x25x16xbf16>
    %c0 = arith.constant 0 : index
    %c0_0 = arith.constant 0 : index
    %c0_1 = arith.constant 0 : index
    %1 = vector.load %arg12[%c0, %c0_0, %c0_1] : memref<10x25x16xbf16, #tpu.memory_space<vmem>>, vector<1x25x16xbf16>
    tpu.vector_store %arg12[%c0, %c0_0, %c0_1], %0 {strides = array<i32>} : memref<10x25x16xbf16, #tpu.memory_space<vmem>>, vector<1x25x16xbf16>,
    %cst_2 = arith.constant 0.000000e+00 : bf16
    %2 = vector.broadcast %cst_2 : bf16 to vector<1x25x16xbf16>
    %c9 = arith.constant 9 : index
    %c0_3 = arith.constant 0 : index
    %c0_4 = arith.constant 0 : index
    %3 = vector.load %arg12[%c9, %c0_3, %c0_4] : memref<10x25x16xbf16, #tpu.memory_space<vmem>>, vector<1x25x16xbf16>
    tpu.vector_store %arg12[%c9, %c0_3, %c0_4], %2 {strides = array<i32>} : memref<10x25x16xbf16, #tpu.memory_space<vmem>>, vector<1x25x16xbf16>,
    %cst_5 = arith.constant 0.000000e+00 : bf16
    %4 = vector.broadcast %cst_5 : bf16 to vector<8x16x16xbf16>
    %c1 = arith.constant 1 : index
    %c0_6 = arith.constant 0 : index
    %c0_7 = arith.constant 0 : index
    %5 = vector.load %arg12[%c1, %c0_6, %c0_7] : memref<10x25x16xbf16, #tpu.memory_space<vmem>>, vector<8x16x16xbf16>
    tpu.vector_store %arg12[%c1, %c0_6, %c0_7], %4 {strides = array<i32>} : memref<10x25x16xbf16, #tpu.memory_space<vmem>>, vector<8x16x16xbf16>,
    %cst_8 = arith.constant 0.000000e+00 : bf16
    %6 = vector.broadcast %cst_8 : bf16 to vector<8x1x16xbf16>
    %c1_9 = arith.constant 1 : index
    %c24 = arith.constant 24 : index
    %c0_10 = arith.constant 0 : index
    %7 = vector.load %arg12[%c1_9, %c24, %c0_10] : memref<10x25x16xbf16, #tpu.memory_space<vmem>>, vector<8x1x16xbf16>
    tpu.vector_store %arg12[%c1_9, %c24, %c0_10], %6 {strides = array<i32>} : memref<10x25x16xbf16, #tpu.memory_space<vmem>>, vector<8x1x16xbf16>,
    %cst_11 = arith.constant 0.000000e+00 : bf16
    %8 = vector.broadcast %cst_11 : bf16 to vector<1x25x4xbf16>
    %c0_12 = arith.constant 0 : index
    %c0_13 = arith.constant 0 : index
    %c0_14 = arith.constant 0 : index
    %9 = vector.load %arg13[%c0_12, %c0_13, %c0_14] : memref<10x25x4xbf16, #tpu.memory_space<vmem>>, vector<1x25x4xbf16>
    tpu.vector_store %arg13[%c0_12, %c0_13, %c0_14], %8 {strides = array<i32>} : memref<10x25x4xbf16, #tpu.memory_space<vmem>>, vector<1x25x4xbf16>,
    %cst_15 = arith.constant 0.000000e+00 : bf16
    %10 = vector.broadcast %cst_15 : bf16 to vector<1x25x4xbf16>
    %c9_16 = arith.constant 9 : index
    %c0_17 = arith.constant 0 : index
    %c0_18 = arith.constant 0 : index
    %11 = vector.load %arg13[%c9_16, %c0_17, %c0_18] : memref<10x25x4xbf16, #tpu.memory_space<vmem>>, vector<1x25x4xbf16>
    tpu.vector_store %arg13[%c9_16, %c0_17, %c0_18], %10 {strides = array<i32>} : memref<10x25x4xbf16, #tpu.memory_space<vmem>>, vector<1x25x4xbf16>,
    %cst_19 = arith.constant 0.000000e+00 : bf16
    %12 = vector.broadcast %cst_19 : bf16 to vector<8x16x4xbf16>
    %c1_20 = arith.constant 1 : index
    %c0_21 = arith.constant 0 : index
    %c0_22 = arith.constant 0 : index
    %13 = vector.load %arg13[%c1_20, %c0_21, %c0_22] : memref<10x25x4xbf16, #tpu.memory_space<vmem>>, vector<8x16x4xbf16>
    tpu.vector_store %arg13[%c1_20, %c0_21, %c0_22], %12 {strides = array<i32>} : memref<10x25x4xbf16, #tpu.memory_space<vmem>>, vector<8x16x4xbf16>,
    %cst_23 = arith.constant 0.000000e+00 : bf16
    %14 = vector.broadcast %cst_23 : bf16 to vector<8x1x4xbf16>
    %c1_24 = arith.constant 1 : index
    %c24_25 = arith.constant 24 : index
    %c0_26 = arith.constant 0 : index
    %15 = vector.load %arg13[%c1_24, %c24_25, %c0_26] : memref<10x25x4xbf16, #tpu.memory_space<vmem>>, vector<8x1x4xbf16>
    tpu.vector_store %arg13[%c1_24, %c24_25, %c0_26], %14 {strides = array<i32>} : memref<10x25x4xbf16, #tpu.memory_space<vmem>>, vector<8x1x4xbf16>,
    %cst_27 = arith.constant 0.000000e+00 : f32
    %16 = vector.broadcast %cst_27 : f32 to vector<2x26xf32>
    %c0_28 = arith.constant 0 : index
    %c0_29 = arith.constant 0 : index
    %17 = vector.load %arg15[%c0_28, %c0_29] : memref<12x26xf32, #tpu.memory_space<vmem>>, vector<2x26xf32>
    tpu.vector_store %arg15[%c0_28, %c0_29], %16 {strides = array<i32>} : memref<12x26xf32, #tpu.memory_space<vmem>>, vector<2x26xf32>,
    %cst_30 = arith.constant 0.000000e+00 : f32
    %18 = vector.broadcast %cst_30 : f32 to vector<2x26xf32>
    %c10 = arith.constant 10 : index
    %c0_31 = arith.constant 0 : index
    %19 = vector.load %arg15[%c10, %c0_31] : memref<12x26xf32, #tpu.memory_space<vmem>>, vector<2x26xf32>
    tpu.vector_store %arg15[%c10, %c0_31], %18 {strides = array<i32>} : memref<12x26xf32, #tpu.memory_space<vmem>>, vector<2x26xf32>,
    %cst_32 = arith.constant 0.000000e+00 : f32
    %20 = vector.broadcast %cst_32 : f32 to vector<8x16xf32>
    %c2 = arith.constant 2 : index
    %c0_33 = arith.constant 0 : index
    %21 = vector.load %arg15[%c2, %c0_33] : memref<12x26xf32, #tpu.memory_space<vmem>>, vector<8x16xf32>
    tpu.vector_store %arg15[%c2, %c0_33], %20 {strides = array<i32>} : memref<12x26xf32, #tpu.memory_space<vmem>>, vector<8x16xf32>,
    %cst_34 = arith.constant 0.000000e+00 : f32
    %22 = vector.broadcast %cst_34 : f32 to vector<8x2xf32>
    %c2_35 = arith.constant 2 : index
    %c24_36 = arith.constant 24 : index
    %23 = vector.load %arg15[%c2_35, %c24_36] : memref<12x26xf32, #tpu.memory_space<vmem>>, vector<8x2xf32>
    tpu.vector_store %arg15[%c2_35, %c24_36], %22 {strides = array<i32>} : memref<12x26xf32, #tpu.memory_space<vmem>>, vector<8x2xf32>,
    %cst_37 = arith.constant 0.000000e+00 : f32
    %24 = vector.broadcast %cst_37 : f32 to vector<2x26xf32>
    %c0_38 = arith.constant 0 : index
    %c0_39 = arith.constant 0 : index
    %25 = vector.load %arg16[%c0_38, %c0_39] : memref<12x26xf32, #tpu.memory_space<vmem>>, vector<2x26xf32>
    tpu.vector_store %arg16[%c0_38, %c0_39], %24 {strides = array<i32>} : memref<12x26xf32, #tpu.memory_space<vmem>>, vector<2x26xf32>,
    %cst_40 = arith.constant 0.000000e+00 : f32
    %26 = vector.broadcast %cst_40 : f32 to vector<2x26xf32>
    %c10_41 = arith.constant 10 : index
    %c0_42 = arith.constant 0 : index
    %27 = vector.load %arg16[%c10_41, %c0_42] : memref<12x26xf32, #tpu.memory_space<vmem>>, vector<2x26xf32>
    tpu.vector_store %arg16[%c10_41, %c0_42], %26 {strides = array<i32>} : memref<12x26xf32, #tpu.memory_space<vmem>>, vector<2x26xf32>,
    %cst_43 = arith.constant 0.000000e+00 : f32
    %28 = vector.broadcast %cst_43 : f32 to vector<8x16xf32>
    %c2_44 = arith.constant 2 : index
    %c0_45 = arith.constant 0 : index
    %29 = vector.load %arg16[%c2_44, %c0_45] : memref<12x26xf32, #tpu.memory_space<vmem>>, vector<8x16xf32>
    tpu.vector_store %arg16[%c2_44, %c0_45], %28 {strides = array<i32>} : memref<12x26xf32, #tpu.memory_space<vmem>>, vector<8x16xf32>,
    %cst_46 = arith.constant 0.000000e+00 : f32
    %30 = vector.broadcast %cst_46 : f32 to vector<8x2xf32>
    %c2_47 = arith.constant 2 : index
    %c24_48 = arith.constant 24 : index
    %31 = vector.load %arg16[%c2_47, %c24_48] : memref<12x26xf32, #tpu.memory_space<vmem>>, vector<8x2xf32>
    tpu.vector_store %arg16[%c2_47, %c24_48], %30 {strides = array<i32>} : memref<12x26xf32, #tpu.memory_space<vmem>>, vector<8x2xf32>,
    %c0_49 = arith.constant 0 : index
    %c0_50 = arith.constant 0 : index
    %c0_51 = arith.constant 0 : index
    %c0_52 = arith.constant 0 : index
    %32 = vector.load %arg1[%c0_49, %c0_50, %c0_51, %c0_52] : memref<1x8x8x16xbf16, #tpu.memory_space<vmem>>, vector<1x8x8x16xbf16>
    %33 = vector.shape_cast %32 : vector<1x8x8x16xbf16> to vector<8x8x16xbf16>
    %c1_53 = arith.constant 1 : index
    %c16 = arith.constant 16 : index
    %c0_54 = arith.constant 0 : index
    %34 = vector.load %arg12[%c1_53, %c16, %c0_54] : memref<10x25x16xbf16, #tpu.memory_space<vmem>>, vector<8x8x16xbf16>
    tpu.vector_store %arg12[%c1_53, %c16, %c0_54], %33 {strides = array<i32>} : memref<10x25x16xbf16, #tpu.memory_space<vmem>>, vector<8x8x16xbf16>,
    %c0_55 = arith.constant 0 : index
    %c15 = arith.constant 15 : index
    %c0_56 = arith.constant 0 : index
    %35 = vector.load %arg12[%c0_55, %c15, %c0_56] : memref<10x25x16xbf16, #tpu.memory_space<vmem>>, vector<8x8x16xbf16>
    %36 = vector.shape_cast %35 : vector<8x8x16xbf16> to vector<64x16xbf16>
    %c0_57 = arith.constant 0 : index
    %c0_58 = arith.constant 0 : index
    %37 = vector.load %arg14[%c0_57, %c0_58] : memref<64x144xbf16, #tpu.memory_space<vmem>>, vector<64x16xbf16>
    tpu.vector_store %arg14[%c0_57, %c0_58], %36 {strides = array<i32>} : memref<64x144xbf16, #tpu.memory_space<vmem>>, vector<64x16xbf16>,
    %c0_59 = arith.constant 0 : index
    %c16_60 = arith.constant 16 : index
    %c0_61 = arith.constant 0 : index
    %38 = vector.load %arg12[%c0_59, %c16_60, %c0_61] : memref<10x25x16xbf16, #tpu.memory_space<vmem>>, vector<8x8x16xbf16>
    %39 = vector.shape_cast %38 : vector<8x8x16xbf16> to vector<64x16xbf16>
    %c0_62 = arith.constant 0 : index
    %c16_63 = arith.constant 16 : index
    %40 = vector.load %arg14[%c0_62, %c16_63] : memref<64x144xbf16, #tpu.memory_space<vmem>>, vector<64x16xbf16>
    tpu.vector_store %arg14[%c0_62, %c16_63], %39 {strides = array<i32>} : memref<64x144xbf16, #tpu.memory_space<vmem>>, vector<64x16xbf16>,
    %c0_64 = arith.constant 0 : index
    %c17 = arith.constant 17 : index
    %c0_65 = arith.constant 0 : index
    %41 = vector.load %arg12[%c0_64, %c17, %c0_65] : memref<10x25x16xbf16, #tpu.memory_space<vmem>>, vector<8x8x16xbf16>
    %42 = vector.shape_cast %41 : vector<8x8x16xbf16> to vector<64x16xbf16>
    %c0_66 = arith.constant 0 : index
    %c32 = arith.constant 32 : index
    %43 = vector.load %arg14[%c0_66, %c32] : memref<64x144xbf16, #tpu.memory_space<vmem>>, vector<64x16xbf16>
    tpu.vector_store %arg14[%c0_66, %c32], %42 {strides = array<i32>} : memref<64x144xbf16, #tpu.memory_space<vmem>>, vector<64x16xbf16>,
    %c1_67 = arith.constant 1 : index
    %c15_68 = arith.constant 15 : index
    %c0_69 = arith.constant 0 : index
    %44 = vector.load %arg12[%c1_67, %c15_68, %c0_69] : memref<10x25x16xbf16, #tpu.memory_space<vmem>>, vector<8x8x16xbf16>
    %45 = vector.shape_cast %44 : vector<8x8x16xbf16> to vector<64x16xbf16>
    %c0_70 = arith.constant 0 : index
    %c48 = arith.constant 48 : index
    %46 = vector.load %arg14[%c0_70, %c48] : memref<64x144xbf16, #tpu.memory_space<vmem>>, vector<64x16xbf16>
    tpu.vector_store %arg14[%c0_70, %c48], %45 {strides = array<i32>} : memref<64x144xbf16, #tpu.memory_space<vmem>>, vector<64x16xbf16>,
    %c1_71 = arith.constant 1 : index
    %c16_72 = arith.constant 16 : index
    %c0_73 = arith.constant 0 : index
    %47 = vector.load %arg12[%c1_71, %c16_72, %c0_73] : memref<10x25x16xbf16, #tpu.memory_space<vmem>>, vector<8x8x16xbf16>
    %48 = vector.shape_cast %47 : vector<8x8x16xbf16> to vector<64x16xbf16>
    %c0_74 = arith.constant 0 : index
    %c64 = arith.constant 64 : index
    %49 = vector.load %arg14[%c0_74, %c64] : memref<64x144xbf16, #tpu.memory_space<vmem>>, vector<64x16xbf16>
    tpu.vector_store %arg14[%c0_74, %c64], %48 {strides = array<i32>} : memref<64x144xbf16, #tpu.memory_space<vmem>>, vector<64x16xbf16>,
    %c1_75 = arith.constant 1 : index
    %c17_76 = arith.constant 17 : index
    %c0_77 = arith.constant 0 : index
    %50 = vector.load %arg12[%c1_75, %c17_76, %c0_77] : memref<10x25x16xbf16, #tpu.memory_space<vmem>>, vector<8x8x16xbf16>
    %51 = vector.shape_cast %50 : vector<8x8x16xbf16> to vector<64x16xbf16>
    %c0_78 = arith.constant 0 : index
    %c80 = arith.constant 80 : index
    %52 = vector.load %arg14[%c0_78, %c80] : memref<64x144xbf16, #tpu.memory_space<vmem>>, vector<64x16xbf16>
    tpu.vector_store %arg14[%c0_78, %c80], %51 {strides = array<i32>} : memref<64x144xbf16, #tpu.memory_space<vmem>>, vector<64x16xbf16>,
    %c2_79 = arith.constant 2 : index
    %c15_80 = arith.constant 15 : index
    %c0_81 = arith.constant 0 : index
    %53 = vector.load %arg12[%c2_79, %c15_80, %c0_81] : memref<10x25x16xbf16, #tpu.memory_space<vmem>>, vector<8x8x16xbf16>
    %54 = vector.shape_cast %53 : vector<8x8x16xbf16> to vector<64x16xbf16>
    %c0_82 = arith.constant 0 : index
    %c96 = arith.constant 96 : index
    %55 = vector.load %arg14[%c0_82, %c96] : memref<64x144xbf16, #tpu.memory_space<vmem>>, vector<64x16xbf16>
    tpu.vector_store %arg14[%c0_82, %c96], %54 {strides = array<i32>} : memref<64x144xbf16, #tpu.memory_space<vmem>>, vector<64x16xbf16>,
    %c2_83 = arith.constant 2 : index
    %c16_84 = arith.constant 16 : index
    %c0_85 = arith.constant 0 : index
    %56 = vector.load %arg12[%c2_83, %c16_84, %c0_85] : memref<10x25x16xbf16, #tpu.memory_space<vmem>>, vector<8x8x16xbf16>
    %57 = vector.shape_cast %56 : vector<8x8x16xbf16> to vector<64x16xbf16>
    %c0_86 = arith.constant 0 : index
    %c112 = arith.constant 112 : index
    %58 = vector.load %arg14[%c0_86, %c112] : memref<64x144xbf16, #tpu.memory_space<vmem>>, vector<64x16xbf16>
    tpu.vector_store %arg14[%c0_86, %c112], %57 {strides = array<i32>} : memref<64x144xbf16, #tpu.memory_space<vmem>>, vector<64x16xbf16>,
    %c2_87 = arith.constant 2 : index
    %c17_88 = arith.constant 17 : index
    %c0_89 = arith.constant 0 : index
    %59 = vector.load %arg12[%c2_87, %c17_88, %c0_89] : memref<10x25x16xbf16, #tpu.memory_space<vmem>>, vector<8x8x16xbf16>
    %60 = vector.shape_cast %59 : vector<8x8x16xbf16> to vector<64x16xbf16>
    %c0_90 = arith.constant 0 : index
    %c128 = arith.constant 128 : index
    %61 = vector.load %arg14[%c0_90, %c128] : memref<64x144xbf16, #tpu.memory_space<vmem>>, vector<64x16xbf16>
    tpu.vector_store %arg14[%c0_90, %c128], %60 {strides = array<i32>} : memref<64x144xbf16, #tpu.memory_space<vmem>>, vector<64x16xbf16>,
    %c0_91 = arith.constant 0 : index
    %c0_92 = arith.constant 0 : index
    %62 = vector.load %arg14[%c0_91, %c0_92] : memref<64x144xbf16, #tpu.memory_space<vmem>>, vector<64x144xbf16>
    %c0_93 = arith.constant 0 : index
    %c0_94 = arith.constant 0 : index
    %63 = vector.load %arg2[%c0_93, %c0_94] : memref<144x4xbf16, #tpu.memory_space<vmem>>, vector<144x4xbf16>
    %cst_95 = arith.constant dense<0.000000e+00> : vector<64x4xf32>
    %64 = tpu.matmul %62, %63, %cst_95 {dimension_numbers = #tpu.dot_dimension_numbers<[1], [0], [0], [1], [0, 0, 1, 1], [], []>} : vector<64x144xbf16>, vector<144x4xbf16>, vector<64x4xf32> -> vector<64x4xf32>
    %cst_96 = arith.constant 0.000000e+00 : f32
    %65 = vector.broadcast %cst_96 : f32 to vector<64x4xf32>
    %66 = arith.maximumf %64, %65 : vector<64x4xf32>
    %67 = vector.shape_cast %66 : vector<64x4xf32> to vector<8x8x4xf32>
    %68 = arith.truncf %67 : vector<8x8x4xf32> to vector<8x8x4xbf16>
    %c1_97 = arith.constant 1 : index
    %c16_98 = arith.constant 16 : index
    %c0_99 = arith.constant 0 : index
    %69 = vector.load %arg13[%c1_97, %c16_98, %c0_99] : memref<10x25x4xbf16, #tpu.memory_space<vmem>>, vector<8x8x4xbf16>
    tpu.vector_store %arg13[%c1_97, %c16_98, %c0_99], %68 {strides = array<i32>} : memref<10x25x4xbf16, #tpu.memory_space<vmem>>, vector<8x8x4xbf16>,
    %c0_100 = arith.constant 0 : index
    %c15_101 = arith.constant 15 : index
    %c0_102 = arith.constant 0 : index
    %70 = vector.load %arg13[%c0_100, %c15_101, %c0_102] : memref<10x25x4xbf16, #tpu.memory_space<vmem>>, vector<8x8x4xbf16>
    %71 = vector.shape_cast %70 : vector<8x8x4xbf16> to vector<64x4xbf16>
    %c0_103 = arith.constant 0 : index
    %c0_104 = arith.constant 0 : index
    %72 = vector.load %arg14[%c0_103, %c0_104] : memref<64x144xbf16, #tpu.memory_space<vmem>>, vector<64x4xbf16>
    tpu.vector_store %arg14[%c0_103, %c0_104], %71 {strides = array<i32>} : memref<64x144xbf16, #tpu.memory_space<vmem>>, vector<64x4xbf16>,
    %c0_105 = arith.constant 0 : index
    %c16_106 = arith.constant 16 : index
    %c0_107 = arith.constant 0 : index
    %73 = vector.load %arg13[%c0_105, %c16_106, %c0_107] : memref<10x25x4xbf16, #tpu.memory_space<vmem>>, vector<8x8x4xbf16>
    %74 = vector.shape_cast %73 : vector<8x8x4xbf16> to vector<64x4xbf16>
    %c0_108 = arith.constant 0 : index
    %c4 = arith.constant 4 : index
    %75 = vector.load %arg14[%c0_108, %c4] : memref<64x144xbf16, #tpu.memory_space<vmem>>, vector<64x4xbf16>
    tpu.vector_store %arg14[%c0_108, %c4], %74 {strides = array<i32>} : memref<64x144xbf16, #tpu.memory_space<vmem>>, vector<64x4xbf16>,
    %c0_109 = arith.constant 0 : index
    %c17_110 = arith.constant 17 : index
    %c0_111 = arith.constant 0 : index
    %76 = vector.load %arg13[%c0_109, %c17_110, %c0_111] : memref<10x25x4xbf16, #tpu.memory_space<vmem>>, vector<8x8x4xbf16>
    %77 = vector.shape_cast %76 : vector<8x8x4xbf16> to vector<64x4xbf16>
    %c0_112 = arith.constant 0 : index
    %c8 = arith.constant 8 : index
    %78 = vector.load %arg14[%c0_112, %c8] : memref<64x144xbf16, #tpu.memory_space<vmem>>, vector<64x4xbf16>
    tpu.vector_store %arg14[%c0_112, %c8], %77 {strides = array<i32>} : memref<64x144xbf16, #tpu.memory_space<vmem>>, vector<64x4xbf16>,
    %c1_113 = arith.constant 1 : index
    %c15_114 = arith.constant 15 : index
    %c0_115 = arith.constant 0 : index
    %79 = vector.load %arg13[%c1_113, %c15_114, %c0_115] : memref<10x25x4xbf16, #tpu.memory_space<vmem>>, vector<8x8x4xbf16>
    %80 = vector.shape_cast %79 : vector<8x8x4xbf16> to vector<64x4xbf16>
    %c0_116 = arith.constant 0 : index
    %c12 = arith.constant 12 : index
    %81 = vector.load %arg14[%c0_116, %c12] : memref<64x144xbf16, #tpu.memory_space<vmem>>, vector<64x4xbf16>
    tpu.vector_store %arg14[%c0_116, %c12], %80 {strides = array<i32>} : memref<64x144xbf16, #tpu.memory_space<vmem>>, vector<64x4xbf16>,
    %c1_117 = arith.constant 1 : index
    %c16_118 = arith.constant 16 : index
    %c0_119 = arith.constant 0 : index
    %82 = vector.load %arg13[%c1_117, %c16_118, %c0_119] : memref<10x25x4xbf16, #tpu.memory_space<vmem>>, vector<8x8x4xbf16>
    %83 = vector.shape_cast %82 : vector<8x8x4xbf16> to vector<64x4xbf16>
    %c0_120 = arith.constant 0 : index
    %c16_121 = arith.constant 16 : index
    %84 = vector.load %arg14[%c0_120, %c16_121] : memref<64x144xbf16, #tpu.memory_space<vmem>>, vector<64x4xbf16>
    tpu.vector_store %arg14[%c0_120, %c16_121], %83 {strides = array<i32>} : memref<64x144xbf16, #tpu.memory_space<vmem>>, vector<64x4xbf16>,
    %c1_122 = arith.constant 1 : index
    %c17_123 = arith.constant 17 : index
    %c0_124 = arith.constant 0 : index
    %85 = vector.load %arg13[%c1_122, %c17_123, %c0_124] : memref<10x25x4xbf16, #tpu.memory_space<vmem>>, vector<8x8x4xbf16>
    %86 = vector.shape_cast %85 : vector<8x8x4xbf16> to vector<64x4xbf16>
    %c0_125 = arith.constant 0 : index
    %c20 = arith.constant 20 : index
    %87 = vector.load %arg14[%c0_125, %c20] : memref<64x144xbf16, #tpu.memory_space<vmem>>, vector<64x4xbf16>
    tpu.vector_store %arg14[%c0_125, %c20], %86 {strides = array<i32>} : memref<64x144xbf16, #tpu.memory_space<vmem>>, vector<64x4xbf16>,
    %c2_126 = arith.constant 2 : index
    %c15_127 = arith.constant 15 : index
    %c0_128 = arith.constant 0 : index
    %88 = vector.load %arg13[%c2_126, %c15_127, %c0_128] : memref<10x25x4xbf16, #tpu.memory_space<vmem>>, vector<8x8x4xbf16>
    %89 = vector.shape_cast %88 : vector<8x8x4xbf16> to vector<64x4xbf16>
    %c0_129 = arith.constant 0 : index
    %c24_130 = arith.constant 24 : index
    %90 = vector.load %arg14[%c0_129, %c24_130] : memref<64x144xbf16, #tpu.memory_space<vmem>>, vector<64x4xbf16>
    tpu.vector_store %arg14[%c0_129, %c24_130], %89 {strides = array<i32>} : memref<64x144xbf16, #tpu.memory_space<vmem>>, vector<64x4xbf16>,
    %c2_131 = arith.constant 2 : index
    %c16_132 = arith.constant 16 : index
    %c0_133 = arith.constant 0 : index
    %91 = vector.load %arg13[%c2_131, %c16_132, %c0_133] : memref<10x25x4xbf16, #tpu.memory_space<vmem>>, vector<8x8x4xbf16>
    %92 = vector.shape_cast %91 : vector<8x8x4xbf16> to vector<64x4xbf16>
    %c0_134 = arith.constant 0 : index
    %c28 = arith.constant 28 : index
    %93 = vector.load %arg14[%c0_134, %c28] : memref<64x144xbf16, #tpu.memory_space<vmem>>, vector<64x4xbf16>
    tpu.vector_store %arg14[%c0_134, %c28], %92 {strides = array<i32>} : memref<64x144xbf16, #tpu.memory_space<vmem>>, vector<64x4xbf16>,
    %c2_135 = arith.constant 2 : index
    %c17_136 = arith.constant 17 : index
    %c0_137 = arith.constant 0 : index
    %94 = vector.load %arg13[%c2_135, %c17_136, %c0_137] : memref<10x25x4xbf16, #tpu.memory_space<vmem>>, vector<8x8x4xbf16>
    %95 = vector.shape_cast %94 : vector<8x8x4xbf16> to vector<64x4xbf16>
    %c0_138 = arith.constant 0 : index
    %c32_139 = arith.constant 32 : index
    %96 = vector.load %arg14[%c0_138, %c32_139] : memref<64x144xbf16, #tpu.memory_space<vmem>>, vector<64x4xbf16>
    tpu.vector_store %arg14[%c0_138, %c32_139], %95 {strides = array<i32>} : memref<64x144xbf16, #tpu.memory_space<vmem>>, vector<64x4xbf16>,
    %c0_140 = arith.constant 0 : index
    %c0_141 = arith.constant 0 : index
    %97 = vector.load %arg14[%c0_140, %c0_141] : memref<64x144xbf16, #tpu.memory_space<vmem>>, vector<64x36xbf16>
    %c0_142 = arith.constant 0 : index
    %c0_143 = arith.constant 0 : index
    %98 = vector.load %arg3[%c0_142, %c0_143] : memref<36x32xbf16, #tpu.memory_space<vmem>>, vector<36x32xbf16>
    %cst_144 = arith.constant dense<0.000000e+00> : vector<64x32xf32>
    %99 = tpu.matmul %97, %98, %cst_144 {dimension_numbers = #tpu.dot_dimension_numbers<[1], [0], [0], [1], [0, 0, 1, 1], [], []>} : vector<64x36xbf16>, vector<36x32xbf16>, vector<64x32xf32> -> vector<64x32xf32>
    %100 = vector.shape_cast %99 : vector<64x32xf32> to vector<8x8x32xf32>
    %cst_145 = arith.constant dense<0xFF800000> : vector<8x8xf32>
    %101 = vector.multi_reduction <maximumf>, %100, %cst_145 [2] : vector<8x8x32xf32> to vector<8x8xf32>
    %c2_146 = arith.constant 2 : index
    %c16_147 = arith.constant 16 : index
    %102 = vector.load %arg15[%c2_146, %c16_147] : memref<12x26xf32, #tpu.memory_space<vmem>>, vector<8x8xf32>
    tpu.vector_store %arg15[%c2_146, %c16_147], %101 {strides = array<i32>} : memref<12x26xf32, #tpu.memory_space<vmem>>, vector<8x8xf32>,
    %cst_148 = arith.constant dense<0.000000e+00> : vector<8x8xf32>
    %103 = vector.multi_reduction <add>, %100, %cst_148 [2] : vector<8x8x32xf32> to vector<8x8xf32>
    %cst_149 = arith.constant 3.200000e+01 : f32
    %104 = vector.broadcast %cst_149 : f32 to vector<8x8xf32>
    %105 = arith.divf %103, %104 : vector<8x8xf32>
    %c2_150 = arith.constant 2 : index
    %c16_151 = arith.constant 16 : index
    %106 = vector.load %arg16[%c2_150, %c16_151] : memref<12x26xf32, #tpu.memory_space<vmem>>, vector<8x8xf32>
    tpu.vector_store %arg16[%c2_150, %c16_151], %105 {strides = array<i32>} : memref<12x26xf32, #tpu.memory_space<vmem>>, vector<8x8xf32>,
    %cst_152 = arith.constant 0.000000e+00 : f32
    %107 = vector.broadcast %cst_152 : f32 to vector<8x8xf32>
    %c0_153 = arith.constant 0 : index
    %c14 = arith.constant 14 : index
    %108 = vector.load %arg15[%c0_153, %c14] : memref<12x26xf32, #tpu.memory_space<vmem>>, vector<8x8xf32>
    %c0_154 = arith.constant 0 : index
    %109 = memref.load %arg10[%c0_154] : memref<50xf32, #tpu.memory_space<smem>>
    %110 = vector.broadcast %109 : f32 to vector<8x8xf32>
    %111 = arith.mulf %108, %110 : vector<8x8xf32>
    %112 = arith.addf %107, %111 : vector<8x8xf32>
    %c0_155 = arith.constant 0 : index
    %c14_156 = arith.constant 14 : index
    %113 = vector.load %arg16[%c0_155, %c14_156] : memref<12x26xf32, #tpu.memory_space<vmem>>, vector<8x8xf32>
    %c1_157 = arith.constant 1 : index
    %114 = memref.load %arg10[%c1_157] : memref<50xf32, #tpu.memory_space<smem>>
    %115 = vector.broadcast %114 : f32 to vector<8x8xf32>
    %116 = arith.mulf %113, %115 : vector<8x8xf32>
    %117 = arith.addf %112, %116 : vector<8x8xf32>
    %c0_158 = arith.constant 0 : index
    %c15_159 = arith.constant 15 : index
    %118 = vector.load %arg15[%c0_158, %c15_159] : memref<12x26xf32, #tpu.memory_space<vmem>>, vector<8x8xf32>
    %c2_160 = arith.constant 2 : index
    %119 = memref.load %arg10[%c2_160] : memref<50xf32, #tpu.memory_space<smem>>
    %120 = vector.broadcast %119 : f32 to vector<8x8xf32>
    %121 = arith.mulf %118, %120 : vector<8x8xf32>
    %122 = arith.addf %117, %121 : vector<8x8xf32>
    %c0_161 = arith.constant 0 : index
    %c15_162 = arith.constant 15 : index
    %123 = vector.load %arg16[%c0_161, %c15_162] : memref<12x26xf32, #tpu.memory_space<vmem>>, vector<8x8xf32>
    %c3 = arith.constant 3 : index
    %124 = memref.load %arg10[%c3] : memref<50xf32, #tpu.memory_space<smem>>
    %125 = vector.broadcast %124 : f32 to vector<8x8xf32>
    %126 = arith.mulf %123, %125 : vector<8x8xf32>
    %127 = arith.addf %122, %126 : vector<8x8xf32>
    %c0_163 = arith.constant 0 : index
    %c16_164 = arith.constant 16 : index
    %128 = vector.load %arg15[%c0_163, %c16_164] : memref<12x26xf32, #tpu.memory_space<vmem>>, vector<8x8xf32>
    %c4_165 = arith.constant 4 : index
    %129 = memref.load %arg10[%c4_165] : memref<50xf32, #tpu.memory_space<smem>>
    %130 = vector.broadcast %129 : f32 to vector<8x8xf32>
    %131 = arith.mulf %128, %130 : vector<8x8xf32>
    %132 = arith.addf %127, %131 : vector<8x8xf32>
    %c0_166 = arith.constant 0 : index
    %c16_167 = arith.constant 16 : index
    %133 = vector.load %arg16[%c0_166, %c16_167] : memref<12x26xf32, #tpu.memory_space<vmem>>, vector<8x8xf32>
    %c5 = arith.constant 5 : index
    %134 = memref.load %arg10[%c5] : memref<50xf32, #tpu.memory_space<smem>>
    %135 = vector.broadcast %134 : f32 to vector<8x8xf32>
    %136 = arith.mulf %133, %135 : vector<8x8xf32>
    %137 = arith.addf %132, %136 : vector<8x8xf32>
    %c0_168 = arith.constant 0 : index
    %c17_169 = arith.constant 17 : index
    %138 = vector.load %arg15[%c0_168, %c17_169] : memref<12x26xf32, #tpu.memory_space<vmem>>, vector<8x8xf32>
    %c6 = arith.constant 6 : index
    %139 = memref.load %arg10[%c6] : memref<50xf32, #tpu.memory_space<smem>>
    %140 = vector.broadcast %139 : f32 to vector<8x8xf32>
    %141 = arith.mulf %138, %140 : vector<8x8xf32>
    %142 = arith.addf %137, %141 : vector<8x8xf32>
    %c0_170 = arith.constant 0 : index
    %c17_171 = arith.constant 17 : index
    %143 = vector.load %arg16[%c0_170, %c17_171] : memref<12x26xf32, #tpu.memory_space<vmem>>, vector<8x8xf32>
    %c7 = arith.constant 7 : index
    %144 = memref.load %arg10[%c7] : memref<50xf32, #tpu.memory_space<smem>>
    %145 = vector.broadcast %144 : f32 to vector<8x8xf32>
    %146 = arith.mulf %143, %145 : vector<8x8xf32>
    %147 = arith.addf %142, %146 : vector<8x8xf32>
    %c0_172 = arith.constant 0 : index
    %c18 = arith.constant 18 : index
    %148 = vector.load %arg15[%c0_172, %c18] : memref<12x26xf32, #tpu.memory_space<vmem>>, vector<8x8xf32>
    %c8_173 = arith.constant 8 : index
    %149 = memref.load %arg10[%c8_173] : memref<50xf32, #tpu.memory_space<smem>>
    %150 = vector.broadcast %149 : f32 to vector<8x8xf32>
    %151 = arith.mulf %148, %150 : vector<8x8xf32>
    %152 = arith.addf %147, %151 : vector<8x8xf32>
    %c0_174 = arith.constant 0 : index
    %c18_175 = arith.constant 18 : index
    %153 = vector.load %arg16[%c0_174, %c18_175] : memref<12x26xf32, #tpu.memory_space<vmem>>, vector<8x8xf32>
    %c9_176 = arith.constant 9 : index
    %154 = memref.load %arg10[%c9_176] : memref<50xf32, #tpu.memory_space<smem>>
    %155 = vector.broadcast %154 : f32 to vector<8x8xf32>
    %156 = arith.mulf %153, %155 : vector<8x8xf32>
    %157 = arith.addf %152, %156 : vector<8x8xf32>
    %c1_177 = arith.constant 1 : index
    %c14_178 = arith.constant 14 : index
    %158 = vector.load %arg15[%c1_177, %c14_178] : memref<12x26xf32, #tpu.memory_space<vmem>>, vector<8x8xf32>
    %c10_179 = arith.constant 10 : index
    %159 = memref.load %arg10[%c10_179] : memref<50xf32, #tpu.memory_space<smem>>
    %160 = vector.broadcast %159 : f32 to vector<8x8xf32>
    %161 = arith.mulf %158, %160 : vector<8x8xf32>
    %162 = arith.addf %157, %161 : vector<8x8xf32>
    %c1_180 = arith.constant 1 : index
    %c14_181 = arith.constant 14 : index
    %163 = vector.load %arg16[%c1_180, %c14_181] : memref<12x26xf32, #tpu.memory_space<vmem>>, vector<8x8xf32>
    %c11 = arith.constant 11 : index
    %164 = memref.load %arg10[%c11] : memref<50xf32, #tpu.memory_space<smem>>
    %165 = vector.broadcast %164 : f32 to vector<8x8xf32>
    %166 = arith.mulf %163, %165 : vector<8x8xf32>
    %167 = arith.addf %162, %166 : vector<8x8xf32>
    %c1_182 = arith.constant 1 : index
    %c15_183 = arith.constant 15 : index
    %168 = vector.load %arg15[%c1_182, %c15_183] : memref<12x26xf32, #tpu.memory_space<vmem>>, vector<8x8xf32>
    %c12_184 = arith.constant 12 : index
    %169 = memref.load %arg10[%c12_184] : memref<50xf32, #tpu.memory_space<smem>>
    %170 = vector.broadcast %169 : f32 to vector<8x8xf32>
    %171 = arith.mulf %168, %170 : vector<8x8xf32>
    %172 = arith.addf %167, %171 : vector<8x8xf32>
    %c1_185 = arith.constant 1 : index
    %c15_186 = arith.constant 15 : index
    %173 = vector.load %arg16[%c1_185, %c15_186] : memref<12x26xf32, #tpu.memory_space<vmem>>, vector<8x8xf32>
    %c13 = arith.constant 13 : index
    %174 = memref.load %arg10[%c13] : memref<50xf32, #tpu.memory_space<smem>>
    %175 = vector.broadcast %174 : f32 to vector<8x8xf32>
    %176 = arith.mulf %173, %175 : vector<8x8xf32>
    %177 = arith.addf %172, %176 : vector<8x8xf32>
    %c1_187 = arith.constant 1 : index
    %c16_188 = arith.constant 16 : index
    %178 = vector.load %arg15[%c1_187, %c16_188] : memref<12x26xf32, #tpu.memory_space<vmem>>, vector<8x8xf32>
    %c14_189 = arith.constant 14 : index
    %179 = memref.load %arg10[%c14_189] : memref<50xf32, #tpu.memory_space<smem>>
    %180 = vector.broadcast %179 : f32 to vector<8x8xf32>
    %181 = arith.mulf %178, %180 : vector<8x8xf32>
    %182 = arith.addf %177, %181 : vector<8x8xf32>
    %c1_190 = arith.constant 1 : index
    %c16_191 = arith.constant 16 : index
    %183 = vector.load %arg16[%c1_190, %c16_191] : memref<12x26xf32, #tpu.memory_space<vmem>>, vector<8x8xf32>
    %c15_192 = arith.constant 15 : index
    %184 = memref.load %arg10[%c15_192] : memref<50xf32, #tpu.memory_space<smem>>
    %185 = vector.broadcast %184 : f32 to vector<8x8xf32>
    %186 = arith.mulf %183, %185 : vector<8x8xf32>
    %187 = arith.addf %182, %186 : vector<8x8xf32>
    %c1_193 = arith.constant 1 : index
    %c17_194 = arith.constant 17 : index
    %188 = vector.load %arg15[%c1_193, %c17_194] : memref<12x26xf32, #tpu.memory_space<vmem>>, vector<8x8xf32>
    %c16_195 = arith.constant 16 : index
    %189 = memref.load %arg10[%c16_195] : memref<50xf32, #tpu.memory_space<smem>>
    %190 = vector.broadcast %189 : f32 to vector<8x8xf32>
    %191 = arith.mulf %188, %190 : vector<8x8xf32>
    %192 = arith.addf %187, %191 : vector<8x8xf32>
    %c1_196 = arith.constant 1 : index
    %c17_197 = arith.constant 17 : index
    %193 = vector.load %arg16[%c1_196, %c17_197] : memref<12x26xf32, #tpu.memory_space<vmem>>, vector<8x8xf32>
    %c17_198 = arith.constant 17 : index
    %194 = memref.load %arg10[%c17_198] : memref<50xf32, #tpu.memory_space<smem>>
    %195 = vector.broadcast %194 : f32 to vector<8x8xf32>
    %196 = arith.mulf %193, %195 : vector<8x8xf32>
    %197 = arith.addf %192, %196 : vector<8x8xf32>
    %c1_199 = arith.constant 1 : index
    %c18_200 = arith.constant 18 : index
    %198 = vector.load %arg15[%c1_199, %c18_200] : memref<12x26xf32, #tpu.memory_space<vmem>>, vector<8x8xf32>
    %c18_201 = arith.constant 18 : index
    %199 = memref.load %arg10[%c18_201] : memref<50xf32, #tpu.memory_space<smem>>
    %200 = vector.broadcast %199 : f32 to vector<8x8xf32>
    %201 = arith.mulf %198, %200 : vector<8x8xf32>
    %202 = arith.addf %197, %201 : vector<8x8xf32>
    %c1_202 = arith.constant 1 : index
    %c18_203 = arith.constant 18 : index
    %203 = vector.load %arg16[%c1_202, %c18_203] : memref<12x26xf32, #tpu.memory_space<vmem>>, vector<8x8xf32>
    %c19 = arith.constant 19 : index
    %204 = memref.load %arg10[%c19] : memref<50xf32, #tpu.memory_space<smem>>
    %205 = vector.broadcast %204 : f32 to vector<8x8xf32>
    %206 = arith.mulf %203, %205 : vector<8x8xf32>
    %207 = arith.addf %202, %206 : vector<8x8xf32>
    %c2_204 = arith.constant 2 : index
    %c14_205 = arith.constant 14 : index
    %208 = vector.load %arg15[%c2_204, %c14_205] : memref<12x26xf32, #tpu.memory_space<vmem>>, vector<8x8xf32>
    %c20_206 = arith.constant 20 : index
    %209 = memref.load %arg10[%c20_206] : memref<50xf32, #tpu.memory_space<smem>>
    %210 = vector.broadcast %209 : f32 to vector<8x8xf32>
    %211 = arith.mulf %208, %210 : vector<8x8xf32>
    %212 = arith.addf %207, %211 : vector<8x8xf32>
    %c2_207 = arith.constant 2 : index
    %c14_208 = arith.constant 14 : index
    %213 = vector.load %arg16[%c2_207, %c14_208] : memref<12x26xf32, #tpu.memory_space<vmem>>, vector<8x8xf32>
    %c21 = arith.constant 21 : index
    %214 = memref.load %arg10[%c21] : memref<50xf32, #tpu.memory_space<smem>>
    %215 = vector.broadcast %214 : f32 to vector<8x8xf32>
    %216 = arith.mulf %213, %215 : vector<8x8xf32>
    %217 = arith.addf %212, %216 : vector<8x8xf32>
    %c2_209 = arith.constant 2 : index
    %c15_210 = arith.constant 15 : index
    %218 = vector.load %arg15[%c2_209, %c15_210] : memref<12x26xf32, #tpu.memory_space<vmem>>, vector<8x8xf32>
    %c22 = arith.constant 22 : index
    %219 = memref.load %arg10[%c22] : memref<50xf32, #tpu.memory_space<smem>>
    %220 = vector.broadcast %219 : f32 to vector<8x8xf32>
    %221 = arith.mulf %218, %220 : vector<8x8xf32>
    %222 = arith.addf %217, %221 : vector<8x8xf32>
    %c2_211 = arith.constant 2 : index
    %c15_212 = arith.constant 15 : index
    %223 = vector.load %arg16[%c2_211, %c15_212] : memref<12x26xf32, #tpu.memory_space<vmem>>, vector<8x8xf32>
    %c23 = arith.constant 23 : index
    %224 = memref.load %arg10[%c23] : memref<50xf32, #tpu.memory_space<smem>>
    %225 = vector.broadcast %224 : f32 to vector<8x8xf32>
    %226 = arith.mulf %223, %225 : vector<8x8xf32>
    %227 = arith.addf %222, %226 : vector<8x8xf32>
    %c2_213 = arith.constant 2 : index
    %c16_214 = arith.constant 16 : index
    %228 = vector.load %arg15[%c2_213, %c16_214] : memref<12x26xf32, #tpu.memory_space<vmem>>, vector<8x8xf32>
    %c24_215 = arith.constant 24 : index
    %229 = memref.load %arg10[%c24_215] : memref<50xf32, #tpu.memory_space<smem>>
    %230 = vector.broadcast %229 : f32 to vector<8x8xf32>
    %231 = arith.mulf %228, %230 : vector<8x8xf32>
    %232 = arith.addf %227, %231 : vector<8x8xf32>
    %c2_216 = arith.constant 2 : index
    %c16_217 = arith.constant 16 : index
    %233 = vector.load %arg16[%c2_216, %c16_217] : memref<12x26xf32, #tpu.memory_space<vmem>>, vector<8x8xf32>
    %c25 = arith.constant 25 : index
    %234 = memref.load %arg10[%c25] : memref<50xf32, #tpu.memory_space<smem>>
    %235 = vector.broadcast %234 : f32 to vector<8x8xf32>
    %236 = arith.mulf %233, %235 : vector<8x8xf32>
    %237 = arith.addf %232, %236 : vector<8x8xf32>
    %c2_218 = arith.constant 2 : index
    %c17_219 = arith.constant 17 : index
    %238 = vector.load %arg15[%c2_218, %c17_219] : memref<12x26xf32, #tpu.memory_space<vmem>>, vector<8x8xf32>
    %c26 = arith.constant 26 : index
    %239 = memref.load %arg10[%c26] : memref<50xf32, #tpu.memory_space<smem>>
    %240 = vector.broadcast %239 : f32 to vector<8x8xf32>
    %241 = arith.mulf %238, %240 : vector<8x8xf32>
    %242 = arith.addf %237, %241 : vector<8x8xf32>
    %c2_220 = arith.constant 2 : index
    %c17_221 = arith.constant 17 : index
    %243 = vector.load %arg16[%c2_220, %c17_221] : memref<12x26xf32, #tpu.memory_space<vmem>>, vector<8x8xf32>
    %c27 = arith.constant 27 : index
    %244 = memref.load %arg10[%c27] : memref<50xf32, #tpu.memory_space<smem>>
    %245 = vector.broadcast %244 : f32 to vector<8x8xf32>
    %246 = arith.mulf %243, %245 : vector<8x8xf32>
    %247 = arith.addf %242, %246 : vector<8x8xf32>
    %c2_222 = arith.constant 2 : index
    %c18_223 = arith.constant 18 : index
    %248 = vector.load %arg15[%c2_222, %c18_223] : memref<12x26xf32, #tpu.memory_space<vmem>>, vector<8x8xf32>
    %c28_224 = arith.constant 28 : index
    %249 = memref.load %arg10[%c28_224] : memref<50xf32, #tpu.memory_space<smem>>
    %250 = vector.broadcast %249 : f32 to vector<8x8xf32>
    %251 = arith.mulf %248, %250 : vector<8x8xf32>
    %252 = arith.addf %247, %251 : vector<8x8xf32>
    %c2_225 = arith.constant 2 : index
    %c18_226 = arith.constant 18 : index
    %253 = vector.load %arg16[%c2_225, %c18_226] : memref<12x26xf32, #tpu.memory_space<vmem>>, vector<8x8xf32>
    %c29 = arith.constant 29 : index
    %254 = memref.load %arg10[%c29] : memref<50xf32, #tpu.memory_space<smem>>
    %255 = vector.broadcast %254 : f32 to vector<8x8xf32>
    %256 = arith.mulf %253, %255 : vector<8x8xf32>
    %257 = arith.addf %252, %256 : vector<8x8xf32>
    %c3_227 = arith.constant 3 : index
    %c14_228 = arith.constant 14 : index
    %258 = vector.load %arg15[%c3_227, %c14_228] : memref<12x26xf32, #tpu.memory_space<vmem>>, vector<8x8xf32>
    %c30 = arith.constant 30 : index
    %259 = memref.load %arg10[%c30] : memref<50xf32, #tpu.memory_space<smem>>
    %260 = vector.broadcast %259 : f32 to vector<8x8xf32>
    %261 = arith.mulf %258, %260 : vector<8x8xf32>
    %262 = arith.addf %257, %261 : vector<8x8xf32>
    %c3_229 = arith.constant 3 : index
    %c14_230 = arith.constant 14 : index
    %263 = vector.load %arg16[%c3_229, %c14_230] : memref<12x26xf32, #tpu.memory_space<vmem>>, vector<8x8xf32>
    %c31 = arith.constant 31 : index
    %264 = memref.load %arg10[%c31] : memref<50xf32, #tpu.memory_space<smem>>
    %265 = vector.broadcast %264 : f32 to vector<8x8xf32>
    %266 = arith.mulf %263, %265 : vector<8x8xf32>
    %267 = arith.addf %262, %266 : vector<8x8xf32>
    %c3_231 = arith.constant 3 : index
    %c15_232 = arith.constant 15 : index
    %268 = vector.load %arg15[%c3_231, %c15_232] : memref<12x26xf32, #tpu.memory_space<vmem>>, vector<8x8xf32>
    %c32_233 = arith.constant 32 : index
    %269 = memref.load %arg10[%c32_233] : memref<50xf32, #tpu.memory_space<smem>>
    %270 = vector.broadcast %269 : f32 to vector<8x8xf32>
    %271 = arith.mulf %268, %270 : vector<8x8xf32>
    %272 = arith.addf %267, %271 : vector<8x8xf32>
    %c3_234 = arith.constant 3 : index
    %c15_235 = arith.constant 15 : index
    %273 = vector.load %arg16[%c3_234, %c15_235] : memref<12x26xf32, #tpu.memory_space<vmem>>, vector<8x8xf32>
    %c33 = arith.constant 33 : index
    %274 = memref.load %arg10[%c33] : memref<50xf32, #tpu.memory_space<smem>>
    %275 = vector.broadcast %274 : f32 to vector<8x8xf32>
    %276 = arith.mulf %273, %275 : vector<8x8xf32>
    %277 = arith.addf %272, %276 : vector<8x8xf32>
    %c3_236 = arith.constant 3 : index
    %c16_237 = arith.constant 16 : index
    %278 = vector.load %arg15[%c3_236, %c16_237] : memref<12x26xf32, #tpu.memory_space<vmem>>, vector<8x8xf32>
    %c34 = arith.constant 34 : index
    %279 = memref.load %arg10[%c34] : memref<50xf32, #tpu.memory_space<smem>>
    %280 = vector.broadcast %279 : f32 to vector<8x8xf32>
    %281 = arith.mulf %278, %280 : vector<8x8xf32>
    %282 = arith.addf %277, %281 : vector<8x8xf32>
    %c3_238 = arith.constant 3 : index
    %c16_239 = arith.constant 16 : index
    %283 = vector.load %arg16[%c3_238, %c16_239] : memref<12x26xf32, #tpu.memory_space<vmem>>, vector<8x8xf32>
    %c35 = arith.constant 35 : index
    %284 = memref.load %arg10[%c35] : memref<50xf32, #tpu.memory_space<smem>>
    %285 = vector.broadcast %284 : f32 to vector<8x8xf32>
    %286 = arith.mulf %283, %285 : vector<8x8xf32>
    %287 = arith.addf %282, %286 : vector<8x8xf32>
    %c3_240 = arith.constant 3 : index
    %c17_241 = arith.constant 17 : index
    %288 = vector.load %arg15[%c3_240, %c17_241] : memref<12x26xf32, #tpu.memory_space<vmem>>, vector<8x8xf32>
    %c36 = arith.constant 36 : index
    %289 = memref.load %arg10[%c36] : memref<50xf32, #tpu.memory_space<smem>>
    %290 = vector.broadcast %289 : f32 to vector<8x8xf32>
    %291 = arith.mulf %288, %290 : vector<8x8xf32>
    %292 = arith.addf %287, %291 : vector<8x8xf32>
    %c3_242 = arith.constant 3 : index
    %c17_243 = arith.constant 17 : index
    %293 = vector.load %arg16[%c3_242, %c17_243] : memref<12x26xf32, #tpu.memory_space<vmem>>, vector<8x8xf32>
    %c37 = arith.constant 37 : index
    %294 = memref.load %arg10[%c37] : memref<50xf32, #tpu.memory_space<smem>>
    %295 = vector.broadcast %294 : f32 to vector<8x8xf32>
    %296 = arith.mulf %293, %295 : vector<8x8xf32>
    %297 = arith.addf %292, %296 : vector<8x8xf32>
    %c3_244 = arith.constant 3 : index
    %c18_245 = arith.constant 18 : index
    %298 = vector.load %arg15[%c3_244, %c18_245] : memref<12x26xf32, #tpu.memory_space<vmem>>, vector<8x8xf32>
    %c38 = arith.constant 38 : index
    %299 = memref.load %arg10[%c38] : memref<50xf32, #tpu.memory_space<smem>>
    %300 = vector.broadcast %299 : f32 to vector<8x8xf32>
    %301 = arith.mulf %298, %300 : vector<8x8xf32>
    %302 = arith.addf %297, %301 : vector<8x8xf32>
    %c3_246 = arith.constant 3 : index
    %c18_247 = arith.constant 18 : index
    %303 = vector.load %arg16[%c3_246, %c18_247] : memref<12x26xf32, #tpu.memory_space<vmem>>, vector<8x8xf32>
    %c39 = arith.constant 39 : index
    %304 = memref.load %arg10[%c39] : memref<50xf32, #tpu.memory_space<smem>>
    %305 = vector.broadcast %304 : f32 to vector<8x8xf32>
    %306 = arith.mulf %303, %305 : vector<8x8xf32>
    %307 = arith.addf %302, %306 : vector<8x8xf32>
    %c4_248 = arith.constant 4 : index
    %c14_249 = arith.constant 14 : index
    %308 = vector.load %arg15[%c4_248, %c14_249] : memref<12x26xf32, #tpu.memory_space<vmem>>, vector<8x8xf32>
    %c40 = arith.constant 40 : index
    %309 = memref.load %arg10[%c40] : memref<50xf32, #tpu.memory_space<smem>>
    %310 = vector.broadcast %309 : f32 to vector<8x8xf32>
    %311 = arith.mulf %308, %310 : vector<8x8xf32>
    %312 = arith.addf %307, %311 : vector<8x8xf32>
    %c4_250 = arith.constant 4 : index
    %c14_251 = arith.constant 14 : index
    %313 = vector.load %arg16[%c4_250, %c14_251] : memref<12x26xf32, #tpu.memory_space<vmem>>, vector<8x8xf32>
    %c41 = arith.constant 41 : index
    %314 = memref.load %arg10[%c41] : memref<50xf32, #tpu.memory_space<smem>>
    %315 = vector.broadcast %314 : f32 to vector<8x8xf32>
    %316 = arith.mulf %313, %315 : vector<8x8xf32>
    %317 = arith.addf %312, %316 : vector<8x8xf32>
    %c4_252 = arith.constant 4 : index
    %c15_253 = arith.constant 15 : index
    %318 = vector.load %arg15[%c4_252, %c15_253] : memref<12x26xf32, #tpu.memory_space<vmem>>, vector<8x8xf32>
    %c42 = arith.constant 42 : index
    %319 = memref.load %arg10[%c42] : memref<50xf32, #tpu.memory_space<smem>>
    %320 = vector.broadcast %319 : f32 to vector<8x8xf32>
    %321 = arith.mulf %318, %320 : vector<8x8xf32>
    %322 = arith.addf %317, %321 : vector<8x8xf32>
    %c4_254 = arith.constant 4 : index
    %c15_255 = arith.constant 15 : index
    %323 = vector.load %arg16[%c4_254, %c15_255] : memref<12x26xf32, #tpu.memory_space<vmem>>, vector<8x8xf32>
    %c43 = arith.constant 43 : index
    %324 = memref.load %arg10[%c43] : memref<50xf32, #tpu.memory_space<smem>>
    %325 = vector.broadcast %324 : f32 to vector<8x8xf32>
    %326 = arith.mulf %323, %325 : vector<8x8xf32>
    %327 = arith.addf %322, %326 : vector<8x8xf32>
    %c4_256 = arith.constant 4 : index
    %c16_257 = arith.constant 16 : index
    %328 = vector.load %arg15[%c4_256, %c16_257] : memref<12x26xf32, #tpu.memory_space<vmem>>, vector<8x8xf32>
    %c44 = arith.constant 44 : index
    %329 = memref.load %arg10[%c44] : memref<50xf32, #tpu.memory_space<smem>>
    %330 = vector.broadcast %329 : f32 to vector<8x8xf32>
    %331 = arith.mulf %328, %330 : vector<8x8xf32>
    %332 = arith.addf %327, %331 : vector<8x8xf32>
    %c4_258 = arith.constant 4 : index
    %c16_259 = arith.constant 16 : index
    %333 = vector.load %arg16[%c4_258, %c16_259] : memref<12x26xf32, #tpu.memory_space<vmem>>, vector<8x8xf32>
    %c45 = arith.constant 45 : index
    %334 = memref.load %arg10[%c45] : memref<50xf32, #tpu.memory_space<smem>>
    %335 = vector.broadcast %334 : f32 to vector<8x8xf32>
    %336 = arith.mulf %333, %335 : vector<8x8xf32>
    %337 = arith.addf %332, %336 : vector<8x8xf32>
    %c4_260 = arith.constant 4 : index
    %c17_261 = arith.constant 17 : index
    %338 = vector.load %arg15[%c4_260, %c17_261] : memref<12x26xf32, #tpu.memory_space<vmem>>, vector<8x8xf32>
    %c46 = arith.constant 46 : index
    %339 = memref.load %arg10[%c46] : memref<50xf32, #tpu.memory_space<smem>>
    %340 = vector.broadcast %339 : f32 to vector<8x8xf32>
    %341 = arith.mulf %338, %340 : vector<8x8xf32>
    %342 = arith.addf %337, %341 : vector<8x8xf32>
    %c4_262 = arith.constant 4 : index
    %c17_263 = arith.constant 17 : index
    %343 = vector.load %arg16[%c4_262, %c17_263] : memref<12x26xf32, #tpu.memory_space<vmem>>, vector<8x8xf32>
    %c47 = arith.constant 47 : index
    %344 = memref.load %arg10[%c47] : memref<50xf32, #tpu.memory_space<smem>>
    %345 = vector.broadcast %344 : f32 to vector<8x8xf32>
    %346 = arith.mulf %343, %345 : vector<8x8xf32>
    %347 = arith.addf %342, %346 : vector<8x8xf32>
    %c4_264 = arith.constant 4 : index
    %c18_265 = arith.constant 18 : index
    %348 = vector.load %arg15[%c4_264, %c18_265] : memref<12x26xf32, #tpu.memory_space<vmem>>, vector<8x8xf32>
    %c48_266 = arith.constant 48 : index
    %349 = memref.load %arg10[%c48_266] : memref<50xf32, #tpu.memory_space<smem>>
    %350 = vector.broadcast %349 : f32 to vector<8x8xf32>
    %351 = arith.mulf %348, %350 : vector<8x8xf32>
    %352 = arith.addf %347, %351 : vector<8x8xf32>
    %c4_267 = arith.constant 4 : index
    %c18_268 = arith.constant 18 : index
    %353 = vector.load %arg16[%c4_267, %c18_268] : memref<12x26xf32, #tpu.memory_space<vmem>>, vector<8x8xf32>
    %c49 = arith.constant 49 : index
    %354 = memref.load %arg10[%c49] : memref<50xf32, #tpu.memory_space<smem>>
    %355 = vector.broadcast %354 : f32 to vector<8x8xf32>
    %356 = arith.mulf %353, %355 : vector<8x8xf32>
    %357 = arith.addf %352, %356 : vector<8x8xf32>
    %358 = arith.negf %357 : vector<8x8xf32>
    %359 = math.exp %358 : vector<8x8xf32>
    %cst_269 = arith.constant 1.000000e+00 : f32
    %360 = vector.broadcast %cst_269 : f32 to vector<8x8xf32>
    %361 = arith.addf %360, %359 : vector<8x8xf32>
    %362 = arith.divf %360, %361 : vector<8x8xf32>
    %363 = vector.shape_cast %362 : vector<8x8xf32> to vector<8x8x1xf32>
    %364 = vector.broadcast %363 : vector<8x8x1xf32> to vector<8x8x32xf32>
    %365 = arith.mulf %100, %364 : vector<8x8x32xf32>
    %366 = vector.shape_cast %365 : vector<8x8x32xf32> to vector<64x32xf32>
    %cst_270 = arith.constant dense<0.000000e+00> : vector<32xf32>
    %367 = vector.multi_reduction <add>, %366, %cst_270 [0] : vector<64x32xf32> to vector<32xf32>
    %368 = vector.shape_cast %367 : vector<32xf32> to vector<1x32xf32>
    %cst_271 = arith.constant 6.400000e+01 : f32
    %369 = vector.broadcast %cst_271 : f32 to vector<1x32xf32>
    %370 = arith.divf %368, %369 : vector<1x32xf32>
    %c0_272 = arith.constant 0 : index
    %c0_273 = arith.constant 0 : index
    %371 = vector.load %arg4[%c0_272, %c0_273] : memref<32x2xf32, #tpu.memory_space<vmem>>, vector<32x2xf32>
    %cst_274 = arith.constant dense<0.000000e+00> : vector<1x2xf32>
    %372 = tpu.matmul %370, %371, %cst_274 {dimension_numbers = #tpu.dot_dimension_numbers<[1], [0], [0], [1], [0, 0, 1, 1], [], []>} : vector<1x32xf32>, vector<32x2xf32>, vector<1x2xf32> -> vector<1x2xf32>
    %cst_275 = arith.constant 0.000000e+00 : f32
    %373 = vector.broadcast %cst_275 : f32 to vector<1x2xf32>
    %374 = arith.maximumf %372, %373 : vector<1x2xf32>
    %c0_276 = arith.constant 0 : index
    %c0_277 = arith.constant 0 : index
    %375 = vector.load %arg5[%c0_276, %c0_277] : memref<2x32xf32, #tpu.memory_space<vmem>>, vector<2x32xf32>
    %cst_278 = arith.constant dense<0.000000e+00> : vector<1x32xf32>
    %376 = tpu.matmul %374, %375, %cst_278 {dimension_numbers = #tpu.dot_dimension_numbers<[1], [0], [0], [1], [0, 0, 1, 1], [], []>} : vector<1x2xf32>, vector<2x32xf32>, vector<1x32xf32> -> vector<1x32xf32>
    %377 = arith.negf %376 : vector<1x32xf32>
    %378 = math.exp %377 : vector<1x32xf32>
    %cst_279 = arith.constant 1.000000e+00 : f32
    %379 = vector.broadcast %cst_279 : f32 to vector<1x32xf32>
    %380 = arith.addf %379, %378 : vector<1x32xf32>
    %381 = arith.divf %379, %380 : vector<1x32xf32>
    %382 = vector.broadcast %381 : vector<1x32xf32> to vector<64x32xf32>
    %383 = arith.mulf %366, %382 : vector<64x32xf32>
    %384 = arith.truncf %383 : vector<64x32xf32> to vector<64x32xbf16>
    %c0_280 = arith.constant 0 : index
    %c0_281 = arith.constant 0 : index
    %c0_282 = arith.constant 0 : index
    %c0_283 = arith.constant 0 : index
    %385 = vector.load %arg1[%c0_280, %c0_281, %c0_282, %c0_283] : memref<1x8x8x16xbf16, #tpu.memory_space<vmem>>, vector<1x8x8x16xbf16>
    %386 = vector.shape_cast %385 : vector<1x8x8x16xbf16> to vector<8x8x16xbf16>
    %387 = vector.shape_cast %386 : vector<8x8x16xbf16> to vector<64x16xbf16>
    %c0_284 = arith.constant 0 : index
    %c0_285 = arith.constant 0 : index
    %388 = vector.load %arg6[%c0_284, %c0_285] : memref<32x16xbf16, #tpu.memory_space<vmem>>, vector<32x16xbf16>
    %cst_286 = arith.constant dense<0.000000e+00> : vector<64x16xf32>
    %389 = tpu.matmul %384, %388, %cst_286 {dimension_numbers = #tpu.dot_dimension_numbers<[1], [0], [0], [1], [0, 0, 1, 1], [], []>} : vector<64x32xbf16>, vector<32x16xbf16>, vector<64x16xf32> -> vector<64x16xf32>
    %c0_287 = arith.constant 0 : index
    %c0_288 = arith.constant 0 : index
    %390 = vector.load %arg7[%c0_287, %c0_288] : memref<16x16xbf16, #tpu.memory_space<vmem>>, vector<16x16xbf16>
    %cst_289 = arith.constant dense<0.000000e+00> : vector<64x16xf32>
    %391 = tpu.matmul %387, %390, %cst_289 {dimension_numbers = #tpu.dot_dimension_numbers<[1], [0], [0], [1], [0, 0, 1, 1], [], []>} : vector<64x16xbf16>, vector<16x16xbf16>, vector<64x16xf32> -> vector<64x16xf32>
    %392 = arith.addf %389, %391 : vector<64x16xf32>
    %393 = vector.shape_cast %392 : vector<64x16xf32> to vector<8x8x16xf32>
    %394 = arith.truncf %393 : vector<8x8x16xf32> to vector<8x8x16xbf16>
    %c1_290 = arith.constant 1 : index
    %c16_291 = arith.constant 16 : index
    %c0_292 = arith.constant 0 : index
    %395 = vector.load %arg12[%c1_290, %c16_291, %c0_292] : memref<10x25x16xbf16, #tpu.memory_space<vmem>>, vector<8x8x16xbf16>
    tpu.vector_store %arg12[%c1_290, %c16_291, %c0_292], %394 {strides = array<i32>} : memref<10x25x16xbf16, #tpu.memory_space<vmem>>, vector<8x8x16xbf16>,
    %c0_293 = arith.constant 0 : index
    %c15_294 = arith.constant 15 : index
    %c0_295 = arith.constant 0 : index
    %396 = vector.load %arg12[%c0_293, %c15_294, %c0_295] : memref<10x25x16xbf16, #tpu.memory_space<vmem>>, vector<8x8x16xbf16>
    %397 = vector.shape_cast %396 : vector<8x8x16xbf16> to vector<64x16xbf16>
    %c0_296 = arith.constant 0 : index
    %c0_297 = arith.constant 0 : index
    %398 = vector.load %arg14[%c0_296, %c0_297] : memref<64x144xbf16, #tpu.memory_space<vmem>>, vector<64x16xbf16>
    tpu.vector_store %arg14[%c0_296, %c0_297], %397 {strides = array<i32>} : memref<64x144xbf16, #tpu.memory_space<vmem>>, vector<64x16xbf16>,
    %c0_298 = arith.constant 0 : index
    %c16_299 = arith.constant 16 : index
    %c0_300 = arith.constant 0 : index
    %399 = vector.load %arg12[%c0_298, %c16_299, %c0_300] : memref<10x25x16xbf16, #tpu.memory_space<vmem>>, vector<8x8x16xbf16>
    %400 = vector.shape_cast %399 : vector<8x8x16xbf16> to vector<64x16xbf16>
    %c0_301 = arith.constant 0 : index
    %c16_302 = arith.constant 16 : index
    %401 = vector.load %arg14[%c0_301, %c16_302] : memref<64x144xbf16, #tpu.memory_space<vmem>>, vector<64x16xbf16>
    tpu.vector_store %arg14[%c0_301, %c16_302], %400 {strides = array<i32>} : memref<64x144xbf16, #tpu.memory_space<vmem>>, vector<64x16xbf16>,
    %c0_303 = arith.constant 0 : index
    %c17_304 = arith.constant 17 : index
    %c0_305 = arith.constant 0 : index
    %402 = vector.load %arg12[%c0_303, %c17_304, %c0_305] : memref<10x25x16xbf16, #tpu.memory_space<vmem>>, vector<8x8x16xbf16>
    %403 = vector.shape_cast %402 : vector<8x8x16xbf16> to vector<64x16xbf16>
    %c0_306 = arith.constant 0 : index
    %c32_307 = arith.constant 32 : index
    %404 = vector.load %arg14[%c0_306, %c32_307] : memref<64x144xbf16, #tpu.memory_space<vmem>>, vector<64x16xbf16>
    tpu.vector_store %arg14[%c0_306, %c32_307], %403 {strides = array<i32>} : memref<64x144xbf16, #tpu.memory_space<vmem>>, vector<64x16xbf16>,
    %c1_308 = arith.constant 1 : index
    %c15_309 = arith.constant 15 : index
    %c0_310 = arith.constant 0 : index
    %405 = vector.load %arg12[%c1_308, %c15_309, %c0_310] : memref<10x25x16xbf16, #tpu.memory_space<vmem>>, vector<8x8x16xbf16>
    %406 = vector.shape_cast %405 : vector<8x8x16xbf16> to vector<64x16xbf16>
    %c0_311 = arith.constant 0 : index
    %c48_312 = arith.constant 48 : index
    %407 = vector.load %arg14[%c0_311, %c48_312] : memref<64x144xbf16, #tpu.memory_space<vmem>>, vector<64x16xbf16>
    tpu.vector_store %arg14[%c0_311, %c48_312], %406 {strides = array<i32>} : memref<64x144xbf16, #tpu.memory_space<vmem>>, vector<64x16xbf16>,
    %c1_313 = arith.constant 1 : index
    %c16_314 = arith.constant 16 : index
    %c0_315 = arith.constant 0 : index
    %408 = vector.load %arg12[%c1_313, %c16_314, %c0_315] : memref<10x25x16xbf16, #tpu.memory_space<vmem>>, vector<8x8x16xbf16>
    %409 = vector.shape_cast %408 : vector<8x8x16xbf16> to vector<64x16xbf16>
    %c0_316 = arith.constant 0 : index
    %c64_317 = arith.constant 64 : index
    %410 = vector.load %arg14[%c0_316, %c64_317] : memref<64x144xbf16, #tpu.memory_space<vmem>>, vector<64x16xbf16>
    tpu.vector_store %arg14[%c0_316, %c64_317], %409 {strides = array<i32>} : memref<64x144xbf16, #tpu.memory_space<vmem>>, vector<64x16xbf16>,
    %c1_318 = arith.constant 1 : index
    %c17_319 = arith.constant 17 : index
    %c0_320 = arith.constant 0 : index
    %411 = vector.load %arg12[%c1_318, %c17_319, %c0_320] : memref<10x25x16xbf16, #tpu.memory_space<vmem>>, vector<8x8x16xbf16>
    %412 = vector.shape_cast %411 : vector<8x8x16xbf16> to vector<64x16xbf16>
    %c0_321 = arith.constant 0 : index
    %c80_322 = arith.constant 80 : index
    %413 = vector.load %arg14[%c0_321, %c80_322] : memref<64x144xbf16, #tpu.memory_space<vmem>>, vector<64x16xbf16>
    tpu.vector_store %arg14[%c0_321, %c80_322], %412 {strides = array<i32>} : memref<64x144xbf16, #tpu.memory_space<vmem>>, vector<64x16xbf16>,
    %c2_323 = arith.constant 2 : index
    %c15_324 = arith.constant 15 : index
    %c0_325 = arith.constant 0 : index
    %414 = vector.load %arg12[%c2_323, %c15_324, %c0_325] : memref<10x25x16xbf16, #tpu.memory_space<vmem>>, vector<8x8x16xbf16>
    %415 = vector.shape_cast %414 : vector<8x8x16xbf16> to vector<64x16xbf16>
    %c0_326 = arith.constant 0 : index
    %c96_327 = arith.constant 96 : index
    %416 = vector.load %arg14[%c0_326, %c96_327] : memref<64x144xbf16, #tpu.memory_space<vmem>>, vector<64x16xbf16>
    tpu.vector_store %arg14[%c0_326, %c96_327], %415 {strides = array<i32>} : memref<64x144xbf16, #tpu.memory_space<vmem>>, vector<64x16xbf16>,
    %c2_328 = arith.constant 2 : index
    %c16_329 = arith.constant 16 : index
    %c0_330 = arith.constant 0 : index
    %417 = vector.load %arg12[%c2_328, %c16_329, %c0_330] : memref<10x25x16xbf16, #tpu.memory_space<vmem>>, vector<8x8x16xbf16>
    %418 = vector.shape_cast %417 : vector<8x8x16xbf16> to vector<64x16xbf16>
    %c0_331 = arith.constant 0 : index
    %c112_332 = arith.constant 112 : index
    %419 = vector.load %arg14[%c0_331, %c112_332] : memref<64x144xbf16, #tpu.memory_space<vmem>>, vector<64x16xbf16>
    tpu.vector_store %arg14[%c0_331, %c112_332], %418 {strides = array<i32>} : memref<64x144xbf16, #tpu.memory_space<vmem>>, vector<64x16xbf16>,
    %c2_333 = arith.constant 2 : index
    %c17_334 = arith.constant 17 : index
    %c0_335 = arith.constant 0 : index
    %420 = vector.load %arg12[%c2_333, %c17_334, %c0_335] : memref<10x25x16xbf16, #tpu.memory_space<vmem>>, vector<8x8x16xbf16>
    %421 = vector.shape_cast %420 : vector<8x8x16xbf16> to vector<64x16xbf16>
    %c0_336 = arith.constant 0 : index
    %c128_337 = arith.constant 128 : index
    %422 = vector.load %arg14[%c0_336, %c128_337] : memref<64x144xbf16, #tpu.memory_space<vmem>>, vector<64x16xbf16>
    tpu.vector_store %arg14[%c0_336, %c128_337], %421 {strides = array<i32>} : memref<64x144xbf16, #tpu.memory_space<vmem>>, vector<64x16xbf16>,
    %c0_338 = arith.constant 0 : index
    %c0_339 = arith.constant 0 : index
    %423 = vector.load %arg14[%c0_338, %c0_339] : memref<64x144xbf16, #tpu.memory_space<vmem>>, vector<64x144xbf16>
    %c0_340 = arith.constant 0 : index
    %c0_341 = arith.constant 0 : index
    %424 = vector.load %arg8[%c0_340, %c0_341] : memref<144x16xbf16, #tpu.memory_space<vmem>>, vector<144x16xbf16>
    %cst_342 = arith.constant dense<0.000000e+00> : vector<64x16xf32>
    %425 = tpu.matmul %423, %424, %cst_342 {dimension_numbers = #tpu.dot_dimension_numbers<[1], [0], [0], [1], [0, 0, 1, 1], [], []>} : vector<64x144xbf16>, vector<144x16xbf16>, vector<64x16xf32> -> vector<64x16xf32>
    %cst_343 = arith.constant 0.000000e+00 : f32
    %426 = vector.broadcast %cst_343 : f32 to vector<64x16xf32>
    %427 = arith.maximumf %425, %426 : vector<64x16xf32>
    %c0_344 = arith.constant 0 : index
    %c0_345 = arith.constant 0 : index
    %428 = vector.load %arg9[%c0_344, %c0_345] : memref<16x16xbf16, #tpu.memory_space<vmem>>, vector<16x16xbf16>
    %cst_346 = arith.constant dense<0.000000e+00> : vector<64x16xf32>
    %429 = tpu.matmul %387, %428, %cst_346 {dimension_numbers = #tpu.dot_dimension_numbers<[1], [0], [0], [1], [0, 0, 1, 1], [], []>} : vector<64x16xbf16>, vector<16x16xbf16>, vector<64x16xf32> -> vector<64x16xf32>
    %430 = arith.addf %427, %429 : vector<64x16xf32>
    %c0_347 = arith.constant 0 : index
    %c0_348 = arith.constant 0 : index
    %c0_349 = arith.constant 0 : index
    %431 = vector.load %arg11[%c0_347, %c0_348, %c0_349] : memref<1x64x16xf32, #tpu.memory_space<vmem>>, vector<1x64x16xf32>
    %432 = vector.shape_cast %431 : vector<1x64x16xf32> to vector<64x16xf32>
    %433 = vector.shape_cast %430 : vector<64x16xf32> to vector<1x64x16xf32>
    tpu.vector_store %arg11[%c0_347, %c0_348, %c0_349], %433 {strides = array<i32>} : memref<1x64x16xf32, #tpu.memory_space<vmem>>, vector<1x64x16xf32>,
    return
  }
  func.func @transform_0(%arg0: i32) -> (i32, i32, i32, i32) {
    %c0_i32 = arith.constant 0 : i32
    %c0_i32_0 = arith.constant 0 : i32
    %c0_i32_1 = arith.constant 0 : i32
    %c0_i32_2 = arith.constant 0 : i32
    return %arg0, %c0_i32, %c0_i32_0, %c0_i32_1 : i32, i32, i32, i32
  }
  func.func @transform_1(%arg0: i32) -> (i32, i32) {
    %c0_i32 = arith.constant 0 : i32
    %c0_i32_0 = arith.constant 0 : i32
    %c0_i32_1 = arith.constant 0 : i32
    return %c0_i32, %c0_i32_0 : i32, i32
  }
  func.func @transform_2(%arg0: i32) -> (i32, i32) {
    %c0_i32 = arith.constant 0 : i32
    %c0_i32_0 = arith.constant 0 : i32
    %c0_i32_1 = arith.constant 0 : i32
    return %c0_i32, %c0_i32_0 : i32, i32
  }
  func.func @transform_3(%arg0: i32) -> (i32, i32) {
    %c0_i32 = arith.constant 0 : i32
    %c0_i32_0 = arith.constant 0 : i32
    %c0_i32_1 = arith.constant 0 : i32
    return %c0_i32, %c0_i32_0 : i32, i32
  }
  func.func @transform_4(%arg0: i32) -> (i32, i32) {
    %c0_i32 = arith.constant 0 : i32
    %c0_i32_0 = arith.constant 0 : i32
    %c0_i32_1 = arith.constant 0 : i32
    return %c0_i32, %c0_i32_0 : i32, i32
  }
  func.func @transform_5(%arg0: i32) -> (i32, i32) {
    %c0_i32 = arith.constant 0 : i32
    %c0_i32_0 = arith.constant 0 : i32
    %c0_i32_1 = arith.constant 0 : i32
    return %c0_i32, %c0_i32_0 : i32, i32
  }
  func.func @transform_6(%arg0: i32) -> (i32, i32) {
    %c0_i32 = arith.constant 0 : i32
    %c0_i32_0 = arith.constant 0 : i32
    %c0_i32_1 = arith.constant 0 : i32
    return %c0_i32, %c0_i32_0 : i32, i32
  }
  func.func @transform_7(%arg0: i32) -> (i32, i32) {
    %c0_i32 = arith.constant 0 : i32
    %c0_i32_0 = arith.constant 0 : i32
    %c0_i32_1 = arith.constant 0 : i32
    return %c0_i32, %c0_i32_0 : i32, i32
  }
  func.func @transform_8(%arg0: i32) -> (i32, i32) {
    %c0_i32 = arith.constant 0 : i32
    %c0_i32_0 = arith.constant 0 : i32
    %c0_i32_1 = arith.constant 0 : i32
    return %c0_i32, %c0_i32_0 : i32, i32
  }
  func.func @transform_9(%arg0: i32) -> i32 {
    %c0_i32 = arith.constant 0 : i32
    %c0_i32_0 = arith.constant 0 : i32
    return %c0_i32 : i32
  }
  func.func @transform_10(%arg0: i32) -> (i32, i32, i32) {
    %c0_i32 = arith.constant 0 : i32
    %c0_i32_0 = arith.constant 0 : i32
    %c0_i32_1 = arith.constant 0 : i32
    return %arg0, %c0_i32, %c0_i32_0 : i32, i32, i32
  }
}

</mosaic_0001>

<llo_original>
// kernel: wavelet_block_forward.1
$region0: #{wavelet_block_forward.1}
  #allocation0 [shape = 'u32[]', space=smem, size = 0x4, offset = 0x4, fixed_abs, tag = 'smem constant byte address 0x4 - core index']
  #allocation1 [shape = 'u32[72,128]{1,0:T(1,128)}', space=vmem, size = 0x9000, scoped, tag = 'internal scratch']
  #allocation2 [shape = 'bf16[10,25,16]{2,1,0:T(8,128)(2,1)}', space=vmem, size = 0x14000, scoped, tag = 'scratch operand']
  #allocation3 [shape = 'bf16[10,25,4]{2,1,0:T(8,128)(2,1)}', space=vmem, size = 0x14000, scoped, tag = 'scratch operand']
  #allocation4 [shape = 'bf16[64,144]{1,0:T(8,128)(2,1)}', space=vmem, size = 0x8000, scoped, tag = 'scratch operand']
  #allocation5 [shape = 'f32[12,26]{1,0:T(8,128)}', space=vmem, size = 0x2000, scoped, tag = 'scratch operand']
  #allocation6 [shape = 'f32[12,26]{1,0:T(8,128)}', space=vmem, size = 0x2000, scoped, tag = 'scratch operand']
  %s0 = inlined_call_operand.vmem [shape: bf16[2,8,8,16], index: 0, kind: input, shape index: {}]
  %s1 = inlined_call_operand.vmem [shape: bf16[144,4], index: 1, kind: input, shape index: {}]
  %s2 = inlined_call_operand.vmem [shape: bf16[36,32], index: 2, kind: input, shape index: {}]
  %s3 = inlined_call_operand.vmem [shape: f32[32,2], index: 3, kind: input, shape index: {}]
  %s4 = inlined_call_operand.vmem [shape: f32[2,32], index: 4, kind: input, shape index: {}]
  %s5 = inlined_call_operand.vmem [shape: bf16[32,16], index: 5, kind: input, shape index: {}]
  %s6 = inlined_call_operand.vmem [shape: bf16[16,16], index: 6, kind: input, shape index: {}]
  %s7 = inlined_call_operand.vmem [shape: bf16[144,16], index: 7, kind: input, shape index: {}]
  %s8 = inlined_call_operand.vmem [shape: bf16[16,16], index: 8, kind: input, shape index: {}]
  %s9 = inlined_call_operand.vmem [shape: f32[50], index: 9, kind: input, shape index: {}]
  %s10 = inlined_call_operand.vmem [shape: f32[2,64,16], index: 10, kind: output, shape index: {}]
  %s11 = sld [smem:[#allocation0]]
  $region77: #{wavelet_block_forward.1} parent=0
    _
  %s13 = ssub.s32 1, %s11
  %s14 = scalar_select 0, %s13, %s11
  $region1: #{wavelet_block_forward.1} parent=0
    #allocation7 [shape = 'u8[512]{0}', space=smem, size = 0x200, scoped, tag = 'input window, operand 9, single buffered']
    #allocation8 [shape = 's32[2]{0}', space=sflag, size = 0x8, scoped, tag = 'scoped memory for wavelet_block_forward.1']
    %15 = vsyncpa [#allocation8], 0
    loop: start=0, step=1, limit=4
    $region2: #{wavelet_block_forward.1} parent=1 // loop_pre_header
      _
    $region3: #{wavelet_block_forward.1} parent=1 // loop_header
      %s17 = sphi 0, %s21
      %p18 = scmp.ge.s32.totalorder %s17, 4
      %s27 = sphi 0, %s29
      %s30 = sphi 0, %s27
      %s31 = sphi 0, %s30
      %s47 = sphi 0, %s31
      %s51 = sphi 0, %s51
      %s53 = sphi 0, %s51
      %s54 = sphi 0, %s53
      %s68 = sphi 0, %s54
      %s72 = sphi 0, %s72
      %s74 = sphi 0, %s72
      %s75 = sphi 0, %s74
      %s89 = sphi 0, %s75
      %s93 = sphi 0, %s93
      %s95 = sphi 0, %s93
      %s96 = sphi 0, %s95
      %s110 = sphi 0, %s96
      %s114 = sphi 0, %s114
      %s116 = sphi 0, %s114
      %s117 = sphi 0, %s116
      %s131 = sphi 0, %s117
      %s135 = sphi 0, %s135
      %s137 = sphi 0, %s135
      %s138 = sphi 0, %s137
      %s152 = sphi 0, %s138
      %s156 = sphi 0, %s156
      %s158 = sphi 0, %s156
      %s159 = sphi 0, %s158
      %s173 = sphi 0, %s159
      %s177 = sphi 0, %s177
      %s179 = sphi 0, %s177
      %s180 = sphi 0, %s179
      %s194 = sphi 0, %s180
      %s198 = sphi 0, %s198
      %s200 = sphi 0, %s198
      %s201 = sphi 0, %s200
      %s215 = sphi 0, %s201
      %s219 = sphi 0, %s219
      %s221 = sphi 0, %s219
      %s222 = sphi 0, %s221
      %s236 = sphi 0, %s222
      %s242 = sphi 0, %s244
      %s245 = sphi 0, %s242
      %s246 = sphi 0, %s245
      %s262 = sphi 0, %s246
    $region4: #{wavelet_block_forward.1} parent=1 // loop_header_branch
      %20 = sbr.rel (%p18) target = $region8
    $region5: #{wavelet_block_forward.1} parent=1 // loop_body
      %s22 = ssub.s32 %s17, 1
      %s23 = ssub.s32 %s17, 2
      %s24 = sadd.s32 %s17, 1
      %s25 = ssub.s32 %s17, %s24
      %p26 = scmp.eq.s32.totalorder %s25, 0
      %s28 = sadd.s32 %s27, 1
      %s29 = scalar_select %p26, %s27, %s28
      %p32 = pneg %p26
      %p33 = scmp.eq.s32.totalorder %s17, 1
      %p34 = por %p32, %p33
      %p35 = scmp.ne.s32.totalorder %s27, %s30
      %p36 = scmp.eq.s32.totalorder %s17, 0
      %p37 = por %p35, %p36
      %p38 = scmp.ne.s32.totalorder %s27, %s30
      %p39 = scmp.eq.s32.totalorder %s22, 1
      %p40 = por %p38, %p39
      %p41 = scmp.ne.s32.totalorder %s30, %s31
      %p42 = scmp.eq.s32.totalorder %s22, 0
      %p43 = por %p41, %p42
      %p44 = scmp.ne.s32.totalorder %s30, %s31
      %p45 = scmp.eq.s32.totalorder %s23, 1
      %p46 = por %p44, %p45
      %p48 = scmp.ne.s32.totalorder %s31, %s47
      %p49 = scmp.eq.s32.totalorder %s23, 0
      %p50 = por %p48, %p49
      %s52 = sadd.s32 %s51, 1
      %p55 = scmp.eq.s32.totalorder %s17, 1
      %p56 = scmp.ne.s32.totalorder %s51, %s53
      %p57 = scmp.eq.s32.totalorder %s17, 0
      %p58 = por %p56, %p57
      %p59 = scmp.ne.s32.totalorder %s51, %s53
      %p60 = scmp.eq.s32.totalorder %s22, 1
      %p61 = por %p59, %p60
      %p62 = scmp.ne.s32.totalorder %s53, %s54
      %p63 = scmp.eq.s32.totalorder %s22, 0
      %p64 = por %p62, %p63
      %p65 = scmp.ne.s32.totalorder %s53, %s54
      %p66 = scmp.eq.s32.totalorder %s23, 1
      %p67 = por %p65, %p66
      %p69 = scmp.ne.s32.totalorder %s54, %s68
      %p70 = scmp.eq.s32.totalorder %s23, 0
      %p71 = por %p69, %p70
      %s73 = sadd.s32 %s72, 1
      %p76 = scmp.eq.s32.totalorder %s17, 1
      %p77 = scmp.ne.s32.totalorder %s72, %s74
      %p78 = scmp.eq.s32.totalorder %s17, 0
      %p79 = por %p77, %p78
      %p80 = scmp.ne.s32.totalorder %s72, %s74
      %p81 = scmp.eq.s32.totalorder %s22, 1
      %p82 = por %p80, %p81
      %p83 = scmp.ne.s32.totalorder %s74, %s75
      %p84 = scmp.eq.s32.totalorder %s22, 0
      %p85 = por %p83, %p84
      %p86 = scmp.ne.s32.totalorder %s74, %s75
      %p87 = scmp.eq.s32.totalorder %s23, 1
      %p88 = por %p86, %p87
      %p90 = scmp.ne.s32.totalorder %s75, %s89
      %p91 = scmp.eq.s32.totalorder %s23, 0
      %p92 = por %p90, %p91
      %s94 = sadd.s32 %s93, 1
      %p97 = scmp.eq.s32.totalorder %s17, 1
      %p98 = scmp.ne.s32.totalorder %s93, %s95
      %p99 = scmp.eq.s32.totalorder %s17, 0
      %p100 = por %p98, %p99
      %p101 = scmp.ne.s32.totalorder %s93, %s95
      %p102 = scmp.eq.s32.totalorder %s22, 1
      %p103 = por %p101, %p102
      %p104 = scmp.ne.s32.totalorder %s95, %s96
      %p105 = scmp.eq.s32.totalorder %s22, 0
      %p106 = por %p104, %p105
      %p107 = scmp.ne.s32.totalorder %s95, %s96
      %p108 = scmp.eq.s32.totalorder %s23, 1
      %p109 = por %p107, %p108
      %p111 = scmp.ne.s32.totalorder %s96, %s110
      %p112 = scmp.eq.s32.totalorder %s23, 0
      %p113 = por %p111, %p112
      %s115 = sadd.s32 %s114, 1
      %p118 = scmp.eq.s32.totalorder %s17, 1
      %p119 = scmp.ne.s32.totalorder %s114, %s116
      %p120 = scmp.eq.s32.totalorder %s17, 0
      %p121 = por %p119, %p120
      %p122 = scmp.ne.s32.totalorder %s114, %s116
      %p123 = scmp.eq.s32.totalorder %s22, 1
      %p124 = por %p122, %p123
      %p125 = scmp.ne.s32.totalorder %s116, %s117
      %p126 = scmp.eq.s32.totalorder %s22, 0
      %p127 = por %p125, %p126
      %p128 = scmp.ne.s32.totalorder %s116, %s117
      %p129 = scmp.eq.s32.totalorder %s23, 1
      %p130 = por %p128, %p129
      %p132 = scmp.ne.s32.totalorder %s117, %s131
      %p133 = scmp.eq.s32.totalorder %s23, 0
      %p134 = por %p132, %p133
      %s136 = sadd.s32 %s135, 1
      %p139 = scmp.eq.s32.totalorder %s17, 1
      %p140 = scmp.ne.s32.totalorder %s135, %s137
      %p141 = scmp.eq.s32.totalorder %s17, 0
      %p142 = por %p140, %p141
      %p143 = scmp.ne.s32.totalorder %s135, %s137
      %p144 = scmp.eq.s32.totalorder %s22, 1
      %p145 = por %p143, %p144
      %p146 = scmp.ne.s32.totalorder %s137, %s138
      %p147 = scmp.eq.s32.totalorder %s22, 0
      %p148 = por %p146, %p147
      %p149 = scmp.ne.s32.totalorder %s137, %s138
      %p150 = scmp.eq.s32.totalorder %s23, 1
      %p151 = por %p149, %p150
      %p153 = scmp.ne.s32.totalorder %s138, %s152
      %p154 = scmp.eq.s32.totalorder %s23, 0
      %p155 = por %p153, %p154
      %s157 = sadd.s32 %s156, 1
      %p160 = scmp.eq.s32.totalorder %s17, 1
      %p161 = scmp.ne.s32.totalorder %s156, %s158
      %p162 = scmp.eq.s32.totalorder %s17, 0
      %p163 = por %p161, %p162
      %p164 = scmp.ne.s32.totalorder %s156, %s158
      %p165 = scmp.eq.s32.totalorder %s22, 1
      %p166 = por %p164, %p165
      %p167 = scmp.ne.s32.totalorder %s158, %s159
      %p168 = scmp.eq.s32.totalorder %s22, 0
      %p169 = por %p167, %p168
      %p170 = scmp.ne.s32.totalorder %s158, %s159
      %p171 = scmp.eq.s32.totalorder %s23, 1
      %p172 = por %p170, %p171
      %p174 = scmp.ne.s32.totalorder %s159, %s173
      %p175 = scmp.eq.s32.totalorder %s23, 0
      %p176 = por %p174, %p175
      %s178 = sadd.s32 %s177, 1
      %p181 = scmp.eq.s32.totalorder %s17, 1
      %p182 = scmp.ne.s32.totalorder %s177, %s179
      %p183 = scmp.eq.s32.totalorder %s17, 0
      %p184 = por %p182, %p183
      %p185 = scmp.ne.s32.totalorder %s177, %s179
      %p186 = scmp.eq.s32.totalorder %s22, 1
      %p187 = por %p185, %p186
      %p188 = scmp.ne.s32.totalorder %s179, %s180
      %p189 = scmp.eq.s32.totalorder %s22, 0
      %p190 = por %p188, %p189
      %p191 = scmp.ne.s32.totalorder %s179, %s180
      %p192 = scmp.eq.s32.totalorder %s23, 1
      %p193 = por %p191, %p192
      %p195 = scmp.ne.s32.totalorder %s180, %s194
      %p196 = scmp.eq.s32.totalorder %s23, 0
      %p197 = por %p195, %p196
      %s199 = sadd.s32 %s198, 1
      %p202 = scmp.eq.s32.totalorder %s17, 1
      %p203 = scmp.ne.s32.totalorder %s198, %s200
      %p204 = scmp.eq.s32.totalorder %s17, 0
      %p205 = por %p203, %p204
      %p206 = scmp.ne.s32.totalorder %s198, %s200
      %p207 = scmp.eq.s32.totalorder %s22, 1
      %p208 = por %p206, %p207
      %p209 = scmp.ne.s32.totalorder %s200, %s201
      %p210 = scmp.eq.s32.totalorder %s22, 0
      %p211 = por %p209, %p210
      %p212 = scmp.ne.s32.totalorder %s200, %s201
      %p213 = scmp.eq.s32.totalorder %s23, 1
      %p214 = por %p212, %p213
      %p216 = scmp.ne.s32.totalorder %s201, %s215
      %p217 = scmp.eq.s32.totalorder %s23, 0
      %p218 = por %p216, %p217
      %s220 = sadd.s32 %s219, 1
      %p223 = scmp.eq.s32.totalorder %s17, 1
      %p224 = scmp.ne.s32.totalorder %s219, %s221
      %p225 = scmp.eq.s32.totalorder %s17, 0
      %p226 = por %p224, %p225
      %p227 = scmp.ne.s32.totalorder %s219, %s221
      %p228 = scmp.eq.s32.totalorder %s22, 1
      %p229 = por %p227, %p228
      %p230 = scmp.ne.s32.totalorder %s221, %s222
      %p231 = scmp.eq.s32.totalorder %s22, 0
      %p232 = por %p230, %p231
      %p233 = scmp.ne.s32.totalorder %s221, %s222
      %p234 = scmp.eq.s32.totalorder %s23, 1
      %p235 = por %p233, %p234
      %p237 = scmp.ne.s32.totalorder %s222, %s236
      %p238 = scmp.eq.s32.totalorder %s23, 0
      %p239 = por %p237, %p238
      %s240 = ssub.s32 %s17, %s24
      %p241 = scmp.eq.s32.totalorder %s240, 0
      %s243 = sadd.s32 %s242, 1
      %s244 = scalar_select %p241, %s242, %s243
      %p247 = pneg %p241
      %p248 = scmp.eq.s32.totalorder %s17, 1
      %p249 = por %p247, %p248
      %p250 = scmp.ne.s32.totalorder %s242, %s245
      %p251 = scmp.eq.s32.totalorder %s17, 0
      %p252 = por %p250, %p251
      %p253 = scmp.ne.s32.totalorder %s242, %s245
      %p254 = scmp.eq.s32.totalorder %s22, 1
      %p255 = por %p253, %p254
      %p256 = scmp.ne.s32.totalorder %s245, %s246
      %p257 = scmp.eq.s32.totalorder %s22, 0
      %p258 = por %p256, %p257
      %p259 = scmp.ne.s32.totalorder %s245, %s246
      %p260 = scmp.eq.s32.totalorder %s23, 1
      %p261 = por %p259, %p260
      %p263 = scmp.ne.s32.totalorder %s246, %s262
      %p264 = scmp.eq.s32.totalorder %s23, 0
      %p265 = por %p263, %p264
      %p266 = scmp.le.s32.totalorder 1, %s17
      %p267 = scmp.lt.s32.totalorder %s17, 3
      %p268 = pnand %p266, %p267
      %p269 = pneg %p268
      // Predicated region
      $region9: #{wavelet_block_forward.1} parent=5 // pred_check
        _
      $region10: #{wavelet_block_forward.1} parent=5 // pred_check_branch
        %271 = sbr.rel (%p268) target = $region12
      $region11: #{wavelet_block_forward.1} parent=5 // pred_region
        %s272 = ssub.s32 %s17, 1
        // Predicated region
        $region13: #{wavelet_block_forward.1} parent=11 // pred_check
          %p273 = pneg %p64
        $region14: #{wavelet_block_forward.1} parent=11 // pred_check_branch
          %275 = sbr.rel (%p273) target = $region16
        $region15: #{wavelet_block_forward.1} parent=11 // pred_region
          _
        $region16: #{wavelet_block_forward.1} parent=11 // pred_fallthru
          _
        // Predicated region
        $region17: #{wavelet_block_forward.1} parent=11 // pred_check
          %p276 = pneg %p85
        $region18: #{wavelet_block_forward.1} parent=11 // pred_check_branch
          %278 = sbr.rel (%p276) target = $region20
        $region19: #{wavelet_block_forward.1} parent=11 // pred_region
          _
        $region20: #{wavelet_block_forward.1} parent=11 // pred_fallthru
          _
        // Predicated region
        $region21: #{wavelet_block_forward.1} parent=11 // pred_check
          %p279 = pneg %p106
        $region22: #{wavelet_block_forward.1} parent=11 // pred_check_branch
          %281 = sbr.rel (%p279) target = $region24
        $region23: #{wavelet_block_forward.1} parent=11 // pred_region
          _
        $region24: #{wavelet_block_forward.1} parent=11 // pred_fallthru
          _
        // Predicated region
        $region25: #{wavelet_block_forward.1} parent=11 // pred_check
          %p282 = pneg %p127
        $region26: #{wavelet_block_forward.1} parent=11 // pred_check_branch
          %284 = sbr.rel (%p282) target = $region28
        $region27: #{wavelet_block_forward.1} parent=11 // pred_region
          _
        $region28: #{wavelet_block_forward.1} parent=11 // pred_fallthru
          _
        // Predicated region
        $region29: #{wavelet_block_forward.1} parent=11 // pred_check
          %p285 = pneg %p148
        $region30: #{wavelet_block_forward.1} parent=11 // pred_check_branch
          %287 = sbr.rel (%p285) target = $region32
        $region31: #{wavelet_block_forward.1} parent=11 // pred_region
          _
        $region32: #{wavelet_block_forward.1} parent=11 // pred_fallthru
          _
        // Predicated region
        $region33: #{wavelet_block_forward.1} parent=11 // pred_check
          %p288 = pneg %p169
        $region34: #{wavelet_block_forward.1} parent=11 // pred_check_branch
          %290 = sbr.rel (%p288) target = $region36
        $region35: #{wavelet_block_forward.1} parent=11 // pred_region
          _
        $region36: #{wavelet_block_forward.1} parent=11 // pred_fallthru
          _
        // Predicated region
        $region37: #{wavelet_block_forward.1} parent=11 // pred_check
          %p291 = pneg %p190
        $region38: #{wavelet_block_forward.1} parent=11 // pred_check_branch
          %293 = sbr.rel (%p291) target = $region40
        $region39: #{wavelet_block_forward.1} parent=11 // pred_region
          _
        $region40: #{wavelet_block_forward.1} parent=11 // pred_fallthru
          _
        // Predicated region
        $region41: #{wavelet_block_forward.1} parent=11 // pred_check
          %p294 = pneg %p211
        $region42: #{wavelet_block_forward.1} parent=11 // pred_check_branch
          %296 = sbr.rel (%p294) target = $region44
        $region43: #{wavelet_block_forward.1} parent=11 // pred_region
          _
        $region44: #{wavelet_block_forward.1} parent=11 // pred_fallthru
          _
        // Predicated region
        $region45: #{wavelet_block_forward.1} parent=11 // pred_check
          %p297 = pneg %p232
        $region46: #{wavelet_block_forward.1} parent=11 // pred_check_branch
          %299 = sbr.rel (%p297) target = $region48
        $region47: #{wavelet_block_forward.1} parent=11 // pred_region
          %301 = vsyncadd [#allocation8], 0
          %s303 = sshll.u32 %s9, 4
          %s304 = int_to_ptr.vmem [resolvable:$true] %s303
          %306 = dma.vmem_to_smem %s304, 16, [#allocation7], [#allocation8]
        $region48: #{wavelet_block_forward.1} parent=11 // pred_fallthru
          _
      $region12: #{wavelet_block_forward.1} parent=5 // pred_fallthru
        _
      %p307 = scmp.lt.s32.totalorder %s17, 2
      // Predicated region
      $region49: #{wavelet_block_forward.1} parent=5 // pred_check
        %p308 = pneg %p307
      $region50: #{wavelet_block_forward.1} parent=5 // pred_check_branch
        %310 = sbr.rel (%p308) target = $region52
      $region51: #{wavelet_block_forward.1} parent=5 // pred_region
        // Predicated region
        $region53: #{wavelet_block_forward.1} parent=51 // pred_check
          %p311 = pneg %p37
        $region54: #{wavelet_block_forward.1} parent=51 // pred_check_branch
          %313 = sbr.rel (%p311) target = $region56
        $region55: #{wavelet_block_forward.1} parent=51 // pred_region
          %p314 = scmp.lt.s32.totalorder %s17, 1
          %s315 = scalar_select %p314, %s17, 1
          %s316 = smul.addr %s315, 8
          %s317 = smul.addr %s316, 4
          %s318 = scalar_lea.vmem %s0, %s317
        $region56: #{wavelet_block_forward.1} parent=51 // pred_fallthru
          _
      $region52: #{wavelet_block_forward.1} parent=5 // pred_fallthru
        _
      %p319 = scmp.le.s32.totalorder 1, %s17
      %p320 = scmp.lt.s32.totalorder %s17, 3
      %p321 = pnand %p319, %p320
      %p322 = pneg %p321
      // Predicated region
      $region57: #{wavelet_block_forward.1} parent=5 // pred_check
        _
      $region58: #{wavelet_block_forward.1} parent=5 // pred_check_branch
        %324 = sbr.rel (%p321) target = $region60
      $region59: #{wavelet_block_forward.1} parent=5 // pred_region
        %s325 = ssub.s32 %s17, 1
        // Predicated region
        $region61: #{wavelet_block_forward.1} parent=59 // pred_check
          %p326 = pneg %p232
        $region62: #{wavelet_block_forward.1} parent=59 // pred_check_branch
          %328 = sbr.rel (%p326) target = $region64
        $region63: #{wavelet_block_forward.1} parent=59 // pred_region
          %330 = dma.done [#allocation8], 16
        $region64: #{wavelet_block_forward.1} parent=59 // pred_fallthru
          _
        %331 = sfence
        %p332 = scmp.lt.s32.totalorder %s22, 1
        %s333 = scalar_select %p332, %s22, 1
        %s334 = smul.addr %s333, 8
        %s335 = smul.addr %s334, 4
        %s336 = scalar_lea.vmem %s0, %s335
        %p337 = pneg %p43
        %p338 = pneg %p40
        %p339 = pneg %p64
        %p340 = pneg %p61
        %p341 = pneg %p85
        %p342 = pneg %p82
        %p343 = pneg %p106
        %p344 = pneg %p103
        %p345 = pneg %p127
        %p346 = pneg %p124
        %p347 = pneg %p148
        %p348 = pneg %p145
        %p349 = pneg %p169
        %p350 = pneg %p166
        %p351 = pneg %p190
        %p352 = pneg %p187
        %p353 = pneg %p211
        %p354 = pneg %p208
        %p355 = pneg %p232
        %p356 = pneg %p229
        %p357 = pneg %p258
        %p358 = pneg %p255
        %p359 = scmp.lt.s32.totalorder %s22, 1
        %s360 = scalar_select %p359, %s22, 1
        %s361 = smul.addr %s360, 8
        %s362 = smul.addr %s361, 8
        %s363 = scalar_lea.vmem %s10, %s362
        %p364 = scmp.lt.s32.totalorder %s22, 1
        %s365 = scalar_select %p364, %s22, 1
        %s366 = smul.addr %s365, 8
        %s367 = smul.addr %s366, 4
        %s368 = scalar_lea.vmem %s0, %s367
        %p369 = scmp.lt.s32.totalorder %s22, 1
        %s370 = scalar_select %p369, %s22, 1
        %s371 = smul.addr %s370, 8
        %s372 = smul.addr %s371, 8
        %s373 = scalar_lea.vmem %s10, %s372
        %vm375 = vcmask 125952
        %376 = vst.msk [vmem:[#allocation2] sm:$0xf] %vm375, 0
        %377 = vst.msk [vmem:[#allocation2 + $0x4] sm:$0xf] %vm375, 0
        %378 = vst.msk [vmem:[#allocation2 + $0x8] sm:$0xf] %vm375, 0
        %vm379 = vcmask 122880
        %vm380 = vsmask.f32 256
        %vm381 = vmand %vm379, %vm380
        %v382 = vld [vmem:[#allocation2 + $0xc] sm:$0x1]
        %v383 = vsel %vm381, 0, %v382
        %384 = vst [vmem:[#allocation2 + $0xc] sm:$0x1] %v383
        %s385 = scalar_lea.vmem [#allocation2], 144
        %386 = vst.msk [vmem:[%s385] sm:$0xf] %vm375, 0
        %387 = vst.msk [vmem:[%s385 + $0x4] sm:$0xf] %vm375, 0
        %388 = vst.msk [vmem:[%s385 + $0x8] sm:$0xf] %vm375, 0
        %v389 = vld [vmem:[%s385 + $0xc] sm:$0x1]
        %v390 = vsel %vm381, 0, %v389
        %391 = vst [vmem:[%s385 + $0xc] sm:$0x1] %v390
        %s392 = scalar_lea.vmem [#allocation2], 16
        %393 = vst.msk [vmem:[%s392] sm:$0xf] %vm375, 0
        %394 = vst.msk [vmem:[%s392 + $0x4] sm:$0xf] %vm375, 0
        %395 = vst.msk [vmem:[%s392 + $0x10] sm:$0xf] %vm375, 0
        %396 = vst.msk [vmem:[%s392 + $0x14] sm:$0xf] %vm375, 0
        %397 = vst.msk [vmem:[%s392 + $0x20] sm:$0xf] %vm375, 0
        %398 = vst.msk [vmem:[%s392 + $0x24] sm:$0xf] %vm375, 0
        %399 = vst.msk [vmem:[%s392 + $0x30] sm:$0xf] %vm375, 0
        %400 = vst.msk [vmem:[%s392 + $0x34] sm:$0xf] %vm375, 0
        %401 = vst.msk [vmem:[%s392 + $0x40] sm:$0xf] %vm375, 0
        %402 = vst.msk [vmem:[%s392 + $0x44] sm:$0xf] %vm375, 0
        %403 = vst.msk [vmem:[%s392 + $0x50] sm:$0xf] %vm375, 0
        %404 = vst.msk [vmem:[%s392 + $0x54] sm:$0xf] %vm375, 0
        %405 = vst.msk [vmem:[%s392 + $0x60] sm:$0xf] %vm375, 0
        %406 = vst.msk [vmem:[%s392 + $0x64] sm:$0xf] %vm375, 0
        %407 = vst.msk [vmem:[%s392 + $0x70] sm:$0xf] %vm375, 0
        %408 = vst.msk [vmem:[%s392 + $0x74] sm:$0xf] %vm375, 0
        %v409 = vld [vmem:[%s392 + $0xc] sm:$0x1]
        %v410 = vsel %vm381, 0, %v409
        %411 = vst [vmem:[%s392 + $0xc] sm:$0x1] %v410
        %v412 = vld [vmem:[%s392 + $0x1c] sm:$0x1]
        %v413 = vsel %vm381, 0, %v412
        %414 = vst [vmem:[%s392 + $0x1c] sm:$0x1] %v413
        %v415 = vld [vmem:[%s392 + $0x2c] sm:$0x1]
        %v416 = vsel %vm381, 0, %v415
        %417 = vst [vmem:[%s392 + $0x2c] sm:$0x1] %v416
        %v418 = vld [vmem:[%s392 + $0x3c] sm:$0x1]
        %v419 = vsel %vm381, 0, %v418
        %420 = vst [vmem:[%s392 + $0x3c] sm:$0x1] %v419
        %v421 = vld [vmem:[%s392 + $0x4c] sm:$0x1]
        %v422 = vsel %vm381, 0, %v421
        %423 = vst [vmem:[%s392 + $0x4c] sm:$0x1] %v422
        %v424 = vld [vmem:[%s392 + $0x5c] sm:$0x1]
        %v425 = vsel %vm381, 0, %v424
        %426 = vst [vmem:[%s392 + $0x5c] sm:$0x1] %v425
        %v427 = vld [vmem:[%s392 + $0x6c] sm:$0x1]
        %v428 = vsel %vm381, 0, %v427
        %429 = vst [vmem:[%s392 + $0x6c] sm:$0x1] %v428
        %v430 = vld [vmem:[%s392 + $0x7c] sm:$0x1]
        %v431 = vsel %vm381, 0, %v430
        %432 = vst [vmem:[%s392 + $0x7c] sm:$0x1] %v431
        %vm433 = vcmask 27648
        %434 = vst.msk [vmem:[#allocation3] sm:$0xf] %vm433, 0
        %435 = vst.msk [vmem:[#allocation3 + $0x4] sm:$0xf] %vm433, 0
        %436 = vst.msk [vmem:[#allocation3 + $0x8] sm:$0xf] %vm433, 0
        %vm437 = vcmask 24576
        %vm438 = vmand %vm437, %vm380
        %v439 = vld [vmem:[#allocation3 + $0xc] sm:$0x1]
        %v440 = vsel %vm438, 0, %v439
        %441 = vst [vmem:[#allocation3 + $0xc] sm:$0x1] %v440
        %s442 = scalar_lea.vmem [#allocation3], 144
        %443 = vst.msk [vmem:[%s442] sm:$0xf] %vm433, 0
        %444 = vst.msk [vmem:[%s442 + $0x4] sm:$0xf] %vm433, 0
        %445 = vst.msk [vmem:[%s442 + $0x8] sm:$0xf] %vm433, 0
        %v446 = vld [vmem:[%s442 + $0xc] sm:$0x1]
        %v447 = vsel %vm438, 0, %v446
        %448 = vst [vmem:[%s442 + $0xc] sm:$0x1] %v447
        %s449 = scalar_lea.vmem [#allocation3], 16
        %450 = vst.msk [vmem:[%s449] sm:$0xf] %vm433, 0
        %451 = vst.msk [vmem:[%s449 + $0x4] sm:$0xf] %vm433, 0
        %452 = vst.msk [vmem:[%s449 + $0x10] sm:$0xf] %vm433, 0
        %453 = vst.msk [vmem:[%s449 + $0x14] sm:$0xf] %vm433, 0
        %454 = vst.msk [vmem:[%s449 + $0x20] sm:$0xf] %vm433, 0
        %455 = vst.msk [vmem:[%s449 + $0x24] sm:$0xf] %vm433, 0
        %456 = vst.msk [vmem:[%s449 + $0x30] sm:$0xf] %vm433, 0
        %457 = vst.msk [vmem:[%s449 + $0x34] sm:$0xf] %vm433, 0
        %458 = vst.msk [vmem:[%s449 + $0x40] sm:$0xf] %vm433, 0
        %459 = vst.msk [vmem:[%s449 + $0x44] sm:$0xf] %vm433, 0
        %460 = vst.msk [vmem:[%s449 + $0x50] sm:$0xf] %vm433, 0
        %461 = vst.msk [vmem:[%s449 + $0x54] sm:$0xf] %vm433, 0
        %462 = vst.msk [vmem:[%s449 + $0x60] sm:$0xf] %vm433, 0
        %463 = vst.msk [vmem:[%s449 + $0x64] sm:$0xf] %vm433, 0
        %464 = vst.msk [vmem:[%s449 + $0x70] sm:$0xf] %vm433, 0
        %465 = vst.msk [vmem:[%s449 + $0x74] sm:$0xf] %vm433, 0
        %v466 = vld [vmem:[%s449 + $0xc] sm:$0x1]
        %v467 = vsel %vm438, 0, %v466
        %468 = vst [vmem:[%s449 + $0xc] sm:$0x1] %v467
        %v469 = vld [vmem:[%s449 + $0x1c] sm:$0x1]
        %v470 = vsel %vm438, 0, %v469
        %471 = vst [vmem:[%s449 + $0x1c] sm:$0x1] %v470
        %v472 = vld [vmem:[%s449 + $0x2c] sm:$0x1]
        %v473 = vsel %vm438, 0, %v472
        %474 = vst [vmem:[%s449 + $0x2c] sm:$0x1] %v473
        %v475 = vld [vmem:[%s449 + $0x3c] sm:$0x1]
        %v476 = vsel %vm438, 0, %v475
        %477 = vst [vmem:[%s449 + $0x3c] sm:$0x1] %v476
        %v478 = vld [vmem:[%s449 + $0x4c] sm:$0x1]
        %v479 = vsel %vm438, 0, %v478
        %480 = vst [vmem:[%s449 + $0x4c] sm:$0x1] %v479
        %v481 = vld [vmem:[%s449 + $0x5c] sm:$0x1]
        %v482 = vsel %vm438, 0, %v481
        %483 = vst [vmem:[%s449 + $0x5c] sm:$0x1] %v482
        %v484 = vld [vmem:[%s449 + $0x6c] sm:$0x1]
        %v485 = vsel %vm438, 0, %v484
        %486 = vst [vmem:[%s449 + $0x6c] sm:$0x1] %v485
        %v487 = vld [vmem:[%s449 + $0x7c] sm:$0x1]
        %v488 = vsel %vm438, 0, %v487
        %489 = vst [vmem:[%s449 + $0x7c] sm:$0x1] %v488
        %vm490 = vcmask 205824
        %491 = vst.msk [vmem:[#allocation5] sm:$0x3] %vm490, 0.0
        %492 = vst.msk [vmem:[#allocation5 + $0xa] sm:$0x3] %vm490, 0.0
        %vm493 = vcmask 130048
        %494 = vst.msk [vmem:[#allocation5 + $0x2] sm:$0xff] %vm493, 0.0
        %vm495 = vcmask 212160
        %496 = vst.msk [vmem:[#allocation5 + $0x2] sm:$0xff] %vm495, 0.0
        %497 = vst.msk [vmem:[#allocation6] sm:$0x3] %vm490, 0.0
        %498 = vst.msk [vmem:[#allocation6 + $0xa] sm:$0x3] %vm490, 0.0
        %499 = vst.msk [vmem:[#allocation6 + $0x2] sm:$0xff] %vm493, 0.0
        %500 = vst.msk [vmem:[#allocation6 + $0x2] sm:$0xff] %vm495, 0.0
        %v501 = vld [vmem:[%s368] sm:$0xf]
        %v502 = vld [vmem:[%s368 + $0x4] sm:$0xf]
        %v503 = vld [vmem:[%s368 + $0x8] sm:$0xf]
        %v504 = vld [vmem:[%s368 + $0xc] sm:$0xf]
        %v505 = vld [vmem:[%s368 + $0x10] sm:$0xf]
        %v506 = vld [vmem:[%s368 + $0x14] sm:$0xf]
        %v507 = vld [vmem:[%s368 + $0x18] sm:$0xf]
        %v508 = vld [vmem:[%s368 + $0x1c] sm:$0xf]
        %509 = vst.msk [vmem:[%s392 + $0x8] sm:$0xf] %vm375, %v501
        %510 = vst.msk [vmem:[%s392 + $0x18] sm:$0xf] %vm375, %v502
        %511 = vst.msk [vmem:[%s392 + $0x28] sm:$0xf] %vm375, %v503
        %512 = vst.msk [vmem:[%s392 + $0x38] sm:$0xf] %vm375, %v504
        %513 = vst.msk [vmem:[%s392 + $0x48] sm:$0xf] %vm375, %v505
        %514 = vst.msk [vmem:[%s392 + $0x58] sm:$0xf] %vm375, %v506
        %515 = vst.msk [vmem:[%s392 + $0x68] sm:$0xf] %vm375, %v507
        %516 = vst.msk [vmem:[%s392 + $0x78] sm:$0xf] %vm375, %v508
        %v517 = vld [vmem:[#allocation2 + $0x4] sm:$0x8]
        %v518 = vld [vmem:[#allocation2 + $0x8] sm:$0xf]
        %v519 = vld [vmem:[#allocation2 + $0x14] sm:$0x8]
        %v520 = vld [vmem:[#allocation2 + $0x18] sm:$0xf]
        %v521 = vld [vmem:[#allocation2 + $0x24] sm:$0x8]
        %v522 = vld [vmem:[#allocation2 + $0x28] sm:$0xf]
        %v523 = vld [vmem:[#allocation2 + $0x34] sm:$0x8]
        %v524 = vld [vmem:[#allocation2 + $0x38] sm:$0xf]
        %v525 = vld [vmem:[#allocation2 + $0x44] sm:$0x8]
        %v526 = vld [vmem:[#allocation2 + $0x48] sm:$0xf]
        %v527 = vld [vmem:[#allocation2 + $0x54] sm:$0x8]
        %v528 = vld [vmem:[#allocation2 + $0x58] sm:$0xf]
        %v529 = vld [vmem:[#allocation2 + $0x64] sm:$0x8]
        %v530 = vld [vmem:[#allocation2 + $0x68] sm:$0xf]
        %v531 = vld [vmem:[#allocation2 + $0x74] sm:$0x8]
        %v532 = vld [vmem:[#allocation2 + $0x78] sm:$0xf]
        %vm533 = vsmask.f32 4368
        %vm534 = vmor %vm380, %vm533
        %v536 = vshrl.u32 %v517, 16
        %v538 = vrot.slane %v536, 7
        %v539 = vrot.slane %v538, 4
        %v541 = vshrl.u32 %v518, 16
        %v543 = vrot.slane %v541, 7
        %v544 = vshll.u32 %v518, 16
        %v546 = vor.u32 %v543, %v544
        %v547 = vsel %vm534, %v539, %v546
        %v549 = vshrl.u32 %v519, 16
        %v551 = vrot.slane %v549, 7
        %v552 = vrot.slane %v551, 4
        %v554 = vshrl.u32 %v520, 16
        %v556 = vrot.slane %v554, 7
        %v557 = vshll.u32 %v520, 16
        %v559 = vor.u32 %v556, %v557
        %v560 = vsel %vm534, %v552, %v559
        %v562 = vshrl.u32 %v521, 16
        %v564 = vrot.slane %v562, 7
        %v565 = vrot.slane %v564, 4
        %v567 = vshrl.u32 %v522, 16
        %v569 = vrot.slane %v567, 7
        %v570 = vshll.u32 %v522, 16
        %v572 = vor.u32 %v569, %v570
        %v573 = vsel %vm534, %v565, %v572
        %v575 = vshrl.u32 %v523, 16
        %v577 = vrot.slane %v575, 7
        %v578 = vrot.slane %v577, 4
        %v580 = vshrl.u32 %v524, 16
        %v582 = vrot.slane %v580, 7
        %v583 = vshll.u32 %v524, 16
        %v585 = vor.u32 %v582, %v583
        %v586 = vsel %vm534, %v578, %v585
        %v588 = vshrl.u32 %v525, 16
        %v590 = vrot.slane %v588, 7
        %v591 = vrot.slane %v590, 4
        %v593 = vshrl.u32 %v526, 16
        %v595 = vrot.slane %v593, 7
        %v596 = vshll.u32 %v526, 16
        %v598 = vor.u32 %v595, %v596
        %v599 = vsel %vm534, %v591, %v598
        %v601 = vshrl.u32 %v527, 16
        %v603 = vrot.slane %v601, 7
        %v604 = vrot.slane %v603, 4
        %v606 = vshrl.u32 %v528, 16
        %v608 = vrot.slane %v606, 7
        %v609 = vshll.u32 %v528, 16
        %v611 = vor.u32 %v608, %v609
        %v612 = vsel %vm534, %v604, %v611
        %v614 = vshrl.u32 %v529, 16
        %v616 = vrot.slane %v614, 7
        %v617 = vrot.slane %v616, 4
        %v619 = vshrl.u32 %v530, 16
        %v621 = vrot.slane %v619, 7
        %v622 = vshll.u32 %v530, 16
        %v624 = vor.u32 %v621, %v622
        %v625 = vsel %vm534, %v617, %v624
        %v627 = vshrl.u32 %v531, 16
        %v629 = vrot.slane %v627, 7
        %v630 = vrot.slane %v629, 4
        %v632 = vshrl.u32 %v532, 16
        %v634 = vrot.slane %v632, 7
        %v635 = vshll.u32 %v532, 16
        %v637 = vor.u32 %v634, %v635
        %v638 = vsel %vm534, %v630, %v637
        %647 = vst.msk [vmem:[#allocation4] sm:$0xf] %vm375, %v547
        %648 = vst.msk [vmem:[#allocation4 + $0x8] sm:$0xf] %vm375, %v560
        %649 = vst.msk [vmem:[#allocation4 + $0x10] sm:$0xf] %vm375, %v573
        %650 = vst.msk [vmem:[#allocation4 + $0x18] sm:$0xf] %vm375, %v586
        %651 = vst.msk [vmem:[#allocation4 + $0x20] sm:$0xf] %vm375, %v599
        %652 = vst.msk [vmem:[#allocation4 + $0x28] sm:$0xf] %vm375, %v612
        %653 = vst.msk [vmem:[#allocation4 + $0x30] sm:$0xf] %vm375, %v625
        %654 = vst.msk [vmem:[#allocation4 + $0x38] sm:$0xf] %vm375, %v638
        %v655 = vld [vmem:[#allocation2 + $0x8] sm:$0xf]
        %v656 = vld [vmem:[#allocation2 + $0x18] sm:$0xf]
        %v657 = vld [vmem:[#allocation2 + $0x28] sm:$0xf]
        %v658 = vld [vmem:[#allocation2 + $0x38] sm:$0xf]
        %v659 = vld [vmem:[#allocation2 + $0x48] sm:$0xf]
        %v660 = vld [vmem:[#allocation2 + $0x58] sm:$0xf]
        %v661 = vld [vmem:[#allocation2 + $0x68] sm:$0xf]
        %v662 = vld [vmem:[#allocation2 + $0x78] sm:$0xf]
        %671 = vrot.lane.b32.xlu0 %v655, 16
        %v672 = vpop.permute.xlu0 %671
        %673 = vrot.lane.b32.xlu0 %v656, 16
        %v674 = vpop.permute.xlu0 %673
        %675 = vrot.lane.b32.xlu0 %v657, 16
        %v676 = vpop.permute.xlu0 %675
        %677 = vrot.lane.b32.xlu0 %v658, 16
        %v678 = vpop.permute.xlu0 %677
        %679 = vrot.lane.b32.xlu0 %v659, 16
        %v680 = vpop.permute.xlu0 %679
        %681 = vrot.lane.b32.xlu0 %v660, 16
        %v682 = vpop.permute.xlu0 %681
        %683 = vrot.lane.b32.xlu0 %v661, 16
        %v684 = vpop.permute.xlu0 %683
        %685 = vrot.lane.b32.xlu0 %v662, 16
        %v686 = vpop.permute.xlu0 %685
        %vm695 = vcmask 257152
        %696 = vst.msk [vmem:[#allocation4] sm:$0xf] %vm695, %v672
        %697 = vst.msk [vmem:[#allocation4 + $0x8] sm:$0xf] %vm695, %v674
        %698 = vst.msk [vmem:[#allocation4 + $0x10] sm:$0xf] %vm695, %v676
        %699 = vst.msk [vmem:[#allocation4 + $0x18] sm:$0xf] %vm695, %v678
        %700 = vst.msk [vmem:[#allocation4 + $0x20] sm:$0xf] %vm695, %v680
        %701 = vst.msk [vmem:[#allocation4 + $0x28] sm:$0xf] %vm695, %v682
        %702 = vst.msk [vmem:[#allocation4 + $0x30] sm:$0xf] %vm695, %v684
        %703 = vst.msk [vmem:[#allocation4 + $0x38] sm:$0xf] %vm695, %v686
        %v704 = vld [vmem:[#allocation2 + $0x8] sm:$0xf]
        %v705 = vld [vmem:[#allocation2 + $0xc] sm:$0x1]
        %v706 = vld [vmem:[#allocation2 + $0x18] sm:$0xf]
        %v707 = vld [vmem:[#allocation2 + $0x1c] sm:$0x1]
        %v708 = vld [vmem:[#allocation2 + $0x28] sm:$0xf]
        %v709 = vld [vmem:[#allocation2 + $0x2c] sm:$0x1]
        %v710 = vld [vmem:[#allocation2 + $0x38] sm:$0xf]
        %v711 = vld [vmem:[#allocation2 + $0x3c] sm:$0x1]
        %v712 = vld [vmem:[#allocation2 + $0x48] sm:$0xf]
        %v713 = vld [vmem:[#allocation2 + $0x4c] sm:$0x1]
        %v714 = vld [vmem:[#allocation2 + $0x58] sm:$0xf]
        %v715 = vld [vmem:[#allocation2 + $0x5c] sm:$0x1]
        %v716 = vld [vmem:[#allocation2 + $0x68] sm:$0xf]
        %v717 = vld [vmem:[#allocation2 + $0x6c] sm:$0x1]
        %v718 = vld [vmem:[#allocation2 + $0x78] sm:$0xf]
        %v719 = vld [vmem:[#allocation2 + $0x7c] sm:$0x1]
        %vm720 = vsmask.f32 3328
        %vm721 = vsmask.f32 7440
        %vm722 = vmor %vm720, %vm721
        %v724 = vshrl.u32 %v704, 16
        %v726 = vrot.slane %v724, 4
        %v727 = vshll.u32 %v704, 16
        %v729 = vrot.slane %v727, 5
        %v730 = vor.u32 %v726, %v729
        %v731 = vrot.slane %v730, 4
        %v733 = vshll.u32 %v705, 16
        %v735 = vrot.slane %v733, 5
        %v736 = vsel %vm722, %v731, %v735
        %v738 = vshrl.u32 %v706, 16
        %v740 = vrot.slane %v738, 4
        %v741 = vshll.u32 %v706, 16
        %v743 = vrot.slane %v741, 5
        %v744 = vor.u32 %v740, %v743
        %v745 = vrot.slane %v744, 4
        %v747 = vshll.u32 %v707, 16
        %v749 = vrot.slane %v747, 5
        %v750 = vsel %vm722, %v745, %v749
        %v752 = vshrl.u32 %v708, 16
        %v754 = vrot.slane %v752, 4
        %v755 = vshll.u32 %v708, 16
        %v757 = vrot.slane %v755, 5
        %v758 = vor.u32 %v754, %v757
        %v759 = vrot.slane %v758, 4
        %v761 = vshll.u32 %v709, 16
        %v763 = vrot.slane %v761, 5
        %v764 = vsel %vm722, %v759, %v763
        %v766 = vshrl.u32 %v710, 16
        %v768 = vrot.slane %v766, 4
        %v769 = vshll.u32 %v710, 16
        %v771 = vrot.slane %v769, 5
        %v772 = vor.u32 %v768, %v771
        %v773 = vrot.slane %v772, 4
        %v775 = vshll.u32 %v711, 16
        %v777 = vrot.slane %v775, 5
        %v778 = vsel %vm722, %v773, %v777
        %v780 = vshrl.u32 %v712, 16
        %v782 = vrot.slane %v780, 4
        %v783 = vshll.u32 %v712, 16
        %v785 = vrot.slane %v783, 5
        %v786 = vor.u32 %v782, %v785
        %v787 = vrot.slane %v786, 4
        %v789 = vshll.u32 %v713, 16
        %v791 = vrot.slane %v789, 5
        %v792 = vsel %vm722, %v787, %v791
        %v794 = vshrl.u32 %v714, 16
        %v796 = vrot.slane %v794, 4
        %v797 = vshll.u32 %v714, 16
        %v799 = vrot.slane %v797, 5
        %v800 = vor.u32 %v796, %v799
        %v801 = vrot.slane %v800, 4
        %v803 = vshll.u32 %v715, 16
        %v805 = vrot.slane %v803, 5
        %v806 = vsel %vm722, %v801, %v805
        %v808 = vshrl.u32 %v716, 16
        %v810 = vrot.slane %v808, 4
        %v811 = vshll.u32 %v716, 16
        %v813 = vrot.slane %v811, 5
        %v814 = vor.u32 %v810, %v813
        %v815 = vrot.slane %v814, 4
        %v817 = vshll.u32 %v717, 16
        %v819 = vrot.slane %v817, 5
        %v820 = vsel %vm722, %v815, %v819
        %v822 = vshrl.u32 %v718, 16
        %v824 = vrot.slane %v822, 4
        %v825 = vshll.u32 %v718, 16
        %v827 = vrot.slane %v825, 5
        %v828 = vor.u32 %v824, %v827
        %v829 = vrot.slane %v828, 4
        %v831 = vshll.u32 %v719, 16
        %v833 = vrot.slane %v831, 5
        %v834 = vsel %vm722, %v829, %v833
        %835 = vrot.lane.b32.xlu0 %v736, 32
        %v836 = vpop.permute.xlu0 %835
        %837 = vrot.lane.b32.xlu0 %v750, 32
        %v838 = vpop.permute.xlu0 %837
        %839 = vrot.lane.b32.xlu0 %v764, 32
        %v840 = vpop.permute.xlu0 %839
        %841 = vrot.lane.b32.xlu0 %v778, 32
        %v842 = vpop.permute.xlu0 %841
        %843 = vrot.lane.b32.xlu0 %v792, 32
        %v844 = vpop.permute.xlu0 %843
        %845 = vrot.lane.b32.xlu0 %v806, 32
        %v846 = vpop.permute.xlu0 %845
        %847 = vrot.lane.b32.xlu0 %v820, 32
        %v848 = vpop.permute.xlu0 %847
        %849 = vrot.lane.b32.xlu0 %v834, 32
        %v850 = vpop.permute.xlu0 %849
        %vm859 = vcmask 388352
        %860 = vst.msk [vmem:[#allocation4] sm:$0xf] %vm859, %v836
        %861 = vst.msk [vmem:[#allocation4 + $0x8] sm:$0xf] %vm859, %v838
        %862 = vst.msk [vmem:[#allocation4 + $0x10] sm:$0xf] %vm859, %v840
        %863 = vst.msk [vmem:[#allocation4 + $0x18] sm:$0xf] %vm859, %v842
        %864 = vst.msk [vmem:[#allocation4 + $0x20] sm:$0xf] %vm859, %v844
        %865 = vst.msk [vmem:[#allocation4 + $0x28] sm:$0xf] %vm859, %v846
        %866 = vst.msk [vmem:[#allocation4 + $0x30] sm:$0xf] %vm859, %v848
        %867 = vst.msk [vmem:[#allocation4 + $0x38] sm:$0xf] %vm859, %v850
        %v868 = vld [vmem:[%s392 + $0x4] sm:$0x8]
        %v869 = vld [vmem:[%s392 + $0x8] sm:$0xf]
        %v870 = vld [vmem:[%s392 + $0x14] sm:$0x8]
        %v871 = vld [vmem:[%s392 + $0x18] sm:$0xf]
        %v872 = vld [vmem:[%s392 + $0x24] sm:$0x8]
        %v873 = vld [vmem:[%s392 + $0x28] sm:$0xf]
        %v874 = vld [vmem:[%s392 + $0x34] sm:$0x8]
        %v875 = vld [vmem:[%s392 + $0x38] sm:$0xf]
        %v876 = vld [vmem:[%s392 + $0x44] sm:$0x8]
        %v877 = vld [vmem:[%s392 + $0x48] sm:$0xf]
        %v878 = vld [vmem:[%s392 + $0x54] sm:$0x8]
        %v879 = vld [vmem:[%s392 + $0x58] sm:$0xf]
        %v880 = vld [vmem:[%s392 + $0x64] sm:$0x8]
        %v881 = vld [vmem:[%s392 + $0x68] sm:$0xf]
        %v882 = vld [vmem:[%s392 + $0x74] sm:$0x8]
        %v883 = vld [vmem:[%s392 + $0x78] sm:$0xf]
        %v885 = vshrl.u32 %v868, 16
        %v887 = vrot.slane %v885, 7
        %v888 = vrot.slane %v887, 4
        %v890 = vshrl.u32 %v869, 16
        %v892 = vrot.slane %v890, 7
        %v893 = vshll.u32 %v869, 16
        %v895 = vor.u32 %v892, %v893
        %v896 = vsel %vm534, %v888, %v895
        %v898 = vshrl.u32 %v870, 16
        %v900 = vrot.slane %v898, 7
        %v901 = vrot.slane %v900, 4
        %v903 = vshrl.u32 %v871, 16
        %v905 = vrot.slane %v903, 7
        %v906 = vshll.u32 %v871, 16
        %v908 = vor.u32 %v905, %v906
        %v909 = vsel %vm534, %v901, %v908
        %v911 = vshrl.u32 %v872, 16
        %v913 = vrot.slane %v911, 7
        %v914 = vrot.slane %v913, 4
        %v916 = vshrl.u32 %v873, 16
        %v918 = vrot.slane %v916, 7
        %v919 = vshll.u32 %v873, 16
        %v921 = vor.u32 %v918, %v919
        %v922 = vsel %vm534, %v914, %v921
        %v924 = vshrl.u32 %v874, 16
        %v926 = vrot.slane %v924, 7
        %v927 = vrot.slane %v926, 4
        %v929 = vshrl.u32 %v875, 16
        %v931 = vrot.slane %v929, 7
        %v932 = vshll.u32 %v875, 16
        %v934 = vor.u32 %v931, %v932
        %v935 = vsel %vm534, %v927, %v934
        %v937 = vshrl.u32 %v876, 16
        %v939 = vrot.slane %v937, 7
        %v940 = vrot.slane %v939, 4
        %v942 = vshrl.u32 %v877, 16
        %v944 = vrot.slane %v942, 7
        %v945 = vshll.u32 %v877, 16
        %v947 = vor.u32 %v944, %v945
        %v948 = vsel %vm534, %v940, %v947
        %v950 = vshrl.u32 %v878, 16
        %v952 = vrot.slane %v950, 7
        %v953 = vrot.slane %v952, 4
        %v955 = vshrl.u32 %v879, 16
        %v957 = vrot.slane %v955, 7
        %v958 = vshll.u32 %v879, 16
        %v960 = vor.u32 %v957, %v958
        %v961 = vsel %vm534, %v953, %v960
        %v963 = vshrl.u32 %v880, 16
        %v965 = vrot.slane %v963, 7
        %v966 = vrot.slane %v965, 4
        %v968 = vshrl.u32 %v881, 16
        %v970 = vrot.slane %v968, 7
        %v971 = vshll.u32 %v881, 16
        %v973 = vor.u32 %v970, %v971
        %v974 = vsel %vm534, %v966, %v973
        %v976 = vshrl.u32 %v882, 16
        %v978 = vrot.slane %v976, 7
        %v979 = vrot.slane %v978, 4
        %v981 = vshrl.u32 %v883, 16
        %v983 = vrot.slane %v981, 7
        %v984 = vshll.u32 %v883, 16
        %v986 = vor.u32 %v983, %v984
        %v987 = vsel %vm534, %v979, %v986
        %988 = vrot.lane.b32.xlu0 %v896, 48
        %v989 = vpop.permute.xlu0 %988
        %990 = vrot.lane.b32.xlu0 %v909, 48
        %v991 = vpop.permute.xlu0 %990
        %992 = vrot.lane.b32.xlu0 %v922, 48
        %v993 = vpop.permute.xlu0 %992
        %994 = vrot.lane.b32.xlu0 %v935, 48
        %v995 = vpop.permute.xlu0 %994
        %996 = vrot.lane.b32.xlu0 %v948, 48
        %v997 = vpop.permute.xlu0 %996
        %998 = vrot.lane.b32.xlu0 %v961, 48
        %v999 = vpop.permute.xlu0 %998
        %1000 = vrot.lane.b32.xlu0 %v974, 48
        %v1001 = vpop.permute.xlu0 %1000
        %1002 = vrot.lane.b32.xlu0 %v987, 48
        %v1003 = vpop.permute.xlu0 %1002
        %vm1012 = vcmask 519552
        %1013 = vst.msk [vmem:[#allocation4] sm:$0xf] %vm1012, %v989
        %1014 = vst.msk [vmem:[#allocation4 + $0x8] sm:$0xf] %vm1012, %v991
        %1015 = vst.msk [vmem:[#allocation4 + $0x10] sm:$0xf] %vm1012, %v993
        %1016 = vst.msk [vmem:[#allocation4 + $0x18] sm:$0xf] %vm1012, %v995
        %1017 = vst.msk [vmem:[#allocation4 + $0x20] sm:$0xf] %vm1012, %v997
        %1018 = vst.msk [vmem:[#allocation4 + $0x28] sm:$0xf] %vm1012, %v999
        %1019 = vst.msk [vmem:[#allocation4 + $0x30] sm:$0xf] %vm1012, %v1001
        %1020 = vst.msk [vmem:[#allocation4 + $0x38] sm:$0xf] %vm1012, %v1003
        %v1021 = vld [vmem:[%s392 + $0x8] sm:$0xf]
        %v1022 = vld [vmem:[%s392 + $0x18] sm:$0xf]
        %v1023 = vld [vmem:[%s392 + $0x28] sm:$0xf]
        %v1024 = vld [vmem:[%s392 + $0x38] sm:$0xf]
        %v1025 = vld [vmem:[%s392 + $0x48] sm:$0xf]
        %v1026 = vld [vmem:[%s392 + $0x58] sm:$0xf]
        %v1027 = vld [vmem:[%s392 + $0x68] sm:$0xf]
        %v1028 = vld [vmem:[%s392 + $0x78] sm:$0xf]
        %1037 = vrot.lane.b32.xlu0 %v1021, 64
        %v1038 = vpop.permute.xlu0 %1037
        %1039 = vrot.lane.b32.xlu0 %v1022, 64
        %v1040 = vpop.permute.xlu0 %1039
        %1041 = vrot.lane.b32.xlu0 %v1023, 64
        %v1042 = vpop.permute.xlu0 %1041
        %1043 = vrot.lane.b32.xlu0 %v1024, 64
        %v1044 = vpop.permute.xlu0 %1043
        %1045 = vrot.lane.b32.xlu0 %v1025, 64
        %v1046 = vpop.permute.xlu0 %1045
        %1047 = vrot.lane.b32.xlu0 %v1026, 64
        %v1048 = vpop.permute.xlu0 %1047
        %1049 = vrot.lane.b32.xlu0 %v1027, 64
        %v1050 = vpop.permute.xlu0 %1049
        %1051 = vrot.lane.b32.xlu0 %v1028, 64
        %v1052 = vpop.permute.xlu0 %1051
        %vm1061 = vcmask 650752
        %1062 = vst.msk [vmem:[#allocation4] sm:$0xf] %vm1061, %v1038
        %1063 = vst.msk [vmem:[#allocation4 + $0x8] sm:$0xf] %vm1061, %v1040
        %1064 = vst.msk [vmem:[#allocation4 + $0x10] sm:$0xf] %vm1061, %v1042
        %1065 = vst.msk [vmem:[#allocation4 + $0x18] sm:$0xf] %vm1061, %v1044
        %1066 = vst.msk [vmem:[#allocation4 + $0x20] sm:$0xf] %vm1061, %v1046
        %1067 = vst.msk [vmem:[#allocation4 + $0x28] sm:$0xf] %vm1061, %v1048
        %1068 = vst.msk [vmem:[#allocation4 + $0x30] sm:$0xf] %vm1061, %v1050
        %1069 = vst.msk [vmem:[#allocation4 + $0x38] sm:$0xf] %vm1061, %v1052
        %v1070 = vld [vmem:[%s392 + $0x8] sm:$0xf]
        %v1071 = vld [vmem:[%s392 + $0xc] sm:$0x1]
        %v1072 = vld [vmem:[%s392 + $0x18] sm:$0xf]
        %v1073 = vld [vmem:[%s392 + $0x1c] sm:$0x1]
        %v1074 = vld [vmem:[%s392 + $0x28] sm:$0xf]
        %v1075 = vld [vmem:[%s392 + $0x2c] sm:$0x1]
        %v1076 = vld [vmem:[%s392 + $0x38] sm:$0xf]
        %v1077 = vld [vmem:[%s392 + $0x3c] sm:$0x1]
        %v1078 = vld [vmem:[%s392 + $0x48] sm:$0xf]
        %v1079 = vld [vmem:[%s392 + $0x4c] sm:$0x1]
        %v1080 = vld [vmem:[%s392 + $0x58] sm:$0xf]
        %v1081 = vld [vmem:[%s392 + $0x5c] sm:$0x1]
        %v1082 = vld [vmem:[%s392 + $0x68] sm:$0xf]
        %v1083 = vld [vmem:[%s392 + $0x6c] sm:$0x1]
        %v1084 = vld [vmem:[%s392 + $0x78] sm:$0xf]
        %v1085 = vld [vmem:[%s392 + $0x7c] sm:$0x1]
        %v1087 = vshrl.u32 %v1070, 16
        %v1089 = vrot.slane %v1087, 4
        %v1090 = vshll.u32 %v1070, 16
        %v1092 = vrot.slane %v1090, 5
        %v1093 = vor.u32 %v1089, %v1092
        %v1094 = vrot.slane %v1093, 4
        %v1096 = vshll.u32 %v1071, 16
        %v1098 = vrot.slane %v1096, 5
        %v1099 = vsel %vm722, %v1094, %v1098
        %v1101 = vshrl.u32 %v1072, 16
        %v1103 = vrot.slane %v1101, 4
        %v1104 = vshll.u32 %v1072, 16
        %v1106 = vrot.slane %v1104, 5
        %v1107 = vor.u32 %v1103, %v1106
        %v1108 = vrot.slane %v1107, 4
        %v1110 = vshll.u32 %v1073, 16
        %v1112 = vrot.slane %v1110, 5
        %v1113 = vsel %vm722, %v1108, %v1112
        %v1115 = vshrl.u32 %v1074, 16
        %v1117 = vrot.slane %v1115, 4
        %v1118 = vshll.u32 %v1074, 16
        %v1120 = vrot.slane %v1118, 5
        %v1121 = vor.u32 %v1117, %v1120
        %v1122 = vrot.slane %v1121, 4
        %v1124 = vshll.u32 %v1075, 16
        %v1126 = vrot.slane %v1124, 5
        %v1127 = vsel %vm722, %v1122, %v1126
        %v1129 = vshrl.u32 %v1076, 16
        %v1131 = vrot.slane %v1129, 4
        %v1132 = vshll.u32 %v1076, 16
        %v1134 = vrot.slane %v1132, 5
        %v1135 = vor.u32 %v1131, %v1134
        %v1136 = vrot.slane %v1135, 4
        %v1138 = vshll.u32 %v1077, 16
        %v1140 = vrot.slane %v1138, 5
        %v1141 = vsel %vm722, %v1136, %v1140
        %v1143 = vshrl.u32 %v1078, 16
        %v1145 = vrot.slane %v1143, 4
        %v1146 = vshll.u32 %v1078, 16
        %v1148 = vrot.slane %v1146, 5
        %v1149 = vor.u32 %v1145, %v1148
        %v1150 = vrot.slane %v1149, 4
        %v1152 = vshll.u32 %v1079, 16
        %v1154 = vrot.slane %v1152, 5
        %v1155 = vsel %vm722, %v1150, %v1154
        %v1157 = vshrl.u32 %v1080, 16
        %v1159 = vrot.slane %v1157, 4
        %v1160 = vshll.u32 %v1080, 16
        %v1162 = vrot.slane %v1160, 5
        %v1163 = vor.u32 %v1159, %v1162
        %v1164 = vrot.slane %v1163, 4
        %v1166 = vshll.u32 %v1081, 16
        %v1168 = vrot.slane %v1166, 5
        %v1169 = vsel %vm722, %v1164, %v1168
        %v1171 = vshrl.u32 %v1082, 16
        %v1173 = vrot.slane %v1171, 4
        %v1174 = vshll.u32 %v1082, 16
        %v1176 = vrot.slane %v1174, 5
        %v1177 = vor.u32 %v1173, %v1176
        %v1178 = vrot.slane %v1177, 4
        %v1180 = vshll.u32 %v1083, 16
        %v1182 = vrot.slane %v1180, 5
        %v1183 = vsel %vm722, %v1178, %v1182
        %v1185 = vshrl.u32 %v1084, 16
        %v1187 = vrot.slane %v1185, 4
        %v1188 = vshll.u32 %v1084, 16
        %v1190 = vrot.slane %v1188, 5
        %v1191 = vor.u32 %v1187, %v1190
        %v1192 = vrot.slane %v1191, 4
        %v1194 = vshll.u32 %v1085, 16
        %v1196 = vrot.slane %v1194, 5
        %v1197 = vsel %vm722, %v1192, %v1196
        %1198 = vrot.lane.b32.xlu0 %v1099, 80
        %v1199 = vpop.permute.xlu0 %1198
        %1200 = vrot.lane.b32.xlu0 %v1113, 80
        %v1201 = vpop.permute.xlu0 %1200
        %1202 = vrot.lane.b32.xlu0 %v1127, 80
        %v1203 = vpop.permute.xlu0 %1202
        %1204 = vrot.lane.b32.xlu0 %v1141, 80
        %v1205 = vpop.permute.xlu0 %1204
        %1206 = vrot.lane.b32.xlu0 %v1155, 80
        %v1207 = vpop.permute.xlu0 %1206
        %1208 = vrot.lane.b32.xlu0 %v1169, 80
        %v1209 = vpop.permute.xlu0 %1208
        %1210 = vrot.lane.b32.xlu0 %v1183, 80
        %v1211 = vpop.permute.xlu0 %1210
        %1212 = vrot.lane.b32.xlu0 %v1197, 80
        %v1213 = vpop.permute.xlu0 %1212
        %vm1222 = vcmask 781952
        %1223 = vst.msk [vmem:[#allocation4] sm:$0xf] %vm1222, %v1199
        %1224 = vst.msk [vmem:[#allocation4 + $0x8] sm:$0xf] %vm1222, %v1201
        %1225 = vst.msk [vmem:[#allocation4 + $0x10] sm:$0xf] %vm1222, %v1203
        %1226 = vst.msk [vmem:[#allocation4 + $0x18] sm:$0xf] %vm1222, %v1205
        %1227 = vst.msk [vmem:[#allocation4 + $0x20] sm:$0xf] %vm1222, %v1207
        %1228 = vst.msk [vmem:[#allocation4 + $0x28] sm:$0xf] %vm1222, %v1209
        %1229 = vst.msk [vmem:[#allocation4 + $0x30] sm:$0xf] %vm1222, %v1211
        %1230 = vst.msk [vmem:[#allocation4 + $0x38] sm:$0xf] %vm1222, %v1213
        %s1231 = scalar_lea.vmem [#allocation2], 32
        %v1232 = vld [vmem:[%s1231 + $0x4] sm:$0x8]
        %v1233 = vld [vmem:[%s1231 + $0x8] sm:$0xf]
        %v1234 = vld [vmem:[%s1231 + $0x14] sm:$0x8]
        %v1235 = vld [vmem:[%s1231 + $0x18] sm:$0xf]
        %v1236 = vld [vmem:[%s1231 + $0x24] sm:$0x8]
        %v1237 = vld [vmem:[%s1231 + $0x28] sm:$0xf]
        %v1238 = vld [vmem:[%s1231 + $0x34] sm:$0x8]
        %v1239 = vld [vmem:[%s1231 + $0x38] sm:$0xf]
        %v1240 = vld [vmem:[%s1231 + $0x44] sm:$0x8]
        %v1241 = vld [vmem:[%s1231 + $0x48] sm:$0xf]
        %v1242 = vld [vmem:[%s1231 + $0x54] sm:$0x8]
        %v1243 = vld [vmem:[%s1231 + $0x58] sm:$0xf]
        %v1244 = vld [vmem:[%s1231 + $0x64] sm:$0x8]
        %v1245 = vld [vmem:[%s1231 + $0x68] sm:$0xf]
        %v1246 = vld [vmem:[%s1231 + $0x74] sm:$0x8]
        %v1247 = vld [vmem:[%s1231 + $0x78] sm:$0xf]
        %v1249 = vshrl.u32 %v1232, 16
        %v1251 = vrot.slane %v1249, 7
        %v1252 = vrot.slane %v1251, 4
        %v1254 = vshrl.u32 %v1233, 16
        %v1256 = vrot.slane %v1254, 7
        %v1257 = vshll.u32 %v1233, 16
        %v1259 = vor.u32 %v1256, %v1257
        %v1260 = vsel %vm534, %v1252, %v1259
        %v1262 = vshrl.u32 %v1234, 16
        %v1264 = vrot.slane %v1262, 7
        %v1265 = vrot.slane %v1264, 4
        %v1267 = vshrl.u32 %v1235, 16
        %v1269 = vrot.slane %v1267, 7
        %v1270 = vshll.u32 %v1235, 16
        %v1272 = vor.u32 %v1269, %v1270
        %v1273 = vsel %vm534, %v1265, %v1272
        %v1275 = vshrl.u32 %v1236, 16
        %v1277 = vrot.slane %v1275, 7
        %v1278 = vrot.slane %v1277, 4
        %v1280 = vshrl.u32 %v1237, 16
        %v1282 = vrot.slane %v1280, 7
        %v1283 = vshll.u32 %v1237, 16
        %v1285 = vor.u32 %v1282, %v1283
        %v1286 = vsel %vm534, %v1278, %v1285
        %v1288 = vshrl.u32 %v1238, 16
        %v1290 = vrot.slane %v1288, 7
        %v1291 = vrot.slane %v1290, 4
        %v1293 = vshrl.u32 %v1239, 16
        %v1295 = vrot.slane %v1293, 7
        %v1296 = vshll.u32 %v1239, 16
        %v1298 = vor.u32 %v1295, %v1296
        %v1299 = vsel %vm534, %v1291, %v1298
        %v1301 = vshrl.u32 %v1240, 16
        %v1303 = vrot.slane %v1301, 7
        %v1304 = vrot.slane %v1303, 4
        %v1306 = vshrl.u32 %v1241, 16
        %v1308 = vrot.slane %v1306, 7
        %v1309 = vshll.u32 %v1241, 16
        %v1311 = vor.u32 %v1308, %v1309
        %v1312 = vsel %vm534, %v1304, %v1311
        %v1314 = vshrl.u32 %v1242, 16
        %v1316 = vrot.slane %v1314, 7
        %v1317 = vrot.slane %v1316, 4
        %v1319 = vshrl.u32 %v1243, 16
        %v1321 = vrot.slane %v1319, 7
        %v1322 = vshll.u32 %v1243, 16
        %v1324 = vor.u32 %v1321, %v1322
        %v1325 = vsel %vm534, %v1317, %v1324
        %v1327 = vshrl.u32 %v1244, 16
        %v1329 = vrot.slane %v1327, 7
        %v1330 = vrot.slane %v1329, 4
        %v1332 = vshrl.u32 %v1245, 16
        %v1334 = vrot.slane %v1332, 7
        %v1335 = vshll.u32 %v1245, 16
        %v1337 = vor.u32 %v1334, %v1335
        %v1338 = vsel %vm534, %v1330, %v1337
        %v1340 = vshrl.u32 %v1246, 16
        %v1342 = vrot.slane %v1340, 7
        %v1343 = vrot.slane %v1342, 4
        %v1345 = vshrl.u32 %v1247, 16
        %v1347 = vrot.slane %v1345, 7
        %v1348 = vshll.u32 %v1247, 16
        %v1350 = vor.u32 %v1347, %v1348
        %v1351 = vsel %vm534, %v1343, %v1350
        %1352 = vrot.lane.b32.xlu0 %v1260, 96
        %v1353 = vpop.permute.xlu0 %1352
        %1354 = vrot.lane.b32.xlu0 %v1273, 96
        %v1355 = vpop.permute.xlu0 %1354
        %1356 = vrot.lane.b32.xlu0 %v1286, 96
        %v1357 = vpop.permute.xlu0 %1356
        %1358 = vrot.lane.b32.xlu0 %v1299, 96
        %v1359 = vpop.permute.xlu0 %1358
        %1360 = vrot.lane.b32.xlu0 %v1312, 96
        %v1361 = vpop.permute.xlu0 %1360
        %1362 = vrot.lane.b32.xlu0 %v1325, 96
        %v1363 = vpop.permute.xlu0 %1362
        %1364 = vrot.lane.b32.xlu0 %v1338, 96
        %v1365 = vpop.permute.xlu0 %1364
        %1366 = vrot.lane.b32.xlu0 %v1351, 96
        %v1367 = vpop.permute.xlu0 %1366
        %vm1376 = vcmask 913152
        %1377 = vst.msk [vmem:[#allocation4] sm:$0xf] %vm1376, %v1353
        %1378 = vst.msk [vmem:[#allocation4 + $0x8] sm:$0xf] %vm1376, %v1355
        %1379 = vst.msk [vmem:[#allocation4 + $0x10] sm:$0xf] %vm1376, %v1357
        %1380 = vst.msk [vmem:[#allocation4 + $0x18] sm:$0xf] %vm1376, %v1359
        %1381 = vst.msk [vmem:[#allocation4 + $0x20] sm:$0xf] %vm1376, %v1361
        %1382 = vst.msk [vmem:[#allocation4 + $0x28] sm:$0xf] %vm1376, %v1363
        %1383 = vst.msk [vmem:[#allocation4 + $0x30] sm:$0xf] %vm1376, %v1365
        %1384 = vst.msk [vmem:[#allocation4 + $0x38] sm:$0xf] %vm1376, %v1367
        %v1385 = vld [vmem:[%s1231 + $0x8] sm:$0xf]
        %v1386 = vld [vmem:[%s1231 + $0x18] sm:$0xf]
        %v1387 = vld [vmem:[%s1231 + $0x28] sm:$0xf]
        %v1388 = vld [vmem:[%s1231 + $0x38] sm:$0xf]
        %v1389 = vld [vmem:[%s1231 + $0x48] sm:$0xf]
        %v1390 = vld [vmem:[%s1231 + $0x58] sm:$0xf]
        %v1391 = vld [vmem:[%s1231 + $0x68] sm:$0xf]
        %v1392 = vld [vmem:[%s1231 + $0x78] sm:$0xf]
        %1401 = vrot.lane.b32.xlu0 %v1385, 112
        %v1402 = vpop.permute.xlu0 %1401
        %1403 = vrot.lane.b32.xlu0 %v1386, 112
        %v1404 = vpop.permute.xlu0 %1403
        %1405 = vrot.lane.b32.xlu0 %v1387, 112
        %v1406 = vpop.permute.xlu0 %1405
        %1407 = vrot.lane.b32.xlu0 %v1388, 112
        %v1408 = vpop.permute.xlu0 %1407
        %1409 = vrot.lane.b32.xlu0 %v1389, 112
        %v1410 = vpop.permute.xlu0 %1409
        %1411 = vrot.lane.b32.xlu0 %v1390, 112
        %v1412 = vpop.permute.xlu0 %1411
        %1413 = vrot.lane.b32.xlu0 %v1391, 112
        %v1414 = vpop.permute.xlu0 %1413
        %1415 = vrot.lane.b32.xlu0 %v1392, 112
        %v1416 = vpop.permute.xlu0 %1415
        %vm1425 = vcmask 1044352
        %1426 = vst.msk [vmem:[#allocation4] sm:$0xf] %vm1425, %v1402
        %1427 = vst.msk [vmem:[#allocation4 + $0x8] sm:$0xf] %vm1425, %v1404
        %1428 = vst.msk [vmem:[#allocation4 + $0x10] sm:$0xf] %vm1425, %v1406
        %1429 = vst.msk [vmem:[#allocation4 + $0x18] sm:$0xf] %vm1425, %v1408
        %1430 = vst.msk [vmem:[#allocation4 + $0x20] sm:$0xf] %vm1425, %v1410
        %1431 = vst.msk [vmem:[#allocation4 + $0x28] sm:$0xf] %vm1425, %v1412
        %1432 = vst.msk [vmem:[#allocation4 + $0x30] sm:$0xf] %vm1425, %v1414
        %1433 = vst.msk [vmem:[#allocation4 + $0x38] sm:$0xf] %vm1425, %v1416
        %v1434 = vld [vmem:[%s1231 + $0x8] sm:$0xf]
        %v1435 = vld [vmem:[%s1231 + $0xc] sm:$0x1]
        %v1436 = vld [vmem:[%s1231 + $0x18] sm:$0xf]
        %v1437 = vld [vmem:[%s1231 + $0x1c] sm:$0x1]
        %v1438 = vld [vmem:[%s1231 + $0x28] sm:$0xf]
        %v1439 = vld [vmem:[%s1231 + $0x2c] sm:$0x1]
        %v1440 = vld [vmem:[%s1231 + $0x38] sm:$0xf]
        %v1441 = vld [vmem:[%s1231 + $0x3c] sm:$0x1]
        %v1442 = vld [vmem:[%s1231 + $0x48] sm:$0xf]
        %v1443 = vld [vmem:[%s1231 + $0x4c] sm:$0x1]
        %v1444 = vld [vmem:[%s1231 + $0x58] sm:$0xf]
        %v1445 = vld [vmem:[%s1231 + $0x5c] sm:$0x1]
        %v1446 = vld [vmem:[%s1231 + $0x68] sm:$0xf]
        %v1447 = vld [vmem:[%s1231 + $0x6c] sm:$0x1]
        %v1448 = vld [vmem:[%s1231 + $0x78] sm:$0xf]
        %v1449 = vld [vmem:[%s1231 + $0x7c] sm:$0x1]
        %v1451 = vshrl.u32 %v1434, 16
        %v1453 = vrot.slane %v1451, 4
        %v1454 = vshll.u32 %v1434, 16
        %v1456 = vrot.slane %v1454, 5
        %v1457 = vor.u32 %v1453, %v1456
        %v1458 = vrot.slane %v1457, 4
        %v1460 = vshll.u32 %v1435, 16
        %v1462 = vrot.slane %v1460, 5
        %v1463 = vsel %vm722, %v1458, %v1462
        %v1465 = vshrl.u32 %v1436, 16
        %v1467 = vrot.slane %v1465, 4
        %v1468 = vshll.u32 %v1436, 16
        %v1470 = vrot.slane %v1468, 5
        %v1471 = vor.u32 %v1467, %v1470
        %v1472 = vrot.slane %v1471, 4
        %v1474 = vshll.u32 %v1437, 16
        %v1476 = vrot.slane %v1474, 5
        %v1477 = vsel %vm722, %v1472, %v1476
        %v1479 = vshrl.u32 %v1438, 16
        %v1481 = vrot.slane %v1479, 4
        %v1482 = vshll.u32 %v1438, 16
        %v1484 = vrot.slane %v1482, 5
        %v1485 = vor.u32 %v1481, %v1484
        %v1486 = vrot.slane %v1485, 4
        %v1488 = vshll.u32 %v1439, 16
        %v1490 = vrot.slane %v1488, 5
        %v1491 = vsel %vm722, %v1486, %v1490
        %v1493 = vshrl.u32 %v1440, 16
        %v1495 = vrot.slane %v1493, 4
        %v1496 = vshll.u32 %v1440, 16
        %v1498 = vrot.slane %v1496, 5
        %v1499 = vor.u32 %v1495, %v1498
        %v1500 = vrot.slane %v1499, 4
        %v1502 = vshll.u32 %v1441, 16
        %v1504 = vrot.slane %v1502, 5
        %v1505 = vsel %vm722, %v1500, %v1504
        %v1507 = vshrl.u32 %v1442, 16
        %v1509 = vrot.slane %v1507, 4
        %v1510 = vshll.u32 %v1442, 16
        %v1512 = vrot.slane %v1510, 5
        %v1513 = vor.u32 %v1509, %v1512
        %v1514 = vrot.slane %v1513, 4
        %v1516 = vshll.u32 %v1443, 16
        %v1518 = vrot.slane %v1516, 5
        %v1519 = vsel %vm722, %v1514, %v1518
        %v1521 = vshrl.u32 %v1444, 16
        %v1523 = vrot.slane %v1521, 4
        %v1524 = vshll.u32 %v1444, 16
        %v1526 = vrot.slane %v1524, 5
        %v1527 = vor.u32 %v1523, %v1526
        %v1528 = vrot.slane %v1527, 4
        %v1530 = vshll.u32 %v1445, 16
        %v1532 = vrot.slane %v1530, 5
        %v1533 = vsel %vm722, %v1528, %v1532
        %v1535 = vshrl.u32 %v1446, 16
        %v1537 = vrot.slane %v1535, 4
        %v1538 = vshll.u32 %v1446, 16
        %v1540 = vrot.slane %v1538, 5
        %v1541 = vor.u32 %v1537, %v1540
        %v1542 = vrot.slane %v1541, 4
        %v1544 = vshll.u32 %v1447, 16
        %v1546 = vrot.slane %v1544, 5
        %v1547 = vsel %vm722, %v1542, %v1546
        %v1549 = vshrl.u32 %v1448, 16
        %v1551 = vrot.slane %v1549, 4
        %v1552 = vshll.u32 %v1448, 16
        %v1554 = vrot.slane %v1552, 5
        %v1555 = vor.u32 %v1551, %v1554
        %v1556 = vrot.slane %v1555, 4
        %v1558 = vshll.u32 %v1449, 16
        %v1560 = vrot.slane %v1558, 5
        %v1561 = vsel %vm722, %v1556, %v1560
        %1570 = vst.msk [vmem:[#allocation4 + $0x4] sm:$0xf] %vm375, %v1463
        %1571 = vst.msk [vmem:[#allocation4 + $0xc] sm:$0xf] %vm375, %v1477
        %1572 = vst.msk [vmem:[#allocation4 + $0x14] sm:$0xf] %vm375, %v1491
        %1573 = vst.msk [vmem:[#allocation4 + $0x1c] sm:$0xf] %vm375, %v1505
        %1574 = vst.msk [vmem:[#allocation4 + $0x24] sm:$0xf] %vm375, %v1519
        %1575 = vst.msk [vmem:[#allocation4 + $0x2c] sm:$0xf] %vm375, %v1533
        %1576 = vst.msk [vmem:[#allocation4 + $0x34] sm:$0xf] %vm375, %v1547
        %1577 = vst.msk [vmem:[#allocation4 + $0x3c] sm:$0xf] %vm375, %v1561
        %v1578 = vld [vmem:[#allocation4] sm:$0xff]
        %v1579 = vld [vmem:[#allocation4 + $0x8] sm:$0xff]
        %v1580 = vld [vmem:[#allocation4 + $0x10] sm:$0xff]
        %v1581 = vld [vmem:[#allocation4 + $0x18] sm:$0xff]
        %v1582 = vld [vmem:[#allocation4 + $0x20] sm:$0xff]
        %v1583 = vld [vmem:[#allocation4 + $0x28] sm:$0xff]
        %v1584 = vld [vmem:[#allocation4 + $0x30] sm:$0xff]
        %v1585 = vld [vmem:[#allocation4 + $0x38] sm:$0xff]
        %v1586 = vld [vmem:[%s1] sm:$0xf]
        %v1587 = vld [vmem:[%s1 + $0x4] sm:$0xf]
        %v1588 = vld [vmem:[%s1 + $0x8] sm:$0xf]
        %v1589 = vld [vmem:[%s1 + $0xc] sm:$0xf]
        %v1590 = vld [vmem:[%s1 + $0x10] sm:$0xf]
        %v1591 = vld [vmem:[%s1 + $0x14] sm:$0xf]
        %v1592 = vld [vmem:[%s1 + $0x18] sm:$0xf]
        %v1593 = vld [vmem:[%s1 + $0x1c] sm:$0xf]
        %v1594 = vld [vmem:[%s1 + $0x20] sm:$0xf]
        %v1595 = vld [vmem:[%s1 + $0x24] sm:$0xf]
        %v1596 = vld [vmem:[%s1 + $0x28] sm:$0xf]
        %v1597 = vld [vmem:[%s1 + $0x2c] sm:$0xf]
        %v1598 = vld [vmem:[%s1 + $0x30] sm:$0xf]
        %v1599 = vld [vmem:[%s1 + $0x34] sm:$0xf]
        %v1600 = vld [vmem:[%s1 + $0x38] sm:$0xf]
        %v1601 = vld [vmem:[%s1 + $0x3c] sm:$0xf]
        %v1602 = vld [vmem:[%s1 + $0x40] sm:$0xf]
        %v1603 = vld [vmem:[%s1 + $0x44] sm:$0xf]
        %v1612 = vunpack.c.l.b16 %v1578
        %v1613 = vunpack.c.h.b16 %v1578
        %v1614 = vunpack.c.l.b16 %v1579
        %v1615 = vunpack.c.h.b16 %v1579
        %v1616 = vunpack.c.l.b16 %v1580
        %v1617 = vunpack.c.h.b16 %v1580
        %v1618 = vunpack.c.l.b16 %v1581
        %v1619 = vunpack.c.h.b16 %v1581
        %v1620 = vunpack.c.l.b16 %v1582
        %v1621 = vunpack.c.h.b16 %v1582
        %v1622 = vunpack.c.l.b16 %v1583
        %v1623 = vunpack.c.h.b16 %v1583
        %v1624 = vunpack.c.l.b16 %v1584
        %v1625 = vunpack.c.h.b16 %v1584
        %v1626 = vunpack.c.l.b16 %v1585
        %v1627 = vunpack.c.h.b16 %v1585
        %v1628 = vpack.c.b16 %v1614, %v1612
        %v1629 = vpack.c.b16 %v1615, %v1613
        %v1630 = vpack.c.b16 %v1618, %v1616
        %v1631 = vpack.c.b16 %v1619, %v1617
        %v1632 = vpack.c.b16 %v1622, %v1620
        %v1633 = vpack.c.b16 %v1623, %v1621
        %v1634 = vpack.c.b16 %v1626, %v1624
        %v1635 = vpack.c.b16 %v1627, %v1625
        %v1658 = vunpack.c.l.b16 %v1586
        %v1659 = vunpack.c.l.b16 %v1587
        %v1660 = vunpack.c.l.b16 %v1588
        %v1661 = vunpack.c.l.b16 %v1589
        %v1662 = vunpack.c.l.b16 %v1590
        %v1663 = vunpack.c.l.b16 %v1591
        %v1664 = vunpack.c.l.b16 %v1592
        %v1665 = vunpack.c.l.b16 %v1593
        %v1666 = vunpack.c.l.b16 %v1594
        %v1667 = vunpack.c.l.b16 %v1595
        %v1668 = vunpack.c.l.b16 %v1596
        %v1669 = vunpack.c.l.b16 %v1597
        %v1670 = vunpack.c.l.b16 %v1598
        %v1671 = vunpack.c.l.b16 %v1599
        %v1672 = vunpack.c.l.b16 %v1600
        %v1673 = vunpack.c.l.b16 %v1601
        %v1674 = vunpack.c.l.b16 %v1602
        %v1675 = vunpack.c.l.b16 %v1603
        %v1676 = vpack.c.b16 %v1659, %v1658
        %v1677 = vpack.c.b16 %v1661, %v1660
        %v1678 = vpack.c.b16 %v1663, %v1662
        %v1679 = vpack.c.b16 %v1665, %v1664
        %v1680 = vpack.c.b16 %v1667, %v1666
        %v1681 = vpack.c.b16 %v1669, %v1668
        %v1682 = vpack.c.b16 %v1671, %v1670
        %v1683 = vpack.c.b16 %v1673, %v1672
        %v1684 = vpack.c.b16 %v1675, %v1674
        %v1695 = vsel %vm493, %v1629, 0
        %v1698 = vsel %vm493, %v1631, 0
        %v1701 = vsel %vm493, %v1633, 0
        %v1704 = vsel %vm493, %v1635, 0
        %1706 = vmatpush.bf16.msra.mxu0 %v1683
        %1707 = vmatpush.bf16.msra.mxu0 %v1682
        %1708 = vmatpush.bf16.msra.mxu0 %v1681
        %1709 = vmatpush.bf16.msra.mxu0 %v1680
        %1710 = vmatpush.bf16.msra.mxu0 %v1679
        %1711 = vmatpush.bf16.msra.mxu0 %v1678
        %1712 = vmatpush.bf16.msra.mxu0 %v1677
        %1713 = vmatpush.bf16.msra.mxu0 %v1676
        %1714 = vmatmul.bf16.gmra.mxu0 %v1628
        %v1715 = vpop.f32.mrf.mxu0
        %v1716 = vadd.f32 0.0, %v1715
        %v1717 = vpop.f32.mrf.mxu0
        %v1718 = vadd.f32 0.0, %v1717
        %1719 = vmatmul.bf16.gmra.mxu0 %v1630
        %v1720 = vpop.f32.mrf.mxu0
        %v1721 = vadd.f32 0.0, %v1720
        %v1722 = vpop.f32.mrf.mxu0
        %v1723 = vadd.f32 0.0, %v1722
        %1724 = vmatmul.bf16.gmra.mxu0 %v1632
        %v1725 = vpop.f32.mrf.mxu0
        %v1726 = vadd.f32 0.0, %v1725
        %v1727 = vpop.f32.mrf.mxu0
        %v1728 = vadd.f32 0.0, %v1727
        %1729 = vmatmul.bf16.gmra.mxu0 %v1634
        %v1730 = vpop.f32.mrf.mxu0
        %v1731 = vadd.f32 0.0, %v1730
        %v1732 = vpop.f32.mrf.mxu0
        %v1733 = vadd.f32 0.0, %v1732
        %1734 = vdwg.mxu0
        %1735 = vmatpush.bf16.msra.mxu0 0
        %1736 = vmatpush.bf16.msra.mxu0 0
        %1737 = vmatpush.bf16.msra.mxu0 0
        %1738 = vmatpush.bf16.msra.mxu0 0
        %1739 = vmatpush.bf16.msra.mxu0 0
        %1740 = vmatpush.bf16.msra.mxu0 0
        %1741 = vmatpush.bf16.msra.mxu0 0
        %1742 = vmatpush.bf16.msra.mxu0 %v1684
        %1743 = vmatmul.bf16.gmra.mxu0 %v1695
        %v1744 = vpop.f32.mrf.mxu0
        %v1745 = vadd.f32 %v1716, %v1744
        %v1746 = vpop.f32.mrf.mxu0
        %v1747 = vadd.f32 %v1718, %v1746
        %1748 = vmatmul.bf16.gmra.mxu0 %v1698
        %v1749 = vpop.f32.mrf.mxu0
        %v1750 = vadd.f32 %v1721, %v1749
        %v1751 = vpop.f32.mrf.mxu0
        %v1752 = vadd.f32 %v1723, %v1751
        %1753 = vmatmul.bf16.gmra.mxu0 %v1701
        %v1754 = vpop.f32.mrf.mxu0
        %v1755 = vadd.f32 %v1726, %v1754
        %v1756 = vpop.f32.mrf.mxu0
        %v1757 = vadd.f32 %v1728, %v1756
        %1758 = vmatmul.bf16.gmra.mxu0 %v1704
        %v1759 = vpop.f32.mrf.mxu0
        %v1760 = vadd.f32 %v1731, %v1759
        %v1761 = vpop.f32.mrf.mxu0
        %v1762 = vadd.f32 %v1733, %v1761
        %1763 = vdwg.mxu0
        %v1764 = vmax.f32 %v1745, 0.0
        %v1765 = vmax.f32 %v1747, 0.0
        %v1766 = vmax.f32 %v1750, 0.0
        %v1767 = vmax.f32 %v1752, 0.0
        %v1768 = vmax.f32 %v1755, 0.0
        %v1769 = vmax.f32 %v1757, 0.0
        %v1770 = vmax.f32 %v1760, 0.0
        %v1771 = vmax.f32 %v1762, 0.0
        %v1772 = vpack.c.bf16 %v1764, %v1764
        %v1773 = vpack.c.bf16 %v1765, %v1765
        %v1774 = vpack.c.bf16 %v1766, %v1766
        %v1775 = vpack.c.bf16 %v1767, %v1767
        %v1776 = vpack.c.bf16 %v1768, %v1768
        %v1777 = vpack.c.bf16 %v1769, %v1769
        %v1778 = vpack.c.bf16 %v1770, %v1770
        %v1779 = vpack.c.bf16 %v1771, %v1771
        %1780 = vst.msk [vmem:[%s449 + $0x8] sm:$0xf] %vm433, %v1772
        %1781 = vst.msk [vmem:[%s449 + $0x18] sm:$0xf] %vm433, %v1773
        %1782 = vst.msk [vmem:[%s449 + $0x28] sm:$0xf] %vm433, %v1774
        %1783 = vst.msk [vmem:[%s449 + $0x38] sm:$0xf] %vm433, %v1775
        %1784 = vst.msk [vmem:[%s449 + $0x48] sm:$0xf] %vm433, %v1776
        %1785 = vst.msk [vmem:[%s449 + $0x58] sm:$0xf] %vm433, %v1777
        %1786 = vst.msk [vmem:[%s449 + $0x68] sm:$0xf] %vm433, %v1778
        %1787 = vst.msk [vmem:[%s449 + $0x78] sm:$0xf] %vm433, %v1779
        %v1788 = vld [vmem:[#allocation3 + $0x4] sm:$0x8]
        %v1789 = vld [vmem:[#allocation3 + $0x8] sm:$0xf]
        %v1790 = vld [vmem:[#allocation3 + $0x14] sm:$0x8]
        %v1791 = vld [vmem:[#allocation3 + $0x18] sm:$0xf]
        %v1792 = vld [vmem:[#allocation3 + $0x24] sm:$0x8]
        %v1793 = vld [vmem:[#allocation3 + $0x28] sm:$0xf]
        %v1794 = vld [vmem:[#allocation3 + $0x34] sm:$0x8]
        %v1795 = vld [vmem:[#allocation3 + $0x38] sm:$0xf]
        %v1796 = vld [vmem:[#allocation3 + $0x44] sm:$0x8]
        %v1797 = vld [vmem:[#allocation3 + $0x48] sm:$0xf]
        %v1798 = vld [vmem:[#allocation3 + $0x54] sm:$0x8]
        %v1799 = vld [vmem:[#allocation3 + $0x58] sm:$0xf]
        %v1800 = vld [vmem:[#allocation3 + $0x64] sm:$0x8]
        %v1801 = vld [vmem:[#allocation3 + $0x68] sm:$0xf]
        %v1802 = vld [vmem:[#allocation3 + $0x74] sm:$0x8]
        %v1803 = vld [vmem:[#allocation3 + $0x78] sm:$0xf]
        %v1805 = vshrl.u32 %v1788, 16
        %v1807 = vrot.slane %v1805, 7
        %v1808 = vrot.slane %v1807, 4
        %v1810 = vshrl.u32 %v1789, 16
        %v1812 = vrot.slane %v1810, 7
        %v1813 = vshll.u32 %v1789, 16
        %v1815 = vor.u32 %v1812, %v1813
        %v1816 = vsel %vm534, %v1808, %v1815
        %v1818 = vshrl.u32 %v1790, 16
        %v1820 = vrot.slane %v1818, 7
        %v1821 = vrot.slane %v1820, 4
        %v1823 = vshrl.u32 %v1791, 16
        %v1825 = vrot.slane %v1823, 7
        %v1826 = vshll.u32 %v1791, 16
        %v1828 = vor.u32 %v1825, %v1826
        %v1829 = vsel %vm534, %v1821, %v1828
        %v1831 = vshrl.u32 %v1792, 16
        %v1833 = vrot.slane %v1831, 7
        %v1834 = vrot.slane %v1833, 4
        %v1836 = vshrl.u32 %v1793, 16
        %v1838 = vrot.slane %v1836, 7
        %v1839 = vshll.u32 %v1793, 16
        %v1841 = vor.u32 %v1838, %v1839
        %v1842 = vsel %vm534, %v1834, %v1841
        %v1844 = vshrl.u32 %v1794, 16
        %v1846 = vrot.slane %v1844, 7
        %v1847 = vrot.slane %v1846, 4
        %v1849 = vshrl.u32 %v1795, 16
        %v1851 = vrot.slane %v1849, 7
        %v1852 = vshll.u32 %v1795, 16
        %v1854 = vor.u32 %v1851, %v1852
        %v1855 = vsel %vm534, %v1847, %v1854
        %v1857 = vshrl.u32 %v1796, 16
        %v1859 = vrot.slane %v1857, 7
        %v1860 = vrot.slane %v1859, 4
        %v1862 = vshrl.u32 %v1797, 16
        %v1864 = vrot.slane %v1862, 7
        %v1865 = vshll.u32 %v1797, 16
        %v1867 = vor.u32 %v1864, %v1865
        %v1868 = vsel %vm534, %v1860, %v1867
        %v1870 = vshrl.u32 %v1798, 16
        %v1872 = vrot.slane %v1870, 7
        %v1873 = vrot.slane %v1872, 4
        %v1875 = vshrl.u32 %v1799, 16
        %v1877 = vrot.slane %v1875, 7
        %v1878 = vshll.u32 %v1799, 16
        %v1880 = vor.u32 %v1877, %v1878
        %v1881 = vsel %vm534, %v1873, %v1880
        %v1883 = vshrl.u32 %v1800, 16
        %v1885 = vrot.slane %v1883, 7
        %v1886 = vrot.slane %v1885, 4
        %v1888 = vshrl.u32 %v1801, 16
        %v1890 = vrot.slane %v1888, 7
        %v1891 = vshll.u32 %v1801, 16
        %v1893 = vor.u32 %v1890, %v1891
        %v1894 = vsel %vm534, %v1886, %v1893
        %v1896 = vshrl.u32 %v1802, 16
        %v1898 = vrot.slane %v1896, 7
        %v1899 = vrot.slane %v1898, 4
        %v1901 = vshrl.u32 %v1803, 16
        %v1903 = vrot.slane %v1901, 7
        %v1904 = vshll.u32 %v1803, 16
        %v1906 = vor.u32 %v1903, %v1904
        %v1907 = vsel %vm534, %v1899, %v1906
        %1916 = vst.msk [vmem:[#allocation4] sm:$0xf] %vm433, %v1816
        %1917 = vst.msk [vmem:[#allocation4 + $0x8] sm:$0xf] %vm433, %v1829
        %1918 = vst.msk [vmem:[#allocation4 + $0x10] sm:$0xf] %vm433, %v1842
        %1919 = vst.msk [vmem:[#allocation4 + $0x18] sm:$0xf] %vm433, %v1855
        %1920 = vst.msk [vmem:[#allocation4 + $0x20] sm:$0xf] %vm433, %v1868
        %1921 = vst.msk [vmem:[#allocation4 + $0x28] sm:$0xf] %vm433, %v1881
        %1922 = vst.msk [vmem:[#allocation4 + $0x30] sm:$0xf] %vm433, %v1894
        %1923 = vst.msk [vmem:[#allocation4 + $0x38] sm:$0xf] %vm433, %v1907
        %v1924 = vld [vmem:[#allocation3 + $0x8] sm:$0xf]
        %v1925 = vld [vmem:[#allocation3 + $0x18] sm:$0xf]
        %v1926 = vld [vmem:[#allocation3 + $0x28] sm:$0xf]
        %v1927 = vld [vmem:[#allocation3 + $0x38] sm:$0xf]
        %v1928 = vld [vmem:[#allocation3 + $0x48] sm:$0xf]
        %v1929 = vld [vmem:[#allocation3 + $0x58] sm:$0xf]
        %v1930 = vld [vmem:[#allocation3 + $0x68] sm:$0xf]
        %v1931 = vld [vmem:[#allocation3 + $0x78] sm:$0xf]
        %1940 = vrot.lane.b32.xlu0 %v1924, 4
        %v1941 = vpop.permute.xlu0 %1940
        %1942 = vrot.lane.b32.xlu0 %v1925, 4
        %v1943 = vpop.permute.xlu0 %1942
        %1944 = vrot.lane.b32.xlu0 %v1926, 4
        %v1945 = vpop.permute.xlu0 %1944
        %1946 = vrot.lane.b32.xlu0 %v1927, 4
        %v1947 = vpop.permute.xlu0 %1946
        %1948 = vrot.lane.b32.xlu0 %v1928, 4
        %v1949 = vpop.permute.xlu0 %1948
        %1950 = vrot.lane.b32.xlu0 %v1929, 4
        %v1951 = vpop.permute.xlu0 %1950
        %1952 = vrot.lane.b32.xlu0 %v1930, 4
        %v1953 = vpop.permute.xlu0 %1952
        %1954 = vrot.lane.b32.xlu0 %v1931, 4
        %v1955 = vpop.permute.xlu0 %1954
        %vm1964 = vcmask 60448
        %1965 = vst.msk [vmem:[#allocation4] sm:$0xf] %vm1964, %v1941
        %1966 = vst.msk [vmem:[#allocation4 + $0x8] sm:$0xf] %vm1964, %v1943
        %1967 = vst.msk [vmem:[#allocation4 + $0x10] sm:$0xf] %vm1964, %v1945
        %1968 = vst.msk [vmem:[#allocation4 + $0x18] sm:$0xf] %vm1964, %v1947
        %1969 = vst.msk [vmem:[#allocation4 + $0x20] sm:$0xf] %vm1964, %v1949
        %1970 = vst.msk [vmem:[#allocation4 + $0x28] sm:$0xf] %vm1964, %v1951
        %1971 = vst.msk [vmem:[#allocation4 + $0x30] sm:$0xf] %vm1964, %v1953
        %1972 = vst.msk [vmem:[#allocation4 + $0x38] sm:$0xf] %vm1964, %v1955
        %v1973 = vld [vmem:[#allocation3 + $0x8] sm:$0xf]
        %v1974 = vld [vmem:[#allocation3 + $0xc] sm:$0x1]
        %v1975 = vld [vmem:[#allocation3 + $0x18] sm:$0xf]
        %v1976 = vld [vmem:[#allocation3 + $0x1c] sm:$0x1]
        %v1977 = vld [vmem:[#allocation3 + $0x28] sm:$0xf]
        %v1978 = vld [vmem:[#allocation3 + $0x2c] sm:$0x1]
        %v1979 = vld [vmem:[#allocation3 + $0x38] sm:$0xf]
        %v1980 = vld [vmem:[#allocation3 + $0x3c] sm:$0x1]
        %v1981 = vld [vmem:[#allocation3 + $0x48] sm:$0xf]
        %v1982 = vld [vmem:[#allocation3 + $0x4c] sm:$0x1]
        %v1983 = vld [vmem:[#allocation3 + $0x58] sm:$0xf]
        %v1984 = vld [vmem:[#allocation3 + $0x5c] sm:$0x1]
        %v1985 = vld [vmem:[#allocation3 + $0x68] sm:$0xf]
        %v1986 = vld [vmem:[#allocation3 + $0x6c] sm:$0x1]
        %v1987 = vld [vmem:[#allocation3 + $0x78] sm:$0xf]
        %v1988 = vld [vmem:[#allocation3 + $0x7c] sm:$0x1]
        %v1990 = vshrl.u32 %v1973, 16
        %v1992 = vrot.slane %v1990, 4
        %v1993 = vshll.u32 %v1973, 16
        %v1995 = vrot.slane %v1993, 5
        %v1996 = vor.u32 %v1992, %v1995
        %v1997 = vrot.slane %v1996, 4
        %v1999 = vshll.u32 %v1974, 16
        %v2001 = vrot.slane %v1999, 5
        %v2002 = vsel %vm722, %v1997, %v2001
        %v2004 = vshrl.u32 %v1975, 16
        %v2006 = vrot.slane %v2004, 4
        %v2007 = vshll.u32 %v1975, 16
        %v2009 = vrot.slane %v2007, 5
        %v2010 = vor.u32 %v2006, %v2009
        %v2011 = vrot.slane %v2010, 4
        %v2013 = vshll.u32 %v1976, 16
        %v2015 = vrot.slane %v2013, 5
        %v2016 = vsel %vm722, %v2011, %v2015
        %v2018 = vshrl.u32 %v1977, 16
        %v2020 = vrot.slane %v2018, 4
        %v2021 = vshll.u32 %v1977, 16
        %v2023 = vrot.slane %v2021, 5
        %v2024 = vor.u32 %v2020, %v2023
        %v2025 = vrot.slane %v2024, 4
        %v2027 = vshll.u32 %v1978, 16
        %v2029 = vrot.slane %v2027, 5
        %v2030 = vsel %vm722, %v2025, %v2029
        %v2032 = vshrl.u32 %v1979, 16
        %v2034 = vrot.slane %v2032, 4
        %v2035 = vshll.u32 %v1979, 16
        %v2037 = vrot.slane %v2035, 5
        %v2038 = vor.u32 %v2034, %v2037
        %v2039 = vrot.slane %v2038, 4
        %v2041 = vshll.u32 %v1980, 16
        %v2043 = vrot.slane %v2041, 5
        %v2044 = vsel %vm722, %v2039, %v2043
        %v2046 = vshrl.u32 %v1981, 16
        %v2048 = vrot.slane %v2046, 4
        %v2049 = vshll.u32 %v1981, 16
        %v2051 = vrot.slane %v2049, 5
        %v2052 = vor.u32 %v2048, %v2051
        %v2053 = vrot.slane %v2052, 4
        %v2055 = vshll.u32 %v1982, 16
        %v2057 = vrot.slane %v2055, 5
        %v2058 = vsel %vm722, %v2053, %v2057
        %v2060 = vshrl.u32 %v1983, 16
        %v2062 = vrot.slane %v2060, 4
        %v2063 = vshll.u32 %v1983, 16
        %v2065 = vrot.slane %v2063, 5
        %v2066 = vor.u32 %v2062, %v2065
        %v2067 = vrot.slane %v2066, 4
        %v2069 = vshll.u32 %v1984, 16
        %v2071 = vrot.slane %v2069, 5
        %v2072 = vsel %vm722, %v2067, %v2071
        %v2074 = vshrl.u32 %v1985, 16
        %v2076 = vrot.slane %v2074, 4
        %v2077 = vshll.u32 %v1985, 16
        %v2079 = vrot.slane %v2077, 5
        %v2080 = vor.u32 %v2076, %v2079
        %v2081 = vrot.slane %v2080, 4
        %v2083 = vshll.u32 %v1986, 16
        %v2085 = vrot.slane %v2083, 5
        %v2086 = vsel %vm722, %v2081, %v2085
        %v2088 = vshrl.u32 %v1987, 16
        %v2090 = vrot.slane %v2088, 4
        %v2091 = vshll.u32 %v1987, 16
        %v2093 = vrot.slane %v2091, 5
        %v2094 = vor.u32 %v2090, %v2093
        %v2095 = vrot.slane %v2094, 4
        %v2097 = vshll.u32 %v1988, 16
        %v2099 = vrot.slane %v2097, 5
        %v2100 = vsel %vm722, %v2095, %v2099
        %2101 = vrot.lane.b32.xlu0 %v2002, 8
        %v2102 = vpop.permute.xlu0 %2101
        %2103 = vrot.lane.b32.xlu0 %v2016, 8
        %v2104 = vpop.permute.xlu0 %2103
        %2105 = vrot.lane.b32.xlu0 %v2030, 8
        %v2106 = vpop.permute.xlu0 %2105
        %2107 = vrot.lane.b32.xlu0 %v2044, 8
        %v2108 = vpop.permute.xlu0 %2107
        %2109 = vrot.lane.b32.xlu0 %v2058, 8
        %v2110 = vpop.permute.xlu0 %2109
        %2111 = vrot.lane.b32.xlu0 %v2072, 8
        %v2112 = vpop.permute.xlu0 %2111
        %2113 = vrot.lane.b32.xlu0 %v2086, 8
        %v2114 = vpop.permute.xlu0 %2113
        %2115 = vrot.lane.b32.xlu0 %v2100, 8
        %v2116 = vpop.permute.xlu0 %2115
        %vm2125 = vcmask 93248
        %2126 = vst.msk [vmem:[#allocation4] sm:$0xf] %vm2125, %v2102
        %2127 = vst.msk [vmem:[#allocation4 + $0x8] sm:$0xf] %vm2125, %v2104
        %2128 = vst.msk [vmem:[#allocation4 + $0x10] sm:$0xf] %vm2125, %v2106
        %2129 = vst.msk [vmem:[#allocation4 + $0x18] sm:$0xf] %vm2125, %v2108
        %2130 = vst.msk [vmem:[#allocation4 + $0x20] sm:$0xf] %vm2125, %v2110
        %2131 = vst.msk [vmem:[#allocation4 + $0x28] sm:$0xf] %vm2125, %v2112
        %2132 = vst.msk [vmem:[#allocation4 + $0x30] sm:$0xf] %vm2125, %v2114
        %2133 = vst.msk [vmem:[#allocation4 + $0x38] sm:$0xf] %vm2125, %v2116
        %v2134 = vld [vmem:[%s449 + $0x4] sm:$0x8]
        %v2135 = vld [vmem:[%s449 + $0x8] sm:$0xf]
        %v2136 = vld [vmem:[%s449 + $0x14] sm:$0x8]
        %v2137 = vld [vmem:[%s449 + $0x18] sm:$0xf]
        %v2138 = vld [vmem:[%s449 + $0x24] sm:$0x8]
        %v2139 = vld [vmem:[%s449 + $0x28] sm:$0xf]
        %v2140 = vld [vmem:[%s449 + $0x34] sm:$0x8]
        %v2141 = vld [vmem:[%s449 + $0x38] sm:$0xf]
        %v2142 = vld [vmem:[%s449 + $0x44] sm:$0x8]
        %v2143 = vld [vmem:[%s449 + $0x48] sm:$0xf]
        %v2144 = vld [vmem:[%s449 + $0x54] sm:$0x8]
        %v2145 = vld [vmem:[%s449 + $0x58] sm:$0xf]
        %v2146 = vld [vmem:[%s449 + $0x64] sm:$0x8]
        %v2147 = vld [vmem:[%s449 + $0x68] sm:$0xf]
        %v2148 = vld [vmem:[%s449 + $0x74] sm:$0x8]
        %v2149 = vld [vmem:[%s449 + $0x78] sm:$0xf]
        %v2151 = vshrl.u32 %v2134, 16
        %v2153 = vrot.slane %v2151, 7
        %v2154 = vrot.slane %v2153, 4
        %v2156 = vshrl.u32 %v2135, 16
        %v2158 = vrot.slane %v2156, 7
        %v2159 = vshll.u32 %v2135, 16
        %v2161 = vor.u32 %v2158, %v2159
        %v2162 = vsel %vm534, %v2154, %v2161
        %v2164 = vshrl.u32 %v2136, 16
        %v2166 = vrot.slane %v2164, 7
        %v2167 = vrot.slane %v2166, 4
        %v2169 = vshrl.u32 %v2137, 16
        %v2171 = vrot.slane %v2169, 7
        %v2172 = vshll.u32 %v2137, 16
        %v2174 = vor.u32 %v2171, %v2172
        %v2175 = vsel %vm534, %v2167, %v2174
        %v2177 = vshrl.u32 %v2138, 16
        %v2179 = vrot.slane %v2177, 7
        %v2180 = vrot.slane %v2179, 4
        %v2182 = vshrl.u32 %v2139, 16
        %v2184 = vrot.slane %v2182, 7
        %v2185 = vshll.u32 %v2139, 16
        %v2187 = vor.u32 %v2184, %v2185
        %v2188 = vsel %vm534, %v2180, %v2187
        %v2190 = vshrl.u32 %v2140, 16
        %v2192 = vrot.slane %v2190, 7
        %v2193 = vrot.slane %v2192, 4
        %v2195 = vshrl.u32 %v2141, 16
        %v2197 = vrot.slane %v2195, 7
        %v2198 = vshll.u32 %v2141, 16
        %v2200 = vor.u32 %v2197, %v2198
        %v2201 = vsel %vm534, %v2193, %v2200
        %v2203 = vshrl.u32 %v2142, 16
        %v2205 = vrot.slane %v2203, 7
        %v2206 = vrot.slane %v2205, 4
        %v2208 = vshrl.u32 %v2143, 16
        %v2210 = vrot.slane %v2208, 7
        %v2211 = vshll.u32 %v2143, 16
        %v2213 = vor.u32 %v2210, %v2211
        %v2214 = vsel %vm534, %v2206, %v2213
        %v2216 = vshrl.u32 %v2144, 16
        %v2218 = vrot.slane %v2216, 7
        %v2219 = vrot.slane %v2218, 4
        %v2221 = vshrl.u32 %v2145, 16
        %v2223 = vrot.slane %v2221, 7
        %v2224 = vshll.u32 %v2145, 16
        %v2226 = vor.u32 %v2223, %v2224
        %v2227 = vsel %vm534, %v2219, %v2226
        %v2229 = vshrl.u32 %v2146, 16
        %v2231 = vrot.slane %v2229, 7
        %v2232 = vrot.slane %v2231, 4
        %v2234 = vshrl.u32 %v2147, 16
        %v2236 = vrot.slane %v2234, 7
        %v2237 = vshll.u32 %v2147, 16
        %v2239 = vor.u32 %v2236, %v2237
        %v2240 = vsel %vm534, %v2232, %v2239
        %v2242 = vshrl.u32 %v2148, 16
        %v2244 = vrot.slane %v2242, 7
        %v2245 = vrot.slane %v2244, 4
        %v2247 = vshrl.u32 %v2149, 16
        %v2249 = vrot.slane %v2247, 7
        %v2250 = vshll.u32 %v2149, 16
        %v2252 = vor.u32 %v2249, %v2250
        %v2253 = vsel %vm534, %v2245, %v2252
        %2254 = vrot.lane.b32.xlu0 %v2162, 12
        %v2255 = vpop.permute.xlu0 %2254
        %2256 = vrot.lane.b32.xlu0 %v2175, 12
        %v2257 = vpop.permute.xlu0 %2256
        %2258 = vrot.lane.b32.xlu0 %v2188, 12
        %v2259 = vpop.permute.xlu0 %2258
        %2260 = vrot.lane.b32.xlu0 %v2201, 12
        %v2261 = vpop.permute.xlu0 %2260
        %2262 = vrot.lane.b32.xlu0 %v2214, 12
        %v2263 = vpop.permute.xlu0 %2262
        %2264 = vrot.lane.b32.xlu0 %v2227, 12
        %v2265 = vpop.permute.xlu0 %2264
        %2266 = vrot.lane.b32.xlu0 %v2240, 12
        %v2267 = vpop.permute.xlu0 %2266
        %2268 = vrot.lane.b32.xlu0 %v2253, 12
        %v2269 = vpop.permute.xlu0 %2268
        %vm2278 = vcmask 126048
        %2279 = vst.msk [vmem:[#allocation4] sm:$0xf] %vm2278, %v2255
        %2280 = vst.msk [vmem:[#allocation4 + $0x8] sm:$0xf] %vm2278, %v2257
        %2281 = vst.msk [vmem:[#allocation4 + $0x10] sm:$0xf] %vm2278, %v2259
        %2282 = vst.msk [vmem:[#allocation4 + $0x18] sm:$0xf] %vm2278, %v2261
        %2283 = vst.msk [vmem:[#allocation4 + $0x20] sm:$0xf] %vm2278, %v2263
        %2284 = vst.msk [vmem:[#allocation4 + $0x28] sm:$0xf] %vm2278, %v2265
        %2285 = vst.msk [vmem:[#allocation4 + $0x30] sm:$0xf] %vm2278, %v2267
        %2286 = vst.msk [vmem:[#allocation4 + $0x38] sm:$0xf] %vm2278, %v2269
        %v2287 = vld [vmem:[%s449 + $0x8] sm:$0xf]
        %v2288 = vld [vmem:[%s449 + $0x18] sm:$0xf]
        %v2289 = vld [vmem:[%s449 + $0x28] sm:$0xf]
        %v2290 = vld [vmem:[%s449 + $0x38] sm:$0xf]
        %v2291 = vld [vmem:[%s449 + $0x48] sm:$0xf]
        %v2292 = vld [vmem:[%s449 + $0x58] sm:$0xf]
        %v2293 = vld [vmem:[%s449 + $0x68] sm:$0xf]
        %v2294 = vld [vmem:[%s449 + $0x78] sm:$0xf]
        %2303 = vrot.lane.b32.xlu0 %v2287, 16
        %v2304 = vpop.permute.xlu0 %2303
        %2305 = vrot.lane.b32.xlu0 %v2288, 16
        %v2306 = vpop.permute.xlu0 %2305
        %2307 = vrot.lane.b32.xlu0 %v2289, 16
        %v2308 = vpop.permute.xlu0 %2307
        %2309 = vrot.lane.b32.xlu0 %v2290, 16
        %v2310 = vpop.permute.xlu0 %2309
        %2311 = vrot.lane.b32.xlu0 %v2291, 16
        %v2312 = vpop.permute.xlu0 %2311
        %2313 = vrot.lane.b32.xlu0 %v2292, 16
        %v2314 = vpop.permute.xlu0 %2313
        %2315 = vrot.lane.b32.xlu0 %v2293, 16
        %v2316 = vpop.permute.xlu0 %2315
        %2317 = vrot.lane.b32.xlu0 %v2294, 16
        %v2318 = vpop.permute.xlu0 %2317
        %vm2327 = vcmask 158848
        %2328 = vst.msk [vmem:[#allocation4] sm:$0xf] %vm2327, %v2304
        %2329 = vst.msk [vmem:[#allocation4 + $0x8] sm:$0xf] %vm2327, %v2306
        %2330 = vst.msk [vmem:[#allocation4 + $0x10] sm:$0xf] %vm2327, %v2308
        %2331 = vst.msk [vmem:[#allocation4 + $0x18] sm:$0xf] %vm2327, %v2310
        %2332 = vst.msk [vmem:[#allocation4 + $0x20] sm:$0xf] %vm2327, %v2312
        %2333 = vst.msk [vmem:[#allocation4 + $0x28] sm:$0xf] %vm2327, %v2314
        %2334 = vst.msk [vmem:[#allocation4 + $0x30] sm:$0xf] %vm2327, %v2316
        %2335 = vst.msk [vmem:[#allocation4 + $0x38] sm:$0xf] %vm2327, %v2318
        %v2336 = vld [vmem:[%s449 + $0x8] sm:$0xf]
        %v2337 = vld [vmem:[%s449 + $0xc] sm:$0x1]
        %v2338 = vld [vmem:[%s449 + $0x18] sm:$0xf]
        %v2339 = vld [vmem:[%s449 + $0x1c] sm:$0x1]
        %v2340 = vld [vmem:[%s449 + $0x28] sm:$0xf]
        %v2341 = vld [vmem:[%s449 + $0x2c] sm:$0x1]
        %v2342 = vld [vmem:[%s449 + $0x38] sm:$0xf]
        %v2343 = vld [vmem:[%s449 + $0x3c] sm:$0x1]
        %v2344 = vld [vmem:[%s449 + $0x48] sm:$0xf]
        %v2345 = vld [vmem:[%s449 + $0x4c] sm:$0x1]
        %v2346 = vld [vmem:[%s449 + $0x58] sm:$0xf]
        %v2347 = vld [vmem:[%s449 + $0x5c] sm:$0x1]
        %v2348 = vld [vmem:[%s449 + $0x68] sm:$0xf]
        %v2349 = vld [vmem:[%s449 + $0x6c] sm:$0x1]
        %v2350 = vld [vmem:[%s449 + $0x78] sm:$0xf]
        %v2351 = vld [vmem:[%s449 + $0x7c] sm:$0x1]
        %v2353 = vshrl.u32 %v2336, 16
        %v2355 = vrot.slane %v2353, 4
        %v2356 = vshll.u32 %v2336, 16
        %v2358 = vrot.slane %v2356, 5
        %v2359 = vor.u32 %v2355, %v2358
        %v2360 = vrot.slane %v2359, 4
        %v2362 = vshll.u32 %v2337, 16
        %v2364 = vrot.slane %v2362, 5
        %v2365 = vsel %vm722, %v2360, %v2364
        %v2367 = vshrl.u32 %v2338, 16
        %v2369 = vrot.slane %v2367, 4
        %v2370 = vshll.u32 %v2338, 16
        %v2372 = vrot.slane %v2370, 5
        %v2373 = vor.u32 %v2369, %v2372
        %v2374 = vrot.slane %v2373, 4
        %v2376 = vshll.u32 %v2339, 16
        %v2378 = vrot.slane %v2376, 5
        %v2379 = vsel %vm722, %v2374, %v2378
        %v2381 = vshrl.u32 %v2340, 16
        %v2383 = vrot.slane %v2381, 4
        %v2384 = vshll.u32 %v2340, 16
        %v2386 = vrot.slane %v2384, 5
        %v2387 = vor.u32 %v2383, %v2386
        %v2388 = vrot.slane %v2387, 4
        %v2390 = vshll.u32 %v2341, 16
        %v2392 = vrot.slane %v2390, 5
        %v2393 = vsel %vm722, %v2388, %v2392
        %v2395 = vshrl.u32 %v2342, 16
        %v2397 = vrot.slane %v2395, 4
        %v2398 = vshll.u32 %v2342, 16
        %v2400 = vrot.slane %v2398, 5
        %v2401 = vor.u32 %v2397, %v2400
        %v2402 = vrot.slane %v2401, 4
        %v2404 = vshll.u32 %v2343, 16
        %v2406 = vrot.slane %v2404, 5
        %v2407 = vsel %vm722, %v2402, %v2406
        %v2409 = vshrl.u32 %v2344, 16
        %v2411 = vrot.slane %v2409, 4
        %v2412 = vshll.u32 %v2344, 16
        %v2414 = vrot.slane %v2412, 5
        %v2415 = vor.u32 %v2411, %v2414
        %v2416 = vrot.slane %v2415, 4
        %v2418 = vshll.u32 %v2345, 16
        %v2420 = vrot.slane %v2418, 5
        %v2421 = vsel %vm722, %v2416, %v2420
        %v2423 = vshrl.u32 %v2346, 16
        %v2425 = vrot.slane %v2423, 4
        %v2426 = vshll.u32 %v2346, 16
        %v2428 = vrot.slane %v2426, 5
        %v2429 = vor.u32 %v2425, %v2428
        %v2430 = vrot.slane %v2429, 4
        %v2432 = vshll.u32 %v2347, 16
        %v2434 = vrot.slane %v2432, 5
        %v2435 = vsel %vm722, %v2430, %v2434
        %v2437 = vshrl.u32 %v2348, 16
        %v2439 = vrot.slane %v2437, 4
        %v2440 = vshll.u32 %v2348, 16
        %v2442 = vrot.slane %v2440, 5
        %v2443 = vor.u32 %v2439, %v2442
        %v2444 = vrot.slane %v2443, 4
        %v2446 = vshll.u32 %v2349, 16
        %v2448 = vrot.slane %v2446, 5
        %v2449 = vsel %vm722, %v2444, %v2448
        %v2451 = vshrl.u32 %v2350, 16
        %v2453 = vrot.slane %v2451, 4
        %v2454 = vshll.u32 %v2350, 16
        %v2456 = vrot.slane %v2454, 5
        %v2457 = vor.u32 %v2453, %v2456
        %v2458 = vrot.slane %v2457, 4
        %v2460 = vshll.u32 %v2351, 16
        %v2462 = vrot.slane %v2460, 5
        %v2463 = vsel %vm722, %v2458, %v2462
        %2464 = vrot.lane.b32.xlu0 %v2365, 20
        %v2465 = vpop.permute.xlu0 %2464
        %2466 = vrot.lane.b32.xlu0 %v2379, 20
        %v2467 = vpop.permute.xlu0 %2466
        %2468 = vrot.lane.b32.xlu0 %v2393, 20
        %v2469 = vpop.permute.xlu0 %2468
        %2470 = vrot.lane.b32.xlu0 %v2407, 20
        %v2471 = vpop.permute.xlu0 %2470
        %2472 = vrot.lane.b32.xlu0 %v2421, 20
        %v2473 = vpop.permute.xlu0 %2472
        %2474 = vrot.lane.b32.xlu0 %v2435, 20
        %v2475 = vpop.permute.xlu0 %2474
        %2476 = vrot.lane.b32.xlu0 %v2449, 20
        %v2477 = vpop.permute.xlu0 %2476
        %2478 = vrot.lane.b32.xlu0 %v2463, 20
        %v2479 = vpop.permute.xlu0 %2478
        %vm2488 = vcmask 191648
        %2489 = vst.msk [vmem:[#allocation4] sm:$0xf] %vm2488, %v2465
        %2490 = vst.msk [vmem:[#allocation4 + $0x8] sm:$0xf] %vm2488, %v2467
        %2491 = vst.msk [vmem:[#allocation4 + $0x10] sm:$0xf] %vm2488, %v2469
        %2492 = vst.msk [vmem:[#allocation4 + $0x18] sm:$0xf] %vm2488, %v2471
        %2493 = vst.msk [vmem:[#allocation4 + $0x20] sm:$0xf] %vm2488, %v2473
        %2494 = vst.msk [vmem:[#allocation4 + $0x28] sm:$0xf] %vm2488, %v2475
        %2495 = vst.msk [vmem:[#allocation4 + $0x30] sm:$0xf] %vm2488, %v2477
        %2496 = vst.msk [vmem:[#allocation4 + $0x38] sm:$0xf] %vm2488, %v2479
        %s2497 = scalar_lea.vmem [#allocation3], 32
        %v2498 = vld [vmem:[%s2497 + $0x4] sm:$0x8]
        %v2499 = vld [vmem:[%s2497 + $0x8] sm:$0xf]
        %v2500 = vld [vmem:[%s2497 + $0x14] sm:$0x8]
        %v2501 = vld [vmem:[%s2497 + $0x18] sm:$0xf]
        %v2502 = vld [vmem:[%s2497 + $0x24] sm:$0x8]
        %v2503 = vld [vmem:[%s2497 + $0x28] sm:$0xf]
        %v2504 = vld [vmem:[%s2497 + $0x34] sm:$0x8]
        %v2505 = vld [vmem:[%s2497 + $0x38] sm:$0xf]
        %v2506 = vld [vmem:[%s2497 + $0x44] sm:$0x8]
        %v2507 = vld [vmem:[%s2497 + $0x48] sm:$0xf]
        %v2508 = vld [vmem:[%s2497 + $0x54] sm:$0x8]
        %v2509 = vld [vmem:[%s2497 + $0x58] sm:$0xf]
        %v2510 = vld [vmem:[%s2497 + $0x64] sm:$0x8]
        %v2511 = vld [vmem:[%s2497 + $0x68] sm:$0xf]
        %v2512 = vld [vmem:[%s2497 + $0x74] sm:$0x8]
        %v2513 = vld [vmem:[%s2497 + $0x78] sm:$0xf]
        %v2515 = vshrl.u32 %v2498, 16
        %v2517 = vrot.slane %v2515, 7
        %v2518 = vrot.slane %v2517, 4
        %v2520 = vshrl.u32 %v2499, 16
        %v2522 = vrot.slane %v2520, 7
        %v2523 = vshll.u32 %v2499, 16
        %v2525 = vor.u32 %v2522, %v2523
        %v2526 = vsel %vm534, %v2518, %v2525
        %v2528 = vshrl.u32 %v2500, 16
        %v2530 = vrot.slane %v2528, 7
        %v2531 = vrot.slane %v2530, 4
        %v2533 = vshrl.u32 %v2501, 16
        %v2535 = vrot.slane %v2533, 7
        %v2536 = vshll.u32 %v2501, 16
        %v2538 = vor.u32 %v2535, %v2536
        %v2539 = vsel %vm534, %v2531, %v2538
        %v2541 = vshrl.u32 %v2502, 16
        %v2543 = vrot.slane %v2541, 7
        %v2544 = vrot.slane %v2543, 4
        %v2546 = vshrl.u32 %v2503, 16
        %v2548 = vrot.slane %v2546, 7
        %v2549 = vshll.u32 %v2503, 16
        %v2551 = vor.u32 %v2548, %v2549
        %v2552 = vsel %vm534, %v2544, %v2551
        %v2554 = vshrl.u32 %v2504, 16
        %v2556 = vrot.slane %v2554, 7
        %v2557 = vrot.slane %v2556, 4
        %v2559 = vshrl.u32 %v2505, 16
        %v2561 = vrot.slane %v2559, 7
        %v2562 = vshll.u32 %v2505, 16
        %v2564 = vor.u32 %v2561, %v2562
        %v2565 = vsel %vm534, %v2557, %v2564
        %v2567 = vshrl.u32 %v2506, 16
        %v2569 = vrot.slane %v2567, 7
        %v2570 = vrot.slane %v2569, 4
        %v2572 = vshrl.u32 %v2507, 16
        %v2574 = vrot.slane %v2572, 7
        %v2575 = vshll.u32 %v2507, 16
        %v2577 = vor.u32 %v2574, %v2575
        %v2578 = vsel %vm534, %v2570, %v2577
        %v2580 = vshrl.u32 %v2508, 16
        %v2582 = vrot.slane %v2580, 7
        %v2583 = vrot.slane %v2582, 4
        %v2585 = vshrl.u32 %v2509, 16
        %v2587 = vrot.slane %v2585, 7
        %v2588 = vshll.u32 %v2509, 16
        %v2590 = vor.u32 %v2587, %v2588
        %v2591 = vsel %vm534, %v2583, %v2590
        %v2593 = vshrl.u32 %v2510, 16
        %v2595 = vrot.slane %v2593, 7
        %v2596 = vrot.slane %v2595, 4
        %v2598 = vshrl.u32 %v2511, 16
        %v2600 = vrot.slane %v2598, 7
        %v2601 = vshll.u32 %v2511, 16
        %v2603 = vor.u32 %v2600, %v2601
        %v2604 = vsel %vm534, %v2596, %v2603
        %v2606 = vshrl.u32 %v2512, 16
        %v2608 = vrot.slane %v2606, 7
        %v2609 = vrot.slane %v2608, 4
        %v2611 = vshrl.u32 %v2513, 16
        %v2613 = vrot.slane %v2611, 7
        %v2614 = vshll.u32 %v2513, 16
        %v2616 = vor.u32 %v2613, %v2614
        %v2617 = vsel %vm534, %v2609, %v2616
        %2618 = vrot.lane.b32.xlu0 %v2526, 24
        %v2619 = vpop.permute.xlu0 %2618
        %2620 = vrot.lane.b32.xlu0 %v2539, 24
        %v2621 = vpop.permute.xlu0 %2620
        %2622 = vrot.lane.b32.xlu0 %v2552, 24
        %v2623 = vpop.permute.xlu0 %2622
        %2624 = vrot.lane.b32.xlu0 %v2565, 24
        %v2625 = vpop.permute.xlu0 %2624
        %2626 = vrot.lane.b32.xlu0 %v2578, 24
        %v2627 = vpop.permute.xlu0 %2626
        %2628 = vrot.lane.b32.xlu0 %v2591, 24
        %v2629 = vpop.permute.xlu0 %2628
        %2630 = vrot.lane.b32.xlu0 %v2604, 24
        %v2631 = vpop.permute.xlu0 %2630
        %2632 = vrot.lane.b32.xlu0 %v2617, 24
        %v2633 = vpop.permute.xlu0 %2632
        %vm2642 = vcmask 224448
        %2643 = vst.msk [vmem:[#allocation4] sm:$0xf] %vm2642, %v2619
        %2644 = vst.msk [vmem:[#allocation4 + $0x8] sm:$0xf] %vm2642, %v2621
        %2645 = vst.msk [vmem:[#allocation4 + $0x10] sm:$0xf] %vm2642, %v2623
        %2646 = vst.msk [vmem:[#allocation4 + $0x18] sm:$0xf] %vm2642, %v2625
        %2647 = vst.msk [vmem:[#allocation4 + $0x20] sm:$0xf] %vm2642, %v2627
        %2648 = vst.msk [vmem:[#allocation4 + $0x28] sm:$0xf] %vm2642, %v2629
        %2649 = vst.msk [vmem:[#allocation4 + $0x30] sm:$0xf] %vm2642, %v2631
        %2650 = vst.msk [vmem:[#allocation4 + $0x38] sm:$0xf] %vm2642, %v2633
        %v2651 = vld [vmem:[%s2497 + $0x8] sm:$0xf]
        %v2652 = vld [vmem:[%s2497 + $0x18] sm:$0xf]
        %v2653 = vld [vmem:[%s2497 + $0x28] sm:$0xf]
        %v2654 = vld [vmem:[%s2497 + $0x38] sm:$0xf]
        %v2655 = vld [vmem:[%s2497 + $0x48] sm:$0xf]
        %v2656 = vld [vmem:[%s2497 + $0x58] sm:$0xf]
        %v2657 = vld [vmem:[%s2497 + $0x68] sm:$0xf]
        %v2658 = vld [vmem:[%s2497 + $0x78] sm:$0xf]
        %2667 = vrot.lane.b32.xlu0 %v2651, 28
        %v2668 = vpop.permute.xlu0 %2667
        %2669 = vrot.lane.b32.xlu0 %v2652, 28
        %v2670 = vpop.permute.xlu0 %2669
        %2671 = vrot.lane.b32.xlu0 %v2653, 28
        %v2672 = vpop.permute.xlu0 %2671
        %2673 = vrot.lane.b32.xlu0 %v2654, 28
        %v2674 = vpop.permute.xlu0 %2673
        %2675 = vrot.lane.b32.xlu0 %v2655, 28
        %v2676 = vpop.permute.xlu0 %2675
        %2677 = vrot.lane.b32.xlu0 %v2656, 28
        %v2678 = vpop.permute.xlu0 %2677
        %2679 = vrot.lane.b32.xlu0 %v2657, 28
        %v2680 = vpop.permute.xlu0 %2679
        %2681 = vrot.lane.b32.xlu0 %v2658, 28
        %v2682 = vpop.permute.xlu0 %2681
        %vm2691 = vcmask 257248
        %2692 = vst.msk [vmem:[#allocation4] sm:$0xf] %vm2691, %v2668
        %2693 = vst.msk [vmem:[#allocation4 + $0x8] sm:$0xf] %vm2691, %v2670
        %2694 = vst.msk [vmem:[#allocation4 + $0x10] sm:$0xf] %vm2691, %v2672
        %2695 = vst.msk [vmem:[#allocation4 + $0x18] sm:$0xf] %vm2691, %v2674
        %2696 = vst.msk [vmem:[#allocation4 + $0x20] sm:$0xf] %vm2691, %v2676
        %2697 = vst.msk [vmem:[#allocation4 + $0x28] sm:$0xf] %vm2691, %v2678
        %2698 = vst.msk [vmem:[#allocation4 + $0x30] sm:$0xf] %vm2691, %v2680
        %2699 = vst.msk [vmem:[#allocation4 + $0x38] sm:$0xf] %vm2691, %v2682
        %v2700 = vld [vmem:[%s2497 + $0x8] sm:$0xf]
        %v2701 = vld [vmem:[%s2497 + $0xc] sm:$0x1]
        %v2702 = vld [vmem:[%s2497 + $0x18] sm:$0xf]
        %v2703 = vld [vmem:[%s2497 + $0x1c] sm:$0x1]
        %v2704 = vld [vmem:[%s2497 + $0x28] sm:$0xf]
        %v2705 = vld [vmem:[%s2497 + $0x2c] sm:$0x1]
        %v2706 = vld [vmem:[%s2497 + $0x38] sm:$0xf]
        %v2707 = vld [vmem:[%s2497 + $0x3c] sm:$0x1]
        %v2708 = vld [vmem:[%s2497 + $0x48] sm:$0xf]
        %v2709 = vld [vmem:[%s2497 + $0x4c] sm:$0x1]
        %v2710 = vld [vmem:[%s2497 + $0x58] sm:$0xf]
        %v2711 = vld [vmem:[%s2497 + $0x5c] sm:$0x1]
        %v2712 = vld [vmem:[%s2497 + $0x68] sm:$0xf]
        %v2713 = vld [vmem:[%s2497 + $0x6c] sm:$0x1]
        %v2714 = vld [vmem:[%s2497 + $0x78] sm:$0xf]
        %v2715 = vld [vmem:[%s2497 + $0x7c] sm:$0x1]
        %v2717 = vshrl.u32 %v2700, 16
        %v2719 = vrot.slane %v2717, 4
        %v2720 = vshll.u32 %v2700, 16
        %v2722 = vrot.slane %v2720, 5
        %v2723 = vor.u32 %v2719, %v2722
        %v2724 = vrot.slane %v2723, 4
        %v2726 = vshll.u32 %v2701, 16
        %v2728 = vrot.slane %v2726, 5
        %v2729 = vsel %vm722, %v2724, %v2728
        %v2731 = vshrl.u32 %v2702, 16
        %v2733 = vrot.slane %v2731, 4
        %v2734 = vshll.u32 %v2702, 16
        %v2736 = vrot.slane %v2734, 5
        %v2737 = vor.u32 %v2733, %v2736
        %v2738 = vrot.slane %v2737, 4
        %v2740 = vshll.u32 %v2703, 16
        %v2742 = vrot.slane %v2740, 5
        %v2743 = vsel %vm722, %v2738, %v2742
        %v2745 = vshrl.u32 %v2704, 16
        %v2747 = vrot.slane %v2745, 4
        %v2748 = vshll.u32 %v2704, 16
        %v2750 = vrot.slane %v2748, 5
        %v2751 = vor.u32 %v2747, %v2750
        %v2752 = vrot.slane %v2751, 4
        %v2754 = vshll.u32 %v2705, 16
        %v2756 = vrot.slane %v2754, 5
        %v2757 = vsel %vm722, %v2752, %v2756
        %v2759 = vshrl.u32 %v2706, 16
        %v2761 = vrot.slane %v2759, 4
        %v2762 = vshll.u32 %v2706, 16
        %v2764 = vrot.slane %v2762, 5
        %v2765 = vor.u32 %v2761, %v2764
        %v2766 = vrot.slane %v2765, 4
        %v2768 = vshll.u32 %v2707, 16
        %v2770 = vrot.slane %v2768, 5
        %v2771 = vsel %vm722, %v2766, %v2770
        %v2773 = vshrl.u32 %v2708, 16
        %v2775 = vrot.slane %v2773, 4
        %v2776 = vshll.u32 %v2708, 16
        %v2778 = vrot.slane %v2776, 5
        %v2779 = vor.u32 %v2775, %v2778
        %v2780 = vrot.slane %v2779, 4
        %v2782 = vshll.u32 %v2709, 16
        %v2784 = vrot.slane %v2782, 5
        %v2785 = vsel %vm722, %v2780, %v2784
        %v2787 = vshrl.u32 %v2710, 16
        %v2789 = vrot.slane %v2787, 4
        %v2790 = vshll.u32 %v2710, 16
        %v2792 = vrot.slane %v2790, 5
        %v2793 = vor.u32 %v2789, %v2792
        %v2794 = vrot.slane %v2793, 4
        %v2796 = vshll.u32 %v2711, 16
        %v2798 = vrot.slane %v2796, 5
        %v2799 = vsel %vm722, %v2794, %v2798
        %v2801 = vshrl.u32 %v2712, 16
        %v2803 = vrot.slane %v2801, 4
        %v2804 = vshll.u32 %v2712, 16
        %v2806 = vrot.slane %v2804, 5
        %v2807 = vor.u32 %v2803, %v2806
        %v2808 = vrot.slane %v2807, 4
        %v2810 = vshll.u32 %v2713, 16
        %v2812 = vrot.slane %v2810, 5
        %v2813 = vsel %vm722, %v2808, %v2812
        %v2815 = vshrl.u32 %v2714, 16
        %v2817 = vrot.slane %v2815, 4
        %v2818 = vshll.u32 %v2714, 16
        %v2820 = vrot.slane %v2818, 5
        %v2821 = vor.u32 %v2817, %v2820
        %v2822 = vrot.slane %v2821, 4
        %v2824 = vshll.u32 %v2715, 16
        %v2826 = vrot.slane %v2824, 5
        %v2827 = vsel %vm722, %v2822, %v2826
        %2828 = vrot.lane.b32.xlu0 %v2729, 32
        %v2829 = vpop.permute.xlu0 %2828
        %2830 = vrot.lane.b32.xlu0 %v2743, 32
        %v2831 = vpop.permute.xlu0 %2830
        %2832 = vrot.lane.b32.xlu0 %v2757, 32
        %v2833 = vpop.permute.xlu0 %2832
        %2834 = vrot.lane.b32.xlu0 %v2771, 32
        %v2835 = vpop.permute.xlu0 %2834
        %2836 = vrot.lane.b32.xlu0 %v2785, 32
        %v2837 = vpop.permute.xlu0 %2836
        %2838 = vrot.lane.b32.xlu0 %v2799, 32
        %v2839 = vpop.permute.xlu0 %2838
        %2840 = vrot.lane.b32.xlu0 %v2813, 32
        %v2841 = vpop.permute.xlu0 %2840
        %2842 = vrot.lane.b32.xlu0 %v2827, 32
        %v2843 = vpop.permute.xlu0 %2842
        %vm2852 = vcmask 290048
        %2853 = vst.msk [vmem:[#allocation4] sm:$0xf] %vm2852, %v2829
        %2854 = vst.msk [vmem:[#allocation4 + $0x8] sm:$0xf] %vm2852, %v2831
        %2855 = vst.msk [vmem:[#allocation4 + $0x10] sm:$0xf] %vm2852, %v2833
        %2856 = vst.msk [vmem:[#allocation4 + $0x18] sm:$0xf] %vm2852, %v2835
        %2857 = vst.msk [vmem:[#allocation4 + $0x20] sm:$0xf] %vm2852, %v2837
        %2858 = vst.msk [vmem:[#allocation4 + $0x28] sm:$0xf] %vm2852, %v2839
        %2859 = vst.msk [vmem:[#allocation4 + $0x30] sm:$0xf] %vm2852, %v2841
        %2860 = vst.msk [vmem:[#allocation4 + $0x38] sm:$0xf] %vm2852, %v2843
        %v2861 = vld [vmem:[#allocation4] sm:$0xf]
        %v2862 = vld [vmem:[#allocation4 + $0x8] sm:$0xf]
        %v2863 = vld [vmem:[#allocation4 + $0x10] sm:$0xf]
        %v2864 = vld [vmem:[#allocation4 + $0x18] sm:$0xf]
        %v2865 = vld [vmem:[#allocation4 + $0x20] sm:$0xf]
        %v2866 = vld [vmem:[#allocation4 + $0x28] sm:$0xf]
        %v2867 = vld [vmem:[#allocation4 + $0x30] sm:$0xf]
        %v2868 = vld [vmem:[#allocation4 + $0x38] sm:$0xf]
        %v2869 = vld [vmem:[%s2] sm:$0xf]
        %v2870 = vld [vmem:[%s2 + $0x4] sm:$0xf]
        %v2871 = vld [vmem:[%s2 + $0x8] sm:$0xf]
        %v2872 = vld [vmem:[%s2 + $0xc] sm:$0xf]
        %v2873 = vld [vmem:[%s2 + $0x10] sm:$0x3]
        %v2882 = vunpack.c.l.b16 %v2861
        %v2883 = vunpack.c.l.b16 %v2862
        %v2884 = vunpack.c.l.b16 %v2863
        %v2885 = vunpack.c.l.b16 %v2864
        %v2886 = vunpack.c.l.b16 %v2865
        %v2887 = vunpack.c.l.b16 %v2866
        %v2888 = vunpack.c.l.b16 %v2867
        %v2889 = vunpack.c.l.b16 %v2868
        %v2890 = vpack.c.b16 %v2883, %v2882
        %v2891 = vpack.c.b16 %v2885, %v2884
        %v2892 = vpack.c.b16 %v2887, %v2886
        %v2893 = vpack.c.b16 %v2889, %v2888
        %v2899 = vunpack.c.l.b16 %v2869
        %v2900 = vunpack.c.l.b16 %v2870
        %v2901 = vunpack.c.l.b16 %v2871
        %v2902 = vunpack.c.l.b16 %v2872
        %v2903 = vunpack.c.l.b16 %v2873
        %v2904 = vpack.c.b16 %v2900, %v2899
        %v2905 = vpack.c.b16 %v2902, %v2901
        %v2906 = vpack.c.b16 %v2903, %v2903
        %vm2909 = vcmask 293888
        %v2911 = vsel %vm2909, %v2890, 0
        %v2914 = vsel %vm2909, %v2891, 0
        %v2917 = vsel %vm2909, %v2892, 0
        %v2920 = vsel %vm2909, %v2893, 0
        %vm2922 = vcmask 1041408
        %v2924 = vsel %vm2922, %v2906, 0
        %2926 = vmatpush.bf16.msra.mxu0 0
        %2927 = vmatpush.bf16.msra.mxu0 0
        %2928 = vmatpush.bf16.msra.mxu0 0
        %2929 = vmatpush.bf16.msra.mxu0 0
        %2930 = vmatpush.bf16.msra.mxu0 0
        %2931 = vmatpush.bf16.msra.mxu0 %v2924
        %2932 = vmatpush.bf16.msra.mxu0 %v2905
        %2933 = vmatpush.bf16.msra.mxu0 %v2904
        %2934 = vmatmul.bf16.gmra.mxu0 %v2911
        %v2935 = vpop.f32.mrf.mxu0
        %v2936 = vadd.f32 0.0, %v2935
        %v2937 = vpop.f32.mrf.mxu0
        %v2938 = vadd.f32 0.0, %v2937
        %2939 = vmatmul.bf16.gmra.mxu0 %v2914
        %v2940 = vpop.f32.mrf.mxu0
        %v2941 = vadd.f32 0.0, %v2940
        %v2942 = vpop.f32.mrf.mxu0
        %v2943 = vadd.f32 0.0, %v2942
        %2944 = vmatmul.bf16.gmra.mxu0 %v2917
        %v2945 = vpop.f32.mrf.mxu0
        %v2946 = vadd.f32 0.0, %v2945
        %v2947 = vpop.f32.mrf.mxu0
        %v2948 = vadd.f32 0.0, %v2947
        %2949 = vmatmul.bf16.gmra.mxu0 %v2920
        %v2950 = vpop.f32.mrf.mxu0
        %v2951 = vadd.f32 0.0, %v2950
        %v2952 = vpop.f32.mrf.mxu0
        %v2953 = vadd.f32 0.0, %v2952
        %2954 = vdwg.mxu0
        %vm2955 = vcmask 261120
        %v2956 = vsel %vm2955, %v2936, -inf
        %2957 = vmax.xlane.f32.xlu0 %v2956
        %v2958 = vpop.xlane.xlu0 %2957
        %v2959 = vsel %vm2955, %v2938, -inf
        %2960 = vmax.xlane.f32.xlu0 %v2959
        %v2961 = vpop.xlane.xlu0 %2960
        %v2962 = vsel %vm2955, %v2941, -inf
        %2963 = vmax.xlane.f32.xlu0 %v2962
        %v2964 = vpop.xlane.xlu0 %2963
        %v2965 = vsel %vm2955, %v2943, -inf
        %2966 = vmax.xlane.f32.xlu0 %v2965
        %v2967 = vpop.xlane.xlu0 %2966
        %v2968 = vsel %vm2955, %v2946, -inf
        %2969 = vmax.xlane.f32.xlu0 %v2968
        %v2970 = vpop.xlane.xlu0 %2969
        %v2971 = vsel %vm2955, %v2948, -inf
        %2972 = vmax.xlane.f32.xlu0 %v2971
        %v2973 = vpop.xlane.xlu0 %2972
        %v2974 = vsel %vm2955, %v2951, -inf
        %2975 = vmax.xlane.f32.xlu0 %v2974
        %v2976 = vpop.xlane.xlu0 %2975
        %v2977 = vsel %vm2955, %v2953, -inf
        %2978 = vmax.xlane.f32.xlu0 %v2977
        %v2979 = vpop.xlane.xlu0 %2978
        %v2988 = vlaneseq
        %v2989 = vand.u32 %v2988, 127
        %v2990 = vadd.s32 %v2989, 4294967280
        %v2991 = vperm.slane %v2958, %v2990
        %v2992 = vperm.slane %v2961, %v2990
        %v2993 = vperm.slane %v2964, %v2990
        %v2994 = vperm.slane %v2967, %v2990
        %v2995 = vperm.slane %v2970, %v2990
        %v2996 = vperm.slane %v2973, %v2990
        %v2997 = vperm.slane %v2976, %v2990
        %v2998 = vperm.slane %v2979, %v2990
        %vm2999 = vcmask 1041409
        %v3000 = vsel %vm2999, %v2992, %v2991
        %vm3001 = vcmask 1042434
        %v3002 = vsel %vm3001, %v2993, %v3000
        %vm3003 = vcmask 1043459
        %v3004 = vsel %vm3003, %v2994, %v3002
        %vm3005 = vcmask 1044484
        %v3006 = vsel %vm3005, %v2995, %v3004
        %vm3007 = vcmask 1045509
        %v3008 = vsel %vm3007, %v2996, %v3006
        %vm3009 = vcmask 1046534
        %v3010 = vsel %vm3009, %v2997, %v3008
        %vm3011 = vcmask 1047559
        %v3012 = vsel %vm3011, %v2998, %v3010
        %vm3014 = vcmask 195712
        %3015 = vst.msk [vmem:[#allocation5 + $0x2] sm:$0xff] %vm3014, %v3012
        %v3016 = vsel %vm2955, %v2936, 0.0
        %3017 = vadd.xlane.f32.xlu0 %v3016
        %v3018 = vpop.xlane.xlu0 %3017
        %v3019 = vsel %vm2955, %v2938, 0.0
        %3020 = vadd.xlane.f32.xlu0 %v3019
        %v3021 = vpop.xlane.xlu0 %3020
        %v3022 = vsel %vm2955, %v2941, 0.0
        %3023 = vadd.xlane.f32.xlu0 %v3022
        %v3024 = vpop.xlane.xlu0 %3023
        %v3025 = vsel %vm2955, %v2943, 0.0
        %3026 = vadd.xlane.f32.xlu0 %v3025
        %v3027 = vpop.xlane.xlu0 %3026
        %v3028 = vsel %vm2955, %v2946, 0.0
        %3029 = vadd.xlane.f32.xlu0 %v3028
        %v3030 = vpop.xlane.xlu0 %3029
        %v3031 = vsel %vm2955, %v2948, 0.0
        %3032 = vadd.xlane.f32.xlu0 %v3031
        %v3033 = vpop.xlane.xlu0 %3032
        %v3034 = vsel %vm2955, %v2951, 0.0
        %3035 = vadd.xlane.f32.xlu0 %v3034
        %v3036 = vpop.xlane.xlu0 %3035
        %v3037 = vsel %vm2955, %v2953, 0.0
        %3038 = vadd.xlane.f32.xlu0 %v3037
        %v3039 = vpop.xlane.xlu0 %3038
        %v3040 = vrcp.pop 32.0
        %v3041 = vmul.f32 32.0, %v3040
        %v3042 = vsub.f32 1.0, %v3041
        %v3043 = vmul.f32 %v3040, %v3042
        %v3044 = vadd.f32 %v3040, %v3043
        %vm3045 = vweird.f32 %v3040
        %v3046 = vsel %vm3045, %v3040, %v3044
        %v3047 = vmul.f32 %v3018, %v3046
        %v3048 = vmul.f32 %v3021, %v3046
        %v3049 = vmul.f32 %v3024, %v3046
        %v3050 = vmul.f32 %v3027, %v3046
        %v3051 = vmul.f32 %v3030, %v3046
        %v3052 = vmul.f32 %v3033, %v3046
        %v3053 = vmul.f32 %v3036, %v3046
        %v3054 = vmul.f32 %v3039, %v3046
        %v3063 = vperm.slane %v3047, %v2990
        %v3064 = vperm.slane %v3048, %v2990
        %v3065 = vperm.slane %v3049, %v2990
        %v3066 = vperm.slane %v3050, %v2990
        %v3067 = vperm.slane %v3051, %v2990
        %v3068 = vperm.slane %v3052, %v2990
        %v3069 = vperm.slane %v3053, %v2990
        %v3070 = vperm.slane %v3054, %v2990
        %v3071 = vsel %vm2999, %v3064, %v3063
        %v3072 = vsel %vm3001, %v3065, %v3071
        %v3073 = vsel %vm3003, %v3066, %v3072
        %v3074 = vsel %vm3005, %v3067, %v3073
        %v3075 = vsel %vm3007, %v3068, %v3074
        %v3076 = vsel %vm3009, %v3069, %v3075
        %v3077 = vsel %vm3011, %v3070, %v3076
        %3079 = vst.msk [vmem:[#allocation6 + $0x2] sm:$0xff] %vm3014, %v3077
        %v3080 = vld [vmem:[#allocation5] sm:$0xff]
        %s3081 = sld [smem:[#allocation7]]
        %v3082 = vstv %s3081
        %v3083 = vmul.f32 %v3080, %v3082
        %v3084 = vadd.f32 %v3083, 0.0
        %v3085 = vld [vmem:[#allocation6] sm:$0xff]
        %s3086 = sld [smem:[#allocation7 + $0x1]]
        %v3087 = vstv %s3086
        %v3088 = vmul.f32 %v3085, %v3087
        %v3089 = vadd.f32 %v3084, %v3088
        %s3090 = sld [smem:[#allocation7 + $0x2]]
        %v3091 = vstv %s3090
        %v3092 = vmul.f32 %v3080, %v3091
        %3094 = vrot.lane.b32.xlu0 %v3092, 127
        %v3095 = vpop.permute.xlu0 %3094
        %v3097 = vadd.f32 %v3089, %v3095
        %s3098 = sld [smem:[#allocation7 + $0x3]]
        %v3099 = vstv %s3098
        %v3100 = vmul.f32 %v3085, %v3099
        %3102 = vrot.lane.b32.xlu0 %v3100, 127
        %v3103 = vpop.permute.xlu0 %3102
        %v3105 = vadd.f32 %v3097, %v3103
        %s3106 = sld [smem:[#allocation7 + $0x4]]
        %v3107 = vstv %s3106
        %v3108 = vmul.f32 %v3080, %v3107
        %3110 = vrot.lane.b32.xlu0 %v3108, 126
        %v3111 = vpop.permute.xlu0 %3110
        %v3113 = vadd.f32 %v3105, %v3111
        %s3114 = sld [smem:[#allocation7 + $0x5]]
        %v3115 = vstv %s3114
        %v3116 = vmul.f32 %v3085, %v3115
        %3118 = vrot.lane.b32.xlu0 %v3116, 126
        %v3119 = vpop.permute.xlu0 %3118
        %v3121 = vadd.f32 %v3113, %v3119
        %s3122 = sld [smem:[#allocation7 + $0x6]]
        %v3123 = vstv %s3122
        %v3124 = vmul.f32 %v3080, %v3123
        %3126 = vrot.lane.b32.xlu0 %v3124, 125
        %v3127 = vpop.permute.xlu0 %3126
        %v3129 = vadd.f32 %v3121, %v3127
        %s3130 = sld [smem:[#allocation7 + $0x7]]
        %v3131 = vstv %s3130
        %v3132 = vmul.f32 %v3085, %v3131
        %3134 = vrot.lane.b32.xlu0 %v3132, 125
        %v3135 = vpop.permute.xlu0 %3134
        %v3137 = vadd.f32 %v3129, %v3135
        %s3138 = sld [smem:[#allocation7 + $0x8]]
        %v3139 = vstv %s3138
        %v3140 = vmul.f32 %v3080, %v3139
        %3142 = vrot.lane.b32.xlu0 %v3140, 124
        %v3143 = vpop.permute.xlu0 %3142
        %v3145 = vadd.f32 %v3137, %v3143
        %s3146 = sld [smem:[#allocation7 + $0x9]]
        %v3147 = vstv %s3146
        %v3148 = vmul.f32 %v3085, %v3147
        %3150 = vrot.lane.b32.xlu0 %v3148, 124
        %v3151 = vpop.permute.xlu0 %3150
        %v3153 = vadd.f32 %v3145, %v3151
        %v3154 = vld [vmem:[#allocation5 + $0x1] sm:$0xff]
        %s3155 = sld [smem:[#allocation7 + $0xa]]
        %v3156 = vstv %s3155
        %v3157 = vmul.f32 %v3154, %v3156
        %v3158 = vadd.f32 %v3153, %v3157
        %v3159 = vld [vmem:[#allocation6 + $0x1] sm:$0xff]
        %s3160 = sld [smem:[#allocation7 + $0xb]]
        %v3161 = vstv %s3160
        %v3162 = vmul.f32 %v3159, %v3161
        %v3163 = vadd.f32 %v3158, %v3162
        %s3164 = sld [smem:[#allocation7 + $0xc]]
        %v3165 = vstv %s3164
        %v3166 = vmul.f32 %v3154, %v3165
        %3168 = vrot.lane.b32.xlu0 %v3166, 127
        %v3169 = vpop.permute.xlu0 %3168
        %v3171 = vadd.f32 %v3163, %v3169
        %s3172 = sld [smem:[#allocation7 + $0xd]]
        %v3173 = vstv %s3172
        %v3174 = vmul.f32 %v3159, %v3173
        %3176 = vrot.lane.b32.xlu0 %v3174, 127
        %v3177 = vpop.permute.xlu0 %3176
        %v3179 = vadd.f32 %v3171, %v3177
        %s3180 = sld [smem:[#allocation7 + $0xe]]
        %v3181 = vstv %s3180
        %v3182 = vmul.f32 %v3154, %v3181
        %3184 = vrot.lane.b32.xlu0 %v3182, 126
        %v3185 = vpop.permute.xlu0 %3184
        %v3187 = vadd.f32 %v3179, %v3185
        %s3188 = sld [smem:[#allocation7 + $0xf]]
        %v3189 = vstv %s3188
        %v3190 = vmul.f32 %v3159, %v3189
        %3192 = vrot.lane.b32.xlu0 %v3190, 126
        %v3193 = vpop.permute.xlu0 %3192
        %v3195 = vadd.f32 %v3187, %v3193
        %s3196 = sld [smem:[#allocation7 + $0x10]]
        %v3197 = vstv %s3196
        %v3198 = vmul.f32 %v3154, %v3197
        %3200 = vrot.lane.b32.xlu0 %v3198, 125
        %v3201 = vpop.permute.xlu0 %3200
        %v3203 = vadd.f32 %v3195, %v3201
        %s3204 = sld [smem:[#allocation7 + $0x11]]
        %v3205 = vstv %s3204
        %v3206 = vmul.f32 %v3159, %v3205
        %3208 = vrot.lane.b32.xlu0 %v3206, 125
        %v3209 = vpop.permute.xlu0 %3208
        %v3211 = vadd.f32 %v3203, %v3209
        %s3212 = sld [smem:[#allocation7 + $0x12]]
        %v3213 = vstv %s3212
        %v3214 = vmul.f32 %v3154, %v3213
        %3216 = vrot.lane.b32.xlu0 %v3214, 124
        %v3217 = vpop.permute.xlu0 %3216
        %v3219 = vadd.f32 %v3211, %v3217
        %s3220 = sld [smem:[#allocation7 + $0x13]]
        %v3221 = vstv %s3220
        %v3222 = vmul.f32 %v3159, %v3221
        %3224 = vrot.lane.b32.xlu0 %v3222, 124
        %v3225 = vpop.permute.xlu0 %3224
        %v3227 = vadd.f32 %v3219, %v3225
        %v3228 = vld [vmem:[#allocation5 + $0x2] sm:$0xff]
        %s3229 = sld [smem:[#allocation7 + $0x14]]
        %v3230 = vstv %s3229
        %v3231 = vmul.f32 %v3228, %v3230
        %v3232 = vadd.f32 %v3227, %v3231
        %v3233 = vld [vmem:[#allocation6 + $0x2] sm:$0xff]
        %s3234 = sld [smem:[#allocation7 + $0x15]]
        %v3235 = vstv %s3234
        %v3236 = vmul.f32 %v3233, %v3235
        %v3237 = vadd.f32 %v3232, %v3236
        %s3238 = sld [smem:[#allocation7 + $0x16]]
        %v3239 = vstv %s3238
        %v3240 = vmul.f32 %v3228, %v3239
        %3242 = vrot.lane.b32.xlu0 %v3240, 127
        %v3243 = vpop.permute.xlu0 %3242
        %v3245 = vadd.f32 %v3237, %v3243
        %s3246 = sld [smem:[#allocation7 + $0x17]]
        %v3247 = vstv %s3246
        %v3248 = vmul.f32 %v3233, %v3247
        %3250 = vrot.lane.b32.xlu0 %v3248, 127
        %v3251 = vpop.permute.xlu0 %3250
        %v3253 = vadd.f32 %v3245, %v3251
        %s3254 = sld [smem:[#allocation7 + $0x18]]
        %v3255 = vstv %s3254
        %v3256 = vmul.f32 %v3228, %v3255
        %3258 = vrot.lane.b32.xlu0 %v3256, 126
        %v3259 = vpop.permute.xlu0 %3258
        %v3261 = vadd.f32 %v3253, %v3259
        %s3262 = sld [smem:[#allocation7 + $0x19]]
        %v3263 = vstv %s3262
        %v3264 = vmul.f32 %v3233, %v3263
        %3266 = vrot.lane.b32.xlu0 %v3264, 126
        %v3267 = vpop.permute.xlu0 %3266
        %v3269 = vadd.f32 %v3261, %v3267
        %s3270 = sld [smem:[#allocation7 + $0x1a]]
        %v3271 = vstv %s3270
        %v3272 = vmul.f32 %v3228, %v3271
        %3274 = vrot.lane.b32.xlu0 %v3272, 125
        %v3275 = vpop.permute.xlu0 %3274
        %v3277 = vadd.f32 %v3269, %v3275
        %s3278 = sld [smem:[#allocation7 + $0x1b]]
        %v3279 = vstv %s3278
        %v3280 = vmul.f32 %v3233, %v3279
        %3282 = vrot.lane.b32.xlu0 %v3280, 125
        %v3283 = vpop.permute.xlu0 %3282
        %v3285 = vadd.f32 %v3277, %v3283
        %s3286 = sld [smem:[#allocation7 + $0x1c]]
        %v3287 = vstv %s3286
        %v3288 = vmul.f32 %v3228, %v3287
        %3290 = vrot.lane.b32.xlu0 %v3288, 124
        %v3291 = vpop.permute.xlu0 %3290
        %v3293 = vadd.f32 %v3285, %v3291
        %s3294 = sld [smem:[#allocation7 + $0x1d]]
        %v3295 = vstv %s3294
        %v3296 = vmul.f32 %v3233, %v3295
        %3298 = vrot.lane.b32.xlu0 %v3296, 124
        %v3299 = vpop.permute.xlu0 %3298
        %v3301 = vadd.f32 %v3293, %v3299
        %v3302 = vld [vmem:[#allocation5 + $0x3] sm:$0xff]
        %s3303 = sld [smem:[#allocation7 + $0x1e]]
        %v3304 = vstv %s3303
        %v3305 = vmul.f32 %v3302, %v3304
        %v3306 = vadd.f32 %v3301, %v3305
        %v3307 = vld [vmem:[#allocation6 + $0x3] sm:$0xff]
        %s3308 = sld [smem:[#allocation7 + $0x1f]]
        %v3309 = vstv %s3308
        %v3310 = vmul.f32 %v3307, %v3309
        %v3311 = vadd.f32 %v3306, %v3310
        %s3312 = sld [smem:[#allocation7 + $0x20]]
        %v3313 = vstv %s3312
        %v3314 = vmul.f32 %v3302, %v3313
        %3316 = vrot.lane.b32.xlu0 %v3314, 127
        %v3317 = vpop.permute.xlu0 %3316
        %v3319 = vadd.f32 %v3311, %v3317
        %s3320 = sld [smem:[#allocation7 + $0x21]]
        %v3321 = vstv %s3320
        %v3322 = vmul.f32 %v3307, %v3321
        %3324 = vrot.lane.b32.xlu0 %v3322, 127
        %v3325 = vpop.permute.xlu0 %3324
        %v3327 = vadd.f32 %v3319, %v3325
        %s3328 = sld [smem:[#allocation7 + $0x22]]
        %v3329 = vstv %s3328
        %v3330 = vmul.f32 %v3302, %v3329
        %3332 = vrot.lane.b32.xlu0 %v3330, 126
        %v3333 = vpop.permute.xlu0 %3332
        %v3335 = vadd.f32 %v3327, %v3333
        %s3336 = sld [smem:[#allocation7 + $0x23]]
        %v3337 = vstv %s3336
        %v3338 = vmul.f32 %v3307, %v3337
        %3340 = vrot.lane.b32.xlu0 %v3338, 126
        %v3341 = vpop.permute.xlu0 %3340
        %v3343 = vadd.f32 %v3335, %v3341
        %s3344 = sld [smem:[#allocation7 + $0x24]]
        %v3345 = vstv %s3344
        %v3346 = vmul.f32 %v3302, %v3345
        %3348 = vrot.lane.b32.xlu0 %v3346, 125
        %v3349 = vpop.permute.xlu0 %3348
        %v3351 = vadd.f32 %v3343, %v3349
        %s3352 = sld [smem:[#allocation7 + $0x25]]
        %v3353 = vstv %s3352
        %v3354 = vmul.f32 %v3307, %v3353
        %3356 = vrot.lane.b32.xlu0 %v3354, 125
        %v3357 = vpop.permute.xlu0 %3356
        %v3359 = vadd.f32 %v3351, %v3357
        %s3360 = sld [smem:[#allocation7 + $0x26]]
        %v3361 = vstv %s3360
        %v3362 = vmul.f32 %v3302, %v3361
        %3364 = vrot.lane.b32.xlu0 %v3362, 124
        %v3365 = vpop.permute.xlu0 %3364
        %v3367 = vadd.f32 %v3359, %v3365
        %s3368 = sld [smem:[#allocation7 + $0x27]]
        %v3369 = vstv %s3368
        %v3370 = vmul.f32 %v3307, %v3369
        %3372 = vrot.lane.b32.xlu0 %v3370, 124
        %v3373 = vpop.permute.xlu0 %3372
        %v3375 = vadd.f32 %v3367, %v3373
        %v3376 = vld [vmem:[#allocation5 + $0x4] sm:$0xff]
        %s3377 = sld [smem:[#allocation7 + $0x28]]
        %v3378 = vstv %s3377
        %v3379 = vmul.f32 %v3376, %v3378
        %v3380 = vadd.f32 %v3375, %v3379
        %v3381 = vld [vmem:[#allocation6 + $0x4] sm:$0xff]
        %s3382 = sld [smem:[#allocation7 + $0x29]]
        %v3383 = vstv %s3382
        %v3384 = vmul.f32 %v3381, %v3383
        %v3385 = vadd.f32 %v3380, %v3384
        %s3386 = sld [smem:[#allocation7 + $0x2a]]
        %v3387 = vstv %s3386
        %v3388 = vmul.f32 %v3376, %v3387
        %3390 = vrot.lane.b32.xlu0 %v3388, 127
        %v3391 = vpop.permute.xlu0 %3390
        %v3393 = vadd.f32 %v3385, %v3391
        %s3394 = sld [smem:[#allocation7 + $0x2b]]
        %v3395 = vstv %s3394
        %v3396 = vmul.f32 %v3381, %v3395
        %3398 = vrot.lane.b32.xlu0 %v3396, 127
        %v3399 = vpop.permute.xlu0 %3398
        %v3401 = vadd.f32 %v3393, %v3399
        %s3402 = sld [smem:[#allocation7 + $0x2c]]
        %v3403 = vstv %s3402
        %v3404 = vmul.f32 %v3376, %v3403
        %3406 = vrot.lane.b32.xlu0 %v3404, 126
        %v3407 = vpop.permute.xlu0 %3406
        %v3409 = vadd.f32 %v3401, %v3407
        %s3410 = sld [smem:[#allocation7 + $0x2d]]
        %v3411 = vstv %s3410
        %v3412 = vmul.f32 %v3381, %v3411
        %3414 = vrot.lane.b32.xlu0 %v3412, 126
        %v3415 = vpop.permute.xlu0 %3414
        %v3417 = vadd.f32 %v3409, %v3415
        %s3418 = sld [smem:[#allocation7 + $0x2e]]
        %v3419 = vstv %s3418
        %v3420 = vmul.f32 %v3376, %v3419
        %3422 = vrot.lane.b32.xlu0 %v3420, 125
        %v3423 = vpop.permute.xlu0 %3422
        %v3425 = vadd.f32 %v3417, %v3423
        %s3426 = sld [smem:[#allocation7 + $0x2f]]
        %v3427 = vstv %s3426
        %v3428 = vmul.f32 %v3381, %v3427
        %3430 = vrot.lane.b32.xlu0 %v3428, 125
        %v3431 = vpop.permute.xlu0 %3430
        %v3433 = vadd.f32 %v3425, %v3431
        %s3434 = sld [smem:[#allocation7 + $0x30]]
        %v3435 = vstv %s3434
        %v3436 = vmul.f32 %v3376, %v3435
        %3438 = vrot.lane.b32.xlu0 %v3436, 124
        %v3439 = vpop.permute.xlu0 %3438
        %v3441 = vadd.f32 %v3433, %v3439
        %s3442 = sld [smem:[#allocation7 + $0x31]]
        %v3443 = vstv %s3442
        %v3444 = vmul.f32 %v3381, %v3443
        %3446 = vrot.lane.b32.xlu0 %v3444, 124
        %v3447 = vpop.permute.xlu0 %3446
        %v3449 = vadd.f32 %v3441, %v3447
        %v3450 = vxor.u32 %v3449, 2147483648
        %v3451 = vmul.f32 %v3450, 1.442695
        %v3452 = vpow.pop %v3451
        %v3453 = vadd.f32 %v3452, 1.0
        %v3454 = vrcp.pop %v3453
        %v3455 = vmul.f32 %v3453, %v3454
        %v3456 = vsub.f32 1.0, %v3455
        %v3457 = vmul.f32 %v3454, %v3456
        %v3458 = vadd.f32 %v3454, %v3457
        %vm3459 = vweird.f32 %v3453
        %vm3460 = vweird.f32 %v3454
        %vm3461 = vmor %vm3459, %vm3460
        %v3462 = vsel %vm3461, %v3454, %v3458
        %v3463 = vand.u32 2147483647, %v3453
        %vm3464 = vcmp.eq.f32.partialorder %v3463, 8.507059e+37
        %v3465 = vand.u32 %v3453, 2147483648
        %v3466 = vor.u32 1.1754944e-38, %v3465
        %v3467 = vsel %vm3464, %v3466, %v3462
        %v3468 = vmul.f32 1.0, %v3467
        %v3469 = vperm.slane %v3468, 0
        %v3470 = vlaneseq
        %v3471 = vshrl.u32 %v3470, 7
        %v3472 = vadd.s32 %v3471, 14
        %3473 = vset.pattern.permute.xlu0 %v3472
        %3474 = vperm.xlu0 %3473, %v3469
        %v3475 = vpop.permute.xlu0 %3474
        %v3476 = vperm.slane %v3468, 1
        %v3477 = vlaneseq
        %v3478 = vshrl.u32 %v3477, 7
        %v3479 = vadd.s32 %v3478, 14
        %3480 = vset.pattern.permute.xlu0 %v3479
        %3481 = vperm.xlu0 %3480, %v3476
        %v3482 = vpop.permute.xlu0 %3481
        %v3483 = vperm.slane %v3468, 2
        %v3484 = vlaneseq
        %v3485 = vshrl.u32 %v3484, 7
        %v3486 = vadd.s32 %v3485, 14
        %3487 = vset.pattern.permute.xlu0 %v3486
        %3488 = vperm.xlu0 %3487, %v3483
        %v3489 = vpop.permute.xlu0 %3488
        %v3490 = vperm.slane %v3468, 3
        %v3491 = vlaneseq
        %v3492 = vshrl.u32 %v3491, 7
        %v3493 = vadd.s32 %v3492, 14
        %3494 = vset.pattern.permute.xlu0 %v3493
        %3495 = vperm.xlu0 %3494, %v3490
        %v3496 = vpop.permute.xlu0 %3495
        %v3497 = vperm.slane %v3468, 4
        %v3498 = vlaneseq
        %v3499 = vshrl.u32 %v3498, 7
        %v3500 = vadd.s32 %v3499, 14
        %3501 = vset.pattern.permute.xlu0 %v3500
        %3502 = vperm.xlu0 %3501, %v3497
        %v3503 = vpop.permute.xlu0 %3502
        %v3504 = vperm.slane %v3468, 5
        %v3505 = vlaneseq
        %v3506 = vshrl.u32 %v3505, 7
        %v3507 = vadd.s32 %v3506, 14
        %3508 = vset.pattern.permute.xlu0 %v3507
        %3509 = vperm.xlu0 %3508, %v3504
        %v3510 = vpop.permute.xlu0 %3509
        %v3511 = vperm.slane %v3468, 6
        %v3512 = vlaneseq
        %v3513 = vshrl.u32 %v3512, 7
        %v3514 = vadd.s32 %v3513, 14
        %3515 = vset.pattern.permute.xlu0 %v3514
        %3516 = vperm.xlu0 %3515, %v3511
        %v3517 = vpop.permute.xlu0 %3516
        %v3518 = vperm.slane %v3468, 7
        %v3519 = vlaneseq
        %v3520 = vshrl.u32 %v3519, 7
        %v3521 = vadd.s32 %v3520, 14
        %3522 = vset.pattern.permute.xlu0 %v3521
        %3523 = vperm.xlu0 %3522, %v3518
        %v3524 = vpop.permute.xlu0 %3523
        %v3525 = vmul.f32 %v2936, %v3475
        %v3526 = vmul.f32 %v2938, %v3482
        %v3527 = vmul.f32 %v2941, %v3489
        %v3528 = vmul.f32 %v2943, %v3496
        %v3529 = vmul.f32 %v2946, %v3503
        %v3530 = vmul.f32 %v2948, %v3510
        %v3531 = vmul.f32 %v2951, %v3517
        %v3532 = vmul.f32 %v2953, %v3524
        %v3533 = vsel %vm2955, %v3525, 0.0
        %v3534 = vsel %vm2955, %v3526, 0.0
        %v3535 = vadd.f32 %v3533, %v3534
        %v3536 = vsel %vm2955, %v3527, 0.0
        %v3537 = vadd.f32 %v3535, %v3536
        %v3538 = vsel %vm2955, %v3528, 0.0
        %v3539 = vadd.f32 %v3537, %v3538
        %v3540 = vsel %vm2955, %v3529, 0.0
        %v3541 = vadd.f32 %v3539, %v3540
        %v3542 = vsel %vm2955, %v3530, 0.0
        %v3543 = vadd.f32 %v3541, %v3542
        %v3544 = vsel %vm2955, %v3531, 0.0
        %v3545 = vadd.f32 %v3543, %v3544
        %v3546 = vsel %vm2955, %v3532, 0.0
        %v3547 = vadd.f32 %v3545, %v3546
        %v3548 = vrot.slane %v3547, 4
        %v3549 = vadd.f32 %v3547, %v3548
        %v3550 = vrot.slane %v3549, 2
        %v3551 = vadd.f32 %v3549, %v3550
        %v3552 = vrot.slane %v3551, 1
        %v3553 = vadd.f32 %v3551, %v3552
        %v3554 = vrcp.pop 64.0
        %v3555 = vmul.f32 64.0, %v3554
        %v3556 = vsub.f32 1.0, %v3555
        %v3557 = vmul.f32 %v3554, %v3556
        %v3558 = vadd.f32 %v3554, %v3557
        %vm3559 = vweird.f32 %v3554
        %v3560 = vsel %vm3559, %v3554, %v3558
        %v3561 = vmul.f32 %v3553, %v3560
        %v3562 = vld [vmem:[%s3] sm:$0xff]
        %v3563 = vld [vmem:[%s3 + $0x8] sm:$0xff]
        %v3564 = vld [vmem:[%s3 + $0x10] sm:$0xff]
        %v3565 = vld [vmem:[%s3 + $0x18] sm:$0xff]
        %v3567 = vsel %vm2955, %v3561, 0
        %3569 = vmatpush.msra.mxu0 0.0
        %3570 = vmatpush.msra.mxu0 0.0
        %3571 = vmatpush.msra.mxu0 0.0
        %3572 = vmatpush.msra.mxu0 0.0
        %3573 = vmatpush.msra.mxu0 0.0
        %3574 = vmatpush.msra.mxu0 0.0
        %3575 = vmatpush.msra.mxu0 0.0
        %3576 = vmatpush.msra.mxu0 0.0
        %3577 = vmatpush.msra.mxu0 0.0
        %3578 = vmatpush.msra.mxu0 0.0
        %3579 = vmatpush.msra.mxu0 0.0
        %3580 = vmatpush.msra.mxu0 0.0
        %3581 = vmatpush.msra.mxu0 %v3565
        %3582 = vmatpush.msra.mxu0 %v3564
        %3583 = vmatpush.msra.mxu0 %v3563
        %3584 = vmatpush.msra.mxu0 %v3562
        %3585 = vmatmul.f32.gmra.mxu0 %v3567
        %v3586 = vpop.f32.mrf.mxu0
        %v3587 = vadd.f32 0.0, %v3586
        %3588 = vdwg.mxu0
        %v3589 = vmax.f32 %v3587, 0.0
        %v3590 = vld [vmem:[%s4] sm:$0x3]
        %vm3591 = vcmask 15360
        %v3593 = vsel %vm3591, %v3589, 0
        %v3596 = vsel %vm2922, %v3590, 0
        %3598 = vmatpush.msra.mxu0 0.0
        %3599 = vmatpush.msra.mxu0 0.0
        %3600 = vmatpush.msra.mxu0 0.0
        %3601 = vmatpush.msra.mxu0 0.0
        %3602 = vmatpush.msra.mxu0 0.0
        %3603 = vmatpush.msra.mxu0 0.0
        %3604 = vmatpush.msra.mxu0 0.0
        %3605 = vmatpush.msra.mxu0 0.0
        %3606 = vmatpush.msra.mxu0 0.0
        %3607 = vmatpush.msra.mxu0 0.0
        %3608 = vmatpush.msra.mxu0 0.0
        %3609 = vmatpush.msra.mxu0 0.0
        %3610 = vmatpush.msra.mxu0 0.0
        %3611 = vmatpush.msra.mxu0 0.0
        %3612 = vmatpush.msra.mxu0 0.0
        %3613 = vmatpush.msra.mxu0 %v3596
        %3614 = vmatmul.f32.gmra.mxu0 %v3593
        %v3615 = vpop.f32.mrf.mxu0
        %v3616 = vadd.f32 0.0, %v3615
        %3617 = vdwg.mxu0
        %v3618 = vxor.u32 %v3616, 2147483648
        %v3619 = vmul.f32 %v3618, 1.442695
        %v3620 = vpow.pop %v3619
        %v3621 = vadd.f32 %v3620, 1.0
        %v3622 = vrcp.pop %v3621
        %v3623 = vmul.f32 %v3621, %v3622
        %v3624 = vsub.f32 1.0, %v3623
        %v3625 = vmul.f32 %v3622, %v3624
        %v3626 = vadd.f32 %v3622, %v3625
        %vm3627 = vweird.f32 %v3621
        %vm3628 = vweird.f32 %v3622
        %vm3629 = vmor %vm3627, %vm3628
        %v3630 = vsel %vm3629, %v3622, %v3626
        %v3631 = vand.u32 2147483647, %v3621
        %vm3632 = vcmp.eq.f32.partialorder %v3631, 8.507059e+37
        %v3633 = vand.u32 %v3621, 2147483648
        %v3634 = vor.u32 1.1754944e-38, %v3633
        %v3635 = vsel %vm3632, %v3634, %v3630
        %v3636 = vmul.f32 1.0, %v3635
        %v3637 = vperm.slane %v3636, 0
        %v3638 = vmul.f32 %v3525, %v3637
        %v3639 = vmul.f32 %v3526, %v3637
        %v3640 = vmul.f32 %v3527, %v3637
        %v3641 = vmul.f32 %v3528, %v3637
        %v3642 = vmul.f32 %v3529, %v3637
        %v3643 = vmul.f32 %v3530, %v3637
        %v3644 = vmul.f32 %v3531, %v3637
        %v3645 = vmul.f32 %v3532, %v3637
        %v3646 = vpack.c.bf16 %v3639, %v3638
        %v3647 = vpack.c.bf16 %v3641, %v3640
        %v3648 = vpack.c.bf16 %v3643, %v3642
        %v3649 = vpack.c.bf16 %v3645, %v3644
        %v3650 = vld [vmem:[%s368] sm:$0xf]
        %v3651 = vld [vmem:[%s368 + $0x4] sm:$0xf]
        %v3652 = vld [vmem:[%s368 + $0x8] sm:$0xf]
        %v3653 = vld [vmem:[%s368 + $0xc] sm:$0xf]
        %v3654 = vld [vmem:[%s368 + $0x10] sm:$0xf]
        %v3655 = vld [vmem:[%s368 + $0x14] sm:$0xf]
        %v3656 = vld [vmem:[%s368 + $0x18] sm:$0xf]
        %v3657 = vld [vmem:[%s368 + $0x1c] sm:$0xf]
        %v3658 = vld [vmem:[%s5] sm:$0xf]
        %v3659 = vld [vmem:[%s5 + $0x4] sm:$0xf]
        %v3660 = vld [vmem:[%s5 + $0x8] sm:$0xf]
        %v3661 = vld [vmem:[%s5 + $0xc] sm:$0xf]
        %v3662 = vld [vmem:[%s6] sm:$0xf]
        %v3663 = vld [vmem:[%s6 + $0x4] sm:$0xf]
        %v3672 = vunpack.c.l.b16 %v3650
        %v3673 = vunpack.c.l.b16 %v3651
        %v3674 = vunpack.c.l.b16 %v3652
        %v3675 = vunpack.c.l.b16 %v3653
        %v3676 = vunpack.c.l.b16 %v3654
        %v3677 = vunpack.c.l.b16 %v3655
        %v3678 = vunpack.c.l.b16 %v3656
        %v3679 = vunpack.c.l.b16 %v3657
        %v3680 = vpack.c.b16 %v3673, %v3672
        %v3681 = vpack.c.b16 %v3675, %v3674
        %v3682 = vpack.c.b16 %v3677, %v3676
        %v3683 = vpack.c.b16 %v3679, %v3678
        %v3686 = vunpack.c.l.b16 %v3662
        %v3687 = vunpack.c.l.b16 %v3663
        %v3688 = vpack.c.b16 %v3687, %v3686
        %v3691 = vsel %vm493, %v3680, 0
        %v3694 = vsel %vm493, %v3681, 0
        %v3697 = vsel %vm493, %v3682, 0
        %v3700 = vsel %vm493, %v3683, 0
        %3702 = vmatpush.bf16.msra.mxu0 0
        %3703 = vmatpush.bf16.msra.mxu0 0
        %3704 = vmatpush.bf16.msra.mxu0 0
        %3705 = vmatpush.bf16.msra.mxu0 0
        %3706 = vmatpush.bf16.msra.mxu0 0
        %3707 = vmatpush.bf16.msra.mxu0 0
        %3708 = vmatpush.bf16.msra.mxu0 0
        %3709 = vmatpush.bf16.msra.mxu0 %v3688
        %3710 = vmatmul.bf16.gmra.mxu0 %v3691
        %v3711 = vpop.f32.mrf.mxu0
        %v3712 = vadd.f32 0.0, %v3711
        %v3713 = vpop.f32.mrf.mxu0
        %v3714 = vadd.f32 0.0, %v3713
        %3715 = vmatmul.bf16.gmra.mxu0 %v3694
        %v3716 = vpop.f32.mrf.mxu0
        %v3717 = vadd.f32 0.0, %v3716
        %v3718 = vpop.f32.mrf.mxu0
        %v3719 = vadd.f32 0.0, %v3718
        %3720 = vmatmul.bf16.gmra.mxu0 %v3697
        %v3721 = vpop.f32.mrf.mxu0
        %v3722 = vadd.f32 0.0, %v3721
        %v3723 = vpop.f32.mrf.mxu0
        %v3724 = vadd.f32 0.0, %v3723
        %3725 = vmatmul.bf16.gmra.mxu0 %v3700
        %v3726 = vpop.f32.mrf.mxu0
        %v3727 = vadd.f32 0.0, %v3726
        %v3728 = vpop.f32.mrf.mxu0
        %v3729 = vadd.f32 0.0, %v3728
        %3730 = vdwg.mxu0
        %v3735 = vunpack.c.l.b16 %v3658
        %v3736 = vunpack.c.l.b16 %v3659
        %v3737 = vunpack.c.l.b16 %v3660
        %v3738 = vunpack.c.l.b16 %v3661
        %v3739 = vpack.c.b16 %v3736, %v3735
        %v3740 = vpack.c.b16 %v3738, %v3737
        %v3744 = vsel %vm2955, %v3646, 0
        %v3747 = vsel %vm2955, %v3647, 0
        %v3750 = vsel %vm2955, %v3648, 0
        %v3753 = vsel %vm2955, %v3649, 0
        %3755 = vmatpush.bf16.msra.mxu0 0
        %3756 = vmatpush.bf16.msra.mxu0 0
        %3757 = vmatpush.bf16.msra.mxu0 0
        %3758 = vmatpush.bf16.msra.mxu0 0
        %3759 = vmatpush.bf16.msra.mxu0 0
        %3760 = vmatpush.bf16.msra.mxu0 0
        %3761 = vmatpush.bf16.msra.mxu0 %v3740
        %3762 = vmatpush.bf16.msra.mxu0 %v3739
        %3763 = vmatmul.bf16.gmra.mxu0 %v3744
        %v3764 = vpop.f32.mrf.mxu0
        %v3765 = vadd.f32 %v3712, %v3764
        %v3766 = vpop.f32.mrf.mxu0
        %v3767 = vadd.f32 %v3714, %v3766
        %3768 = vmatmul.bf16.gmra.mxu0 %v3747
        %v3769 = vpop.f32.mrf.mxu0
        %v3770 = vadd.f32 %v3717, %v3769
        %v3771 = vpop.f32.mrf.mxu0
        %v3772 = vadd.f32 %v3719, %v3771
        %3773 = vmatmul.bf16.gmra.mxu0 %v3750
        %v3774 = vpop.f32.mrf.mxu0
        %v3775 = vadd.f32 %v3722, %v3774
        %v3776 = vpop.f32.mrf.mxu0
        %v3777 = vadd.f32 %v3724, %v3776
        %3778 = vmatmul.bf16.gmra.mxu0 %v3753
        %v3779 = vpop.f32.mrf.mxu0
        %v3780 = vadd.f32 %v3727, %v3779
        %v3781 = vpop.f32.mrf.mxu0
        %v3782 = vadd.f32 %v3729, %v3781
        %3783 = vdwg.mxu0
        %v3784 = vpack.c.bf16 %v3765, %v3765
        %v3785 = vpack.c.bf16 %v3767, %v3767
        %v3786 = vpack.c.bf16 %v3770, %v3770
        %v3787 = vpack.c.bf16 %v3772, %v3772
        %v3788 = vpack.c.bf16 %v3775, %v3775
        %v3789 = vpack.c.bf16 %v3777, %v3777
        %v3790 = vpack.c.bf16 %v3780, %v3780
        %v3791 = vpack.c.bf16 %v3782, %v3782
        %3792 = vst.msk [vmem:[%s392 + $0x8] sm:$0xf] %vm375, %v3784
        %3793 = vst.msk [vmem:[%s392 + $0x18] sm:$0xf] %vm375, %v3785
        %3794 = vst.msk [vmem:[%s392 + $0x28] sm:$0xf] %vm375, %v3786
        %3795 = vst.msk [vmem:[%s392 + $0x38] sm:$0xf] %vm375, %v3787
        %3796 = vst.msk [vmem:[%s392 + $0x48] sm:$0xf] %vm375, %v3788
        %3797 = vst.msk [vmem:[%s392 + $0x58] sm:$0xf] %vm375, %v3789
        %3798 = vst.msk [vmem:[%s392 + $0x68] sm:$0xf] %vm375, %v3790
        %3799 = vst.msk [vmem:[%s392 + $0x78] sm:$0xf] %vm375, %v3791
        %v3800 = vld [vmem:[#allocation2 + $0x4] sm:$0x8]
        %v3801 = vld [vmem:[#allocation2 + $0x8] sm:$0xf]
        %v3802 = vld [vmem:[#allocation2 + $0x14] sm:$0x8]
        %v3803 = vld [vmem:[#allocation2 + $0x18] sm:$0xf]
        %v3804 = vld [vmem:[#allocation2 + $0x24] sm:$0x8]
        %v3805 = vld [vmem:[#allocation2 + $0x28] sm:$0xf]
        %v3806 = vld [vmem:[#allocation2 + $0x34] sm:$0x8]
        %v3807 = vld [vmem:[#allocation2 + $0x38] sm:$0xf]
        %v3808 = vld [vmem:[#allocation2 + $0x44] sm:$0x8]
        %v3809 = vld [vmem:[#allocation2 + $0x48] sm:$0xf]
        %v3810 = vld [vmem:[#allocation2 + $0x54] sm:$0x8]
        %v3811 = vld [vmem:[#allocation2 + $0x58] sm:$0xf]
        %v3812 = vld [vmem:[#allocation2 + $0x64] sm:$0x8]
        %v3813 = vld [vmem:[#allocation2 + $0x68] sm:$0xf]
        %v3814 = vld [vmem:[#allocation2 + $0x74] sm:$0x8]
        %v3815 = vld [vmem:[#allocation2 + $0x78] sm:$0xf]
        %v3817 = vshrl.u32 %v3800, 16
        %v3819 = vrot.slane %v3817, 7
        %v3820 = vrot.slane %v3819, 4
        %v3822 = vshrl.u32 %v3801, 16
        %v3824 = vrot.slane %v3822, 7
        %v3825 = vshll.u32 %v3801, 16
        %v3827 = vor.u32 %v3824, %v3825
        %v3828 = vsel %vm534, %v3820, %v3827
        %v3830 = vshrl.u32 %v3802, 16
        %v3832 = vrot.slane %v3830, 7
        %v3833 = vrot.slane %v3832, 4
        %v3835 = vshrl.u32 %v3803, 16
        %v3837 = vrot.slane %v3835, 7
        %v3838 = vshll.u32 %v3803, 16
        %v3840 = vor.u32 %v3837, %v3838
        %v3841 = vsel %vm534, %v3833, %v3840
        %v3843 = vshrl.u32 %v3804, 16
        %v3845 = vrot.slane %v3843, 7
        %v3846 = vrot.slane %v3845, 4
        %v3848 = vshrl.u32 %v3805, 16
        %v3850 = vrot.slane %v3848, 7
        %v3851 = vshll.u32 %v3805, 16
        %v3853 = vor.u32 %v3850, %v3851
        %v3854 = vsel %vm534, %v3846, %v3853
        %v3856 = vshrl.u32 %v3806, 16
        %v3858 = vrot.slane %v3856, 7
        %v3859 = vrot.slane %v3858, 4
        %v3861 = vshrl.u32 %v3807, 16
        %v3863 = vrot.slane %v3861, 7
        %v3864 = vshll.u32 %v3807, 16
        %v3866 = vor.u32 %v3863, %v3864
        %v3867 = vsel %vm534, %v3859, %v3866
        %v3869 = vshrl.u32 %v3808, 16
        %v3871 = vrot.slane %v3869, 7
        %v3872 = vrot.slane %v3871, 4
        %v3874 = vshrl.u32 %v3809, 16
        %v3876 = vrot.slane %v3874, 7
        %v3877 = vshll.u32 %v3809, 16
        %v3879 = vor.u32 %v3876, %v3877
        %v3880 = vsel %vm534, %v3872, %v3879
        %v3882 = vshrl.u32 %v3810, 16
        %v3884 = vrot.slane %v3882, 7
        %v3885 = vrot.slane %v3884, 4
        %v3887 = vshrl.u32 %v3811, 16
        %v3889 = vrot.slane %v3887, 7
        %v3890 = vshll.u32 %v3811, 16
        %v3892 = vor.u32 %v3889, %v3890
        %v3893 = vsel %vm534, %v3885, %v3892
        %v3895 = vshrl.u32 %v3812, 16
        %v3897 = vrot.slane %v3895, 7
        %v3898 = vrot.slane %v3897, 4
        %v3900 = vshrl.u32 %v3813, 16
        %v3902 = vrot.slane %v3900, 7
        %v3903 = vshll.u32 %v3813, 16
        %v3905 = vor.u32 %v3902, %v3903
        %v3906 = vsel %vm534, %v3898, %v3905
        %v3908 = vshrl.u32 %v3814, 16
        %v3910 = vrot.slane %v3908, 7
        %v3911 = vrot.slane %v3910, 4
        %v3913 = vshrl.u32 %v3815, 16
        %v3915 = vrot.slane %v3913, 7
        %v3916 = vshll.u32 %v3815, 16
        %v3918 = vor.u32 %v3915, %v3916
        %v3919 = vsel %vm534, %v3911, %v3918
        %3928 = vst.msk [vmem:[#allocation4] sm:$0xf] %vm375, %v3828
        %3929 = vst.msk [vmem:[#allocation4 + $0x8] sm:$0xf] %vm375, %v3841
        %3930 = vst.msk [vmem:[#allocation4 + $0x10] sm:$0xf] %vm375, %v3854
        %3931 = vst.msk [vmem:[#allocation4 + $0x18] sm:$0xf] %vm375, %v3867
        %3932 = vst.msk [vmem:[#allocation4 + $0x20] sm:$0xf] %vm375, %v3880
        %3933 = vst.msk [vmem:[#allocation4 + $0x28] sm:$0xf] %vm375, %v3893
        %3934 = vst.msk [vmem:[#allocation4 + $0x30] sm:$0xf] %vm375, %v3906
        %3935 = vst.msk [vmem:[#allocation4 + $0x38] sm:$0xf] %vm375, %v3919
        %v3936 = vld [vmem:[#allocation2 + $0x8] sm:$0xf]
        %v3937 = vld [vmem:[#allocation2 + $0x18] sm:$0xf]
        %v3938 = vld [vmem:[#allocation2 + $0x28] sm:$0xf]
        %v3939 = vld [vmem:[#allocation2 + $0x38] sm:$0xf]
        %v3940 = vld [vmem:[#allocation2 + $0x48] sm:$0xf]
        %v3941 = vld [vmem:[#allocation2 + $0x58] sm:$0xf]
        %v3942 = vld [vmem:[#allocation2 + $0x68] sm:$0xf]
        %v3943 = vld [vmem:[#allocation2 + $0x78] sm:$0xf]
        %3952 = vrot.lane.b32.xlu0 %v3936, 16
        %v3953 = vpop.permute.xlu0 %3952
        %3954 = vrot.lane.b32.xlu0 %v3937, 16
        %v3955 = vpop.permute.xlu0 %3954
        %3956 = vrot.lane.b32.xlu0 %v3938, 16
        %v3957 = vpop.permute.xlu0 %3956
        %3958 = vrot.lane.b32.xlu0 %v3939, 16
        %v3959 = vpop.permute.xlu0 %3958
        %3960 = vrot.lane.b32.xlu0 %v3940, 16
        %v3961 = vpop.permute.xlu0 %3960
        %3962 = vrot.lane.b32.xlu0 %v3941, 16
        %v3963 = vpop.permute.xlu0 %3962
        %3964 = vrot.lane.b32.xlu0 %v3942, 16
        %v3965 = vpop.permute.xlu0 %3964
        %3966 = vrot.lane.b32.xlu0 %v3943, 16
        %v3967 = vpop.permute.xlu0 %3966
        %3976 = vst.msk [vmem:[#allocation4] sm:$0xf] %vm695, %v3953
        %3977 = vst.msk [vmem:[#allocation4 + $0x8] sm:$0xf] %vm695, %v3955
        %3978 = vst.msk [vmem:[#allocation4 + $0x10] sm:$0xf] %vm695, %v3957
        %3979 = vst.msk [vmem:[#allocation4 + $0x18] sm:$0xf] %vm695, %v3959
        %3980 = vst.msk [vmem:[#allocation4 + $0x20] sm:$0xf] %vm695, %v3961
        %3981 = vst.msk [vmem:[#allocation4 + $0x28] sm:$0xf] %vm695, %v3963
        %3982 = vst.msk [vmem:[#allocation4 + $0x30] sm:$0xf] %vm695, %v3965
        %3983 = vst.msk [vmem:[#allocation4 + $0x38] sm:$0xf] %vm695, %v3967
        %v3984 = vld [vmem:[#allocation2 + $0x8] sm:$0xf]
        %v3985 = vld [vmem:[#allocation2 + $0xc] sm:$0x1]
        %v3986 = vld [vmem:[#allocation2 + $0x18] sm:$0xf]
        %v3987 = vld [vmem:[#allocation2 + $0x1c] sm:$0x1]
        %v3988 = vld [vmem:[#allocation2 + $0x28] sm:$0xf]
        %v3989 = vld [vmem:[#allocation2 + $0x2c] sm:$0x1]
        %v3990 = vld [vmem:[#allocation2 + $0x38] sm:$0xf]
        %v3991 = vld [vmem:[#allocation2 + $0x3c] sm:$0x1]
        %v3992 = vld [vmem:[#allocation2 + $0x48] sm:$0xf]
        %v3993 = vld [vmem:[#allocation2 + $0x4c] sm:$0x1]
        %v3994 = vld [vmem:[#allocation2 + $0x58] sm:$0xf]
        %v3995 = vld [vmem:[#allocation2 + $0x5c] sm:$0x1]
        %v3996 = vld [vmem:[#allocation2 + $0x68] sm:$0xf]
        %v3997 = vld [vmem:[#allocation2 + $0x6c] sm:$0x1]
        %v3998 = vld [vmem:[#allocation2 + $0x78] sm:$0xf]
        %v3999 = vld [vmem:[#allocation2 + $0x7c] sm:$0x1]
        %v4001 = vshrl.u32 %v3984, 16
        %v4003 = vrot.slane %v4001, 4
        %v4004 = vshll.u32 %v3984, 16
        %v4006 = vrot.slane %v4004, 5
        %v4007 = vor.u32 %v4003, %v4006
        %v4008 = vrot.slane %v4007, 4
        %v4010 = vshll.u32 %v3985, 16
        %v4012 = vrot.slane %v4010, 5
        %v4013 = vsel %vm722, %v4008, %v4012
        %v4015 = vshrl.u32 %v3986, 16
        %v4017 = vrot.slane %v4015, 4
        %v4018 = vshll.u32 %v3986, 16
        %v4020 = vrot.slane %v4018, 5
        %v4021 = vor.u32 %v4017, %v4020
        %v4022 = vrot.slane %v4021, 4
        %v4024 = vshll.u32 %v3987, 16
        %v4026 = vrot.slane %v4024, 5
        %v4027 = vsel %vm722, %v4022, %v4026
        %v4029 = vshrl.u32 %v3988, 16
        %v4031 = vrot.slane %v4029, 4
        %v4032 = vshll.u32 %v3988, 16
        %v4034 = vrot.slane %v4032, 5
        %v4035 = vor.u32 %v4031, %v4034
        %v4036 = vrot.slane %v4035, 4
        %v4038 = vshll.u32 %v3989, 16
        %v4040 = vrot.slane %v4038, 5
        %v4041 = vsel %vm722, %v4036, %v4040
        %v4043 = vshrl.u32 %v3990, 16
        %v4045 = vrot.slane %v4043, 4
        %v4046 = vshll.u32 %v3990, 16
        %v4048 = vrot.slane %v4046, 5
        %v4049 = vor.u32 %v4045, %v4048
        %v4050 = vrot.slane %v4049, 4
        %v4052 = vshll.u32 %v3991, 16
        %v4054 = vrot.slane %v4052, 5
        %v4055 = vsel %vm722, %v4050, %v4054
        %v4057 = vshrl.u32 %v3992, 16
        %v4059 = vrot.slane %v4057, 4
        %v4060 = vshll.u32 %v3992, 16
        %v4062 = vrot.slane %v4060, 5
        %v4063 = vor.u32 %v4059, %v4062
        %v4064 = vrot.slane %v4063, 4
        %v4066 = vshll.u32 %v3993, 16
        %v4068 = vrot.slane %v4066, 5
        %v4069 = vsel %vm722, %v4064, %v4068
        %v4071 = vshrl.u32 %v3994, 16
        %v4073 = vrot.slane %v4071, 4
        %v4074 = vshll.u32 %v3994, 16
        %v4076 = vrot.slane %v4074, 5
        %v4077 = vor.u32 %v4073, %v4076
        %v4078 = vrot.slane %v4077, 4
        %v4080 = vshll.u32 %v3995, 16
        %v4082 = vrot.slane %v4080, 5
        %v4083 = vsel %vm722, %v4078, %v4082
        %v4085 = vshrl.u32 %v3996, 16
        %v4087 = vrot.slane %v4085, 4
        %v4088 = vshll.u32 %v3996, 16
        %v4090 = vrot.slane %v4088, 5
        %v4091 = vor.u32 %v4087, %v4090
        %v4092 = vrot.slane %v4091, 4
        %v4094 = vshll.u32 %v3997, 16
        %v4096 = vrot.slane %v4094, 5
        %v4097 = vsel %vm722, %v4092, %v4096
        %v4099 = vshrl.u32 %v3998, 16
        %v4101 = vrot.slane %v4099, 4
        %v4102 = vshll.u32 %v3998, 16
        %v4104 = vrot.slane %v4102, 5
        %v4105 = vor.u32 %v4101, %v4104
        %v4106 = vrot.slane %v4105, 4
        %v4108 = vshll.u32 %v3999, 16
        %v4110 = vrot.slane %v4108, 5
        %v4111 = vsel %vm722, %v4106, %v4110
        %4112 = vrot.lane.b32.xlu0 %v4013, 32
        %v4113 = vpop.permute.xlu0 %4112
        %4114 = vrot.lane.b32.xlu0 %v4027, 32
        %v4115 = vpop.permute.xlu0 %4114
        %4116 = vrot.lane.b32.xlu0 %v4041, 32
        %v4117 = vpop.permute.xlu0 %4116
        %4118 = vrot.lane.b32.xlu0 %v4055, 32
        %v4119 = vpop.permute.xlu0 %4118
        %4120 = vrot.lane.b32.xlu0 %v4069, 32
        %v4121 = vpop.permute.xlu0 %4120
        %4122 = vrot.lane.b32.xlu0 %v4083, 32
        %v4123 = vpop.permute.xlu0 %4122
        %4124 = vrot.lane.b32.xlu0 %v4097, 32
        %v4125 = vpop.permute.xlu0 %4124
        %4126 = vrot.lane.b32.xlu0 %v4111, 32
        %v4127 = vpop.permute.xlu0 %4126
        %4136 = vst.msk [vmem:[#allocation4] sm:$0xf] %vm859, %v4113
        %4137 = vst.msk [vmem:[#allocation4 + $0x8] sm:$0xf] %vm859, %v4115
        %4138 = vst.msk [vmem:[#allocation4 + $0x10] sm:$0xf] %vm859, %v4117
        %4139 = vst.msk [vmem:[#allocation4 + $0x18] sm:$0xf] %vm859, %v4119
        %4140 = vst.msk [vmem:[#allocation4 + $0x20] sm:$0xf] %vm859, %v4121
        %4141 = vst.msk [vmem:[#allocation4 + $0x28] sm:$0xf] %vm859, %v4123
        %4142 = vst.msk [vmem:[#allocation4 + $0x30] sm:$0xf] %vm859, %v4125
        %4143 = vst.msk [vmem:[#allocation4 + $0x38] sm:$0xf] %vm859, %v4127
        %v4144 = vld [vmem:[%s392 + $0x4] sm:$0x8]
        %v4145 = vld [vmem:[%s392 + $0x8] sm:$0xf]
        %v4146 = vld [vmem:[%s392 + $0x14] sm:$0x8]
        %v4147 = vld [vmem:[%s392 + $0x18] sm:$0xf]
        %v4148 = vld [vmem:[%s392 + $0x24] sm:$0x8]
        %v4149 = vld [vmem:[%s392 + $0x28] sm:$0xf]
        %v4150 = vld [vmem:[%s392 + $0x34] sm:$0x8]
        %v4151 = vld [vmem:[%s392 + $0x38] sm:$0xf]
        %v4152 = vld [vmem:[%s392 + $0x44] sm:$0x8]
        %v4153 = vld [vmem:[%s392 + $0x48] sm:$0xf]
        %v4154 = vld [vmem:[%s392 + $0x54] sm:$0x8]
        %v4155 = vld [vmem:[%s392 + $0x58] sm:$0xf]
        %v4156 = vld [vmem:[%s392 + $0x64] sm:$0x8]
        %v4157 = vld [vmem:[%s392 + $0x68] sm:$0xf]
        %v4158 = vld [vmem:[%s392 + $0x74] sm:$0x8]
        %v4159 = vld [vmem:[%s392 + $0x78] sm:$0xf]
        %v4161 = vshrl.u32 %v4144, 16
        %v4163 = vrot.slane %v4161, 7
        %v4164 = vrot.slane %v4163, 4
        %v4166 = vshrl.u32 %v4145, 16
        %v4168 = vrot.slane %v4166, 7
        %v4169 = vshll.u32 %v4145, 16
        %v4171 = vor.u32 %v4168, %v4169
        %v4172 = vsel %vm534, %v4164, %v4171
        %v4174 = vshrl.u32 %v4146, 16
        %v4176 = vrot.slane %v4174, 7
        %v4177 = vrot.slane %v4176, 4
        %v4179 = vshrl.u32 %v4147, 16
        %v4181 = vrot.slane %v4179, 7
        %v4182 = vshll.u32 %v4147, 16
        %v4184 = vor.u32 %v4181, %v4182
        %v4185 = vsel %vm534, %v4177, %v4184
        %v4187 = vshrl.u32 %v4148, 16
        %v4189 = vrot.slane %v4187, 7
        %v4190 = vrot.slane %v4189, 4
        %v4192 = vshrl.u32 %v4149, 16
        %v4194 = vrot.slane %v4192, 7
        %v4195 = vshll.u32 %v4149, 16
        %v4197 = vor.u32 %v4194, %v4195
        %v4198 = vsel %vm534, %v4190, %v4197
        %v4200 = vshrl.u32 %v4150, 16
        %v4202 = vrot.slane %v4200, 7
        %v4203 = vrot.slane %v4202, 4
        %v4205 = vshrl.u32 %v4151, 16
        %v4207 = vrot.slane %v4205, 7
        %v4208 = vshll.u32 %v4151, 16
        %v4210 = vor.u32 %v4207, %v4208
        %v4211 = vsel %vm534, %v4203, %v4210
        %v4213 = vshrl.u32 %v4152, 16
        %v4215 = vrot.slane %v4213, 7
        %v4216 = vrot.slane %v4215, 4
        %v4218 = vshrl.u32 %v4153, 16
        %v4220 = vrot.slane %v4218, 7
        %v4221 = vshll.u32 %v4153, 16
        %v4223 = vor.u32 %v4220, %v4221
        %v4224 = vsel %vm534, %v4216, %v4223
        %v4226 = vshrl.u32 %v4154, 16
        %v4228 = vrot.slane %v4226, 7
        %v4229 = vrot.slane %v4228, 4
        %v4231 = vshrl.u32 %v4155, 16
        %v4233 = vrot.slane %v4231, 7
        %v4234 = vshll.u32 %v4155, 16
        %v4236 = vor.u32 %v4233, %v4234
        %v4237 = vsel %vm534, %v4229, %v4236
        %v4239 = vshrl.u32 %v4156, 16
        %v4241 = vrot.slane %v4239, 7
        %v4242 = vrot.slane %v4241, 4
        %v4244 = vshrl.u32 %v4157, 16
        %v4246 = vrot.slane %v4244, 7
        %v4247 = vshll.u32 %v4157, 16
        %v4249 = vor.u32 %v4246, %v4247
        %v4250 = vsel %vm534, %v4242, %v4249
        %v4252 = vshrl.u32 %v4158, 16
        %v4254 = vrot.slane %v4252, 7
        %v4255 = vrot.slane %v4254, 4
        %v4257 = vshrl.u32 %v4159, 16
        %v4259 = vrot.slane %v4257, 7
        %v4260 = vshll.u32 %v4159, 16
        %v4262 = vor.u32 %v4259, %v4260
        %v4263 = vsel %vm534, %v4255, %v4262
        %4264 = vrot.lane.b32.xlu0 %v4172, 48
        %v4265 = vpop.permute.xlu0 %4264
        %4266 = vrot.lane.b32.xlu0 %v4185, 48
        %v4267 = vpop.permute.xlu0 %4266
        %4268 = vrot.lane.b32.xlu0 %v4198, 48
        %v4269 = vpop.permute.xlu0 %4268
        %4270 = vrot.lane.b32.xlu0 %v4211, 48
        %v4271 = vpop.permute.xlu0 %4270
        %4272 = vrot.lane.b32.xlu0 %v4224, 48
        %v4273 = vpop.permute.xlu0 %4272
        %4274 = vrot.lane.b32.xlu0 %v4237, 48
        %v4275 = vpop.permute.xlu0 %4274
        %4276 = vrot.lane.b32.xlu0 %v4250, 48
        %v4277 = vpop.permute.xlu0 %4276
        %4278 = vrot.lane.b32.xlu0 %v4263, 48
        %v4279 = vpop.permute.xlu0 %4278
        %4288 = vst.msk [vmem:[#allocation4] sm:$0xf] %vm1012, %v4265
        %4289 = vst.msk [vmem:[#allocation4 + $0x8] sm:$0xf] %vm1012, %v4267
        %4290 = vst.msk [vmem:[#allocation4 + $0x10] sm:$0xf] %vm1012, %v4269
        %4291 = vst.msk [vmem:[#allocation4 + $0x18] sm:$0xf] %vm1012, %v4271
        %4292 = vst.msk [vmem:[#allocation4 + $0x20] sm:$0xf] %vm1012, %v4273
        %4293 = vst.msk [vmem:[#allocation4 + $0x28] sm:$0xf] %vm1012, %v4275
        %4294 = vst.msk [vmem:[#allocation4 + $0x30] sm:$0xf] %vm1012, %v4277
        %4295 = vst.msk [vmem:[#allocation4 + $0x38] sm:$0xf] %vm1012, %v4279
        %v4296 = vld [vmem:[%s392 + $0x8] sm:$0xf]
        %v4297 = vld [vmem:[%s392 + $0x18] sm:$0xf]
        %v4298 = vld [vmem:[%s392 + $0x28] sm:$0xf]
        %v4299 = vld [vmem:[%s392 + $0x38] sm:$0xf]
        %v4300 = vld [vmem:[%s392 + $0x48] sm:$0xf]
        %v4301 = vld [vmem:[%s392 + $0x58] sm:$0xf]
        %v4302 = vld [vmem:[%s392 + $0x68] sm:$0xf]
        %v4303 = vld [vmem:[%s392 + $0x78] sm:$0xf]
        %4312 = vrot.lane.b32.xlu0 %v4296, 64
        %v4313 = vpop.permute.xlu0 %4312
        %4314 = vrot.lane.b32.xlu0 %v4297, 64
        %v4315 = vpop.permute.xlu0 %4314
        %4316 = vrot.lane.b32.xlu0 %v4298, 64
        %v4317 = vpop.permute.xlu0 %4316
        %4318 = vrot.lane.b32.xlu0 %v4299, 64
        %v4319 = vpop.permute.xlu0 %4318
        %4320 = vrot.lane.b32.xlu0 %v4300, 64
        %v4321 = vpop.permute.xlu0 %4320
        %4322 = vrot.lane.b32.xlu0 %v4301, 64
        %v4323 = vpop.permute.xlu0 %4322
        %4324 = vrot.lane.b32.xlu0 %v4302, 64
        %v4325 = vpop.permute.xlu0 %4324
        %4326 = vrot.lane.b32.xlu0 %v4303, 64
        %v4327 = vpop.permute.xlu0 %4326
        %4336 = vst.msk [vmem:[#allocation4] sm:$0xf] %vm1061, %v4313
        %4337 = vst.msk [vmem:[#allocation4 + $0x8] sm:$0xf] %vm1061, %v4315
        %4338 = vst.msk [vmem:[#allocation4 + $0x10] sm:$0xf] %vm1061, %v4317
        %4339 = vst.msk [vmem:[#allocation4 + $0x18] sm:$0xf] %vm1061, %v4319
        %4340 = vst.msk [vmem:[#allocation4 + $0x20] sm:$0xf] %vm1061, %v4321
        %4341 = vst.msk [vmem:[#allocation4 + $0x28] sm:$0xf] %vm1061, %v4323
        %4342 = vst.msk [vmem:[#allocation4 + $0x30] sm:$0xf] %vm1061, %v4325
        %4343 = vst.msk [vmem:[#allocation4 + $0x38] sm:$0xf] %vm1061, %v4327
        %v4344 = vld [vmem:[%s392 + $0x8] sm:$0xf]
        %v4345 = vld [vmem:[%s392 + $0xc] sm:$0x1]
        %v4346 = vld [vmem:[%s392 + $0x18] sm:$0xf]
        %v4347 = vld [vmem:[%s392 + $0x1c] sm:$0x1]
        %v4348 = vld [vmem:[%s392 + $0x28] sm:$0xf]
        %v4349 = vld [vmem:[%s392 + $0x2c] sm:$0x1]
        %v4350 = vld [vmem:[%s392 + $0x38] sm:$0xf]
        %v4351 = vld [vmem:[%s392 + $0x3c] sm:$0x1]
        %v4352 = vld [vmem:[%s392 + $0x48] sm:$0xf]
        %v4353 = vld [vmem:[%s392 + $0x4c] sm:$0x1]
        %v4354 = vld [vmem:[%s392 + $0x58] sm:$0xf]
        %v4355 = vld [vmem:[%s392 + $0x5c] sm:$0x1]
        %v4356 = vld [vmem:[%s392 + $0x68] sm:$0xf]
        %v4357 = vld [vmem:[%s392 + $0x6c] sm:$0x1]
        %v4358 = vld [vmem:[%s392 + $0x78] sm:$0xf]
        %v4359 = vld [vmem:[%s392 + $0x7c] sm:$0x1]
        %v4361 = vshrl.u32 %v4344, 16
        %v4363 = vrot.slane %v4361, 4
        %v4364 = vshll.u32 %v4344, 16
        %v4366 = vrot.slane %v4364, 5
        %v4367 = vor.u32 %v4363, %v4366
        %v4368 = vrot.slane %v4367, 4
        %v4370 = vshll.u32 %v4345, 16
        %v4372 = vrot.slane %v4370, 5
        %v4373 = vsel %vm722, %v4368, %v4372
        %v4375 = vshrl.u32 %v4346, 16
        %v4377 = vrot.slane %v4375, 4
        %v4378 = vshll.u32 %v4346, 16
        %v4380 = vrot.slane %v4378, 5
        %v4381 = vor.u32 %v4377, %v4380
        %v4382 = vrot.slane %v4381, 4
        %v4384 = vshll.u32 %v4347, 16
        %v4386 = vrot.slane %v4384, 5
        %v4387 = vsel %vm722, %v4382, %v4386
        %v4389 = vshrl.u32 %v4348, 16
        %v4391 = vrot.slane %v4389, 4
        %v4392 = vshll.u32 %v4348, 16
        %v4394 = vrot.slane %v4392, 5
        %v4395 = vor.u32 %v4391, %v4394
        %v4396 = vrot.slane %v4395, 4
        %v4398 = vshll.u32 %v4349, 16
        %v4400 = vrot.slane %v4398, 5
        %v4401 = vsel %vm722, %v4396, %v4400
        %v4403 = vshrl.u32 %v4350, 16
        %v4405 = vrot.slane %v4403, 4
        %v4406 = vshll.u32 %v4350, 16
        %v4408 = vrot.slane %v4406, 5
        %v4409 = vor.u32 %v4405, %v4408
        %v4410 = vrot.slane %v4409, 4
        %v4412 = vshll.u32 %v4351, 16
        %v4414 = vrot.slane %v4412, 5
        %v4415 = vsel %vm722, %v4410, %v4414
        %v4417 = vshrl.u32 %v4352, 16
        %v4419 = vrot.slane %v4417, 4
        %v4420 = vshll.u32 %v4352, 16
        %v4422 = vrot.slane %v4420, 5
        %v4423 = vor.u32 %v4419, %v4422
        %v4424 = vrot.slane %v4423, 4
        %v4426 = vshll.u32 %v4353, 16
        %v4428 = vrot.slane %v4426, 5
        %v4429 = vsel %vm722, %v4424, %v4428
        %v4431 = vshrl.u32 %v4354, 16
        %v4433 = vrot.slane %v4431, 4
        %v4434 = vshll.u32 %v4354, 16
        %v4436 = vrot.slane %v4434, 5
        %v4437 = vor.u32 %v4433, %v4436
        %v4438 = vrot.slane %v4437, 4
        %v4440 = vshll.u32 %v4355, 16
        %v4442 = vrot.slane %v4440, 5
        %v4443 = vsel %vm722, %v4438, %v4442
        %v4445 = vshrl.u32 %v4356, 16
        %v4447 = vrot.slane %v4445, 4
        %v4448 = vshll.u32 %v4356, 16
        %v4450 = vrot.slane %v4448, 5
        %v4451 = vor.u32 %v4447, %v4450
        %v4452 = vrot.slane %v4451, 4
        %v4454 = vshll.u32 %v4357, 16
        %v4456 = vrot.slane %v4454, 5
        %v4457 = vsel %vm722, %v4452, %v4456
        %v4459 = vshrl.u32 %v4358, 16
        %v4461 = vrot.slane %v4459, 4
        %v4462 = vshll.u32 %v4358, 16
        %v4464 = vrot.slane %v4462, 5
        %v4465 = vor.u32 %v4461, %v4464
        %v4466 = vrot.slane %v4465, 4
        %v4468 = vshll.u32 %v4359, 16
        %v4470 = vrot.slane %v4468, 5
        %v4471 = vsel %vm722, %v4466, %v4470
        %4472 = vrot.lane.b32.xlu0 %v4373, 80
        %v4473 = vpop.permute.xlu0 %4472
        %4474 = vrot.lane.b32.xlu0 %v4387, 80
        %v4475 = vpop.permute.xlu0 %4474
        %4476 = vrot.lane.b32.xlu0 %v4401, 80
        %v4477 = vpop.permute.xlu0 %4476
        %4478 = vrot.lane.b32.xlu0 %v4415, 80
        %v4479 = vpop.permute.xlu0 %4478
        %4480 = vrot.lane.b32.xlu0 %v4429, 80
        %v4481 = vpop.permute.xlu0 %4480
        %4482 = vrot.lane.b32.xlu0 %v4443, 80
        %v4483 = vpop.permute.xlu0 %4482
        %4484 = vrot.lane.b32.xlu0 %v4457, 80
        %v4485 = vpop.permute.xlu0 %4484
        %4486 = vrot.lane.b32.xlu0 %v4471, 80
        %v4487 = vpop.permute.xlu0 %4486
        %4496 = vst.msk [vmem:[#allocation4] sm:$0xf] %vm1222, %v4473
        %4497 = vst.msk [vmem:[#allocation4 + $0x8] sm:$0xf] %vm1222, %v4475
        %4498 = vst.msk [vmem:[#allocation4 + $0x10] sm:$0xf] %vm1222, %v4477
        %4499 = vst.msk [vmem:[#allocation4 + $0x18] sm:$0xf] %vm1222, %v4479
        %4500 = vst.msk [vmem:[#allocation4 + $0x20] sm:$0xf] %vm1222, %v4481
        %4501 = vst.msk [vmem:[#allocation4 + $0x28] sm:$0xf] %vm1222, %v4483
        %4502 = vst.msk [vmem:[#allocation4 + $0x30] sm:$0xf] %vm1222, %v4485
        %4503 = vst.msk [vmem:[#allocation4 + $0x38] sm:$0xf] %vm1222, %v4487
        %v4504 = vld [vmem:[%s1231 + $0x4] sm:$0x8]
        %v4505 = vld [vmem:[%s1231 + $0x8] sm:$0xf]
        %v4506 = vld [vmem:[%s1231 + $0x14] sm:$0x8]
        %v4507 = vld [vmem:[%s1231 + $0x18] sm:$0xf]
        %v4508 = vld [vmem:[%s1231 + $0x24] sm:$0x8]
        %v4509 = vld [vmem:[%s1231 + $0x28] sm:$0xf]
        %v4510 = vld [vmem:[%s1231 + $0x34] sm:$0x8]
        %v4511 = vld [vmem:[%s1231 + $0x38] sm:$0xf]
        %v4512 = vld [vmem:[%s1231 + $0x44] sm:$0x8]
        %v4513 = vld [vmem:[%s1231 + $0x48] sm:$0xf]
        %v4514 = vld [vmem:[%s1231 + $0x54] sm:$0x8]
        %v4515 = vld [vmem:[%s1231 + $0x58] sm:$0xf]
        %v4516 = vld [vmem:[%s1231 + $0x64] sm:$0x8]
        %v4517 = vld [vmem:[%s1231 + $0x68] sm:$0xf]
        %v4518 = vld [vmem:[%s1231 + $0x74] sm:$0x8]
        %v4519 = vld [vmem:[%s1231 + $0x78] sm:$0xf]
        %v4521 = vshrl.u32 %v4504, 16
        %v4523 = vrot.slane %v4521, 7
        %v4524 = vrot.slane %v4523, 4
        %v4526 = vshrl.u32 %v4505, 16
        %v4528 = vrot.slane %v4526, 7
        %v4529 = vshll.u32 %v4505, 16
        %v4531 = vor.u32 %v4528, %v4529
        %v4532 = vsel %vm534, %v4524, %v4531
        %v4534 = vshrl.u32 %v4506, 16
        %v4536 = vrot.slane %v4534, 7
        %v4537 = vrot.slane %v4536, 4
        %v4539 = vshrl.u32 %v4507, 16
        %v4541 = vrot.slane %v4539, 7
        %v4542 = vshll.u32 %v4507, 16
        %v4544 = vor.u32 %v4541, %v4542
        %v4545 = vsel %vm534, %v4537, %v4544
        %v4547 = vshrl.u32 %v4508, 16
        %v4549 = vrot.slane %v4547, 7
        %v4550 = vrot.slane %v4549, 4
        %v4552 = vshrl.u32 %v4509, 16
        %v4554 = vrot.slane %v4552, 7
        %v4555 = vshll.u32 %v4509, 16
        %v4557 = vor.u32 %v4554, %v4555
        %v4558 = vsel %vm534, %v4550, %v4557
        %v4560 = vshrl.u32 %v4510, 16
        %v4562 = vrot.slane %v4560, 7
        %v4563 = vrot.slane %v4562, 4
        %v4565 = vshrl.u32 %v4511, 16
        %v4567 = vrot.slane %v4565, 7
        %v4568 = vshll.u32 %v4511, 16
        %v4570 = vor.u32 %v4567, %v4568
        %v4571 = vsel %vm534, %v4563, %v4570
        %v4573 = vshrl.u32 %v4512, 16
        %v4575 = vrot.slane %v4573, 7
        %v4576 = vrot.slane %v4575, 4
        %v4578 = vshrl.u32 %v4513, 16
        %v4580 = vrot.slane %v4578, 7
        %v4581 = vshll.u32 %v4513, 16
        %v4583 = vor.u32 %v4580, %v4581
        %v4584 = vsel %vm534, %v4576, %v4583
        %v4586 = vshrl.u32 %v4514, 16
        %v4588 = vrot.slane %v4586, 7
        %v4589 = vrot.slane %v4588, 4
        %v4591 = vshrl.u32 %v4515, 16
        %v4593 = vrot.slane %v4591, 7
        %v4594 = vshll.u32 %v4515, 16
        %v4596 = vor.u32 %v4593, %v4594
        %v4597 = vsel %vm534, %v4589, %v4596
        %v4599 = vshrl.u32 %v4516, 16
        %v4601 = vrot.slane %v4599, 7
        %v4602 = vrot.slane %v4601, 4
        %v4604 = vshrl.u32 %v4517, 16
        %v4606 = vrot.slane %v4604, 7
        %v4607 = vshll.u32 %v4517, 16
        %v4609 = vor.u32 %v4606, %v4607
        %v4610 = vsel %vm534, %v4602, %v4609
        %v4612 = vshrl.u32 %v4518, 16
        %v4614 = vrot.slane %v4612, 7
        %v4615 = vrot.slane %v4614, 4
        %v4617 = vshrl.u32 %v4519, 16
        %v4619 = vrot.slane %v4617, 7
        %v4620 = vshll.u32 %v4519, 16
        %v4622 = vor.u32 %v4619, %v4620
        %v4623 = vsel %vm534, %v4615, %v4622
        %4624 = vrot.lane.b32.xlu0 %v4532, 96
        %v4625 = vpop.permute.xlu0 %4624
        %4626 = vrot.lane.b32.xlu0 %v4545, 96
        %v4627 = vpop.permute.xlu0 %4626
        %4628 = vrot.lane.b32.xlu0 %v4558, 96
        %v4629 = vpop.permute.xlu0 %4628
        %4630 = vrot.lane.b32.xlu0 %v4571, 96
        %v4631 = vpop.permute.xlu0 %4630
        %4632 = vrot.lane.b32.xlu0 %v4584, 96
        %v4633 = vpop.permute.xlu0 %4632
        %4634 = vrot.lane.b32.xlu0 %v4597, 96
        %v4635 = vpop.permute.xlu0 %4634
        %4636 = vrot.lane.b32.xlu0 %v4610, 96
        %v4637 = vpop.permute.xlu0 %4636
        %4638 = vrot.lane.b32.xlu0 %v4623, 96
        %v4639 = vpop.permute.xlu0 %4638
        %4648 = vst.msk [vmem:[#allocation4] sm:$0xf] %vm1376, %v4625
        %4649 = vst.msk [vmem:[#allocation4 + $0x8] sm:$0xf] %vm1376, %v4627
        %4650 = vst.msk [vmem:[#allocation4 + $0x10] sm:$0xf] %vm1376, %v4629
        %4651 = vst.msk [vmem:[#allocation4 + $0x18] sm:$0xf] %vm1376, %v4631
        %4652 = vst.msk [vmem:[#allocation4 + $0x20] sm:$0xf] %vm1376, %v4633
        %4653 = vst.msk [vmem:[#allocation4 + $0x28] sm:$0xf] %vm1376, %v4635
        %4654 = vst.msk [vmem:[#allocation4 + $0x30] sm:$0xf] %vm1376, %v4637
        %4655 = vst.msk [vmem:[#allocation4 + $0x38] sm:$0xf] %vm1376, %v4639
        %v4656 = vld [vmem:[%s1231 + $0x8] sm:$0xf]
        %v4657 = vld [vmem:[%s1231 + $0x18] sm:$0xf]
        %v4658 = vld [vmem:[%s1231 + $0x28] sm:$0xf]
        %v4659 = vld [vmem:[%s1231 + $0x38] sm:$0xf]
        %v4660 = vld [vmem:[%s1231 + $0x48] sm:$0xf]
        %v4661 = vld [vmem:[%s1231 + $0x58] sm:$0xf]
        %v4662 = vld [vmem:[%s1231 + $0x68] sm:$0xf]
        %v4663 = vld [vmem:[%s1231 + $0x78] sm:$0xf]
        %4672 = vrot.lane.b32.xlu0 %v4656, 112
        %v4673 = vpop.permute.xlu0 %4672
        %4674 = vrot.lane.b32.xlu0 %v4657, 112
        %v4675 = vpop.permute.xlu0 %4674
        %4676 = vrot.lane.b32.xlu0 %v4658, 112
        %v4677 = vpop.permute.xlu0 %4676
        %4678 = vrot.lane.b32.xlu0 %v4659, 112
        %v4679 = vpop.permute.xlu0 %4678
        %4680 = vrot.lane.b32.xlu0 %v4660, 112
        %v4681 = vpop.permute.xlu0 %4680
        %4682 = vrot.lane.b32.xlu0 %v4661, 112
        %v4683 = vpop.permute.xlu0 %4682
        %4684 = vrot.lane.b32.xlu0 %v4662, 112
        %v4685 = vpop.permute.xlu0 %4684
        %4686 = vrot.lane.b32.xlu0 %v4663, 112
        %v4687 = vpop.permute.xlu0 %4686
        %4696 = vst.msk [vmem:[#allocation4] sm:$0xf] %vm1425, %v4673
        %4697 = vst.msk [vmem:[#allocation4 + $0x8] sm:$0xf] %vm1425, %v4675
        %4698 = vst.msk [vmem:[#allocation4 + $0x10] sm:$0xf] %vm1425, %v4677
        %4699 = vst.msk [vmem:[#allocation4 + $0x18] sm:$0xf] %vm1425, %v4679
        %4700 = vst.msk [vmem:[#allocation4 + $0x20] sm:$0xf] %vm1425, %v4681
        %4701 = vst.msk [vmem:[#allocation4 + $0x28] sm:$0xf] %vm1425, %v4683
        %4702 = vst.msk [vmem:[#allocation4 + $0x30] sm:$0xf] %vm1425, %v4685
        %4703 = vst.msk [vmem:[#allocation4 + $0x38] sm:$0xf] %vm1425, %v4687
        %v4704 = vld [vmem:[%s1231 + $0x8] sm:$0xf]
        %v4705 = vld [vmem:[%s1231 + $0xc] sm:$0x1]
        %v4706 = vld [vmem:[%s1231 + $0x18] sm:$0xf]
        %v4707 = vld [vmem:[%s1231 + $0x1c] sm:$0x1]
        %v4708 = vld [vmem:[%s1231 + $0x28] sm:$0xf]
        %v4709 = vld [vmem:[%s1231 + $0x2c] sm:$0x1]
        %v4710 = vld [vmem:[%s1231 + $0x38] sm:$0xf]
        %v4711 = vld [vmem:[%s1231 + $0x3c] sm:$0x1]
        %v4712 = vld [vmem:[%s1231 + $0x48] sm:$0xf]
        %v4713 = vld [vmem:[%s1231 + $0x4c] sm:$0x1]
        %v4714 = vld [vmem:[%s1231 + $0x58] sm:$0xf]
        %v4715 = vld [vmem:[%s1231 + $0x5c] sm:$0x1]
        %v4716 = vld [vmem:[%s1231 + $0x68] sm:$0xf]
        %v4717 = vld [vmem:[%s1231 + $0x6c] sm:$0x1]
        %v4718 = vld [vmem:[%s1231 + $0x78] sm:$0xf]
        %v4719 = vld [vmem:[%s1231 + $0x7c] sm:$0x1]
        %v4721 = vshrl.u32 %v4704, 16
        %v4723 = vrot.slane %v4721, 4
        %v4724 = vshll.u32 %v4704, 16
        %v4726 = vrot.slane %v4724, 5
        %v4727 = vor.u32 %v4723, %v4726
        %v4728 = vrot.slane %v4727, 4
        %v4730 = vshll.u32 %v4705, 16
        %v4732 = vrot.slane %v4730, 5
        %v4733 = vsel %vm722, %v4728, %v4732
        %v4735 = vshrl.u32 %v4706, 16
        %v4737 = vrot.slane %v4735, 4
        %v4738 = vshll.u32 %v4706, 16
        %v4740 = vrot.slane %v4738, 5
        %v4741 = vor.u32 %v4737, %v4740
        %v4742 = vrot.slane %v4741, 4
        %v4744 = vshll.u32 %v4707, 16
        %v4746 = vrot.slane %v4744, 5
        %v4747 = vsel %vm722, %v4742, %v4746
        %v4749 = vshrl.u32 %v4708, 16
        %v4751 = vrot.slane %v4749, 4
        %v4752 = vshll.u32 %v4708, 16
        %v4754 = vrot.slane %v4752, 5
        %v4755 = vor.u32 %v4751, %v4754
        %v4756 = vrot.slane %v4755, 4
        %v4758 = vshll.u32 %v4709, 16
        %v4760 = vrot.slane %v4758, 5
        %v4761 = vsel %vm722, %v4756, %v4760
        %v4763 = vshrl.u32 %v4710, 16
        %v4765 = vrot.slane %v4763, 4
        %v4766 = vshll.u32 %v4710, 16
        %v4768 = vrot.slane %v4766, 5
        %v4769 = vor.u32 %v4765, %v4768
        %v4770 = vrot.slane %v4769, 4
        %v4772 = vshll.u32 %v4711, 16
        %v4774 = vrot.slane %v4772, 5
        %v4775 = vsel %vm722, %v4770, %v4774
        %v4777 = vshrl.u32 %v4712, 16
        %v4779 = vrot.slane %v4777, 4
        %v4780 = vshll.u32 %v4712, 16
        %v4782 = vrot.slane %v4780, 5
        %v4783 = vor.u32 %v4779, %v4782
        %v4784 = vrot.slane %v4783, 4
        %v4786 = vshll.u32 %v4713, 16
        %v4788 = vrot.slane %v4786, 5
        %v4789 = vsel %vm722, %v4784, %v4788
        %v4791 = vshrl.u32 %v4714, 16
        %v4793 = vrot.slane %v4791, 4
        %v4794 = vshll.u32 %v4714, 16
        %v4796 = vrot.slane %v4794, 5
        %v4797 = vor.u32 %v4793, %v4796
        %v4798 = vrot.slane %v4797, 4
        %v4800 = vshll.u32 %v4715, 16
        %v4802 = vrot.slane %v4800, 5
        %v4803 = vsel %vm722, %v4798, %v4802
        %v4805 = vshrl.u32 %v4716, 16
        %v4807 = vrot.slane %v4805, 4
        %v4808 = vshll.u32 %v4716, 16
        %v4810 = vrot.slane %v4808, 5
        %v4811 = vor.u32 %v4807, %v4810
        %v4812 = vrot.slane %v4811, 4
        %v4814 = vshll.u32 %v4717, 16
        %v4816 = vrot.slane %v4814, 5
        %v4817 = vsel %vm722, %v4812, %v4816
        %v4819 = vshrl.u32 %v4718, 16
        %v4821 = vrot.slane %v4819, 4
        %v4822 = vshll.u32 %v4718, 16
        %v4824 = vrot.slane %v4822, 5
        %v4825 = vor.u32 %v4821, %v4824
        %v4826 = vrot.slane %v4825, 4
        %v4828 = vshll.u32 %v4719, 16
        %v4830 = vrot.slane %v4828, 5
        %v4831 = vsel %vm722, %v4826, %v4830
        %4840 = vst.msk [vmem:[#allocation4 + $0x4] sm:$0xf] %vm375, %v4733
        %4841 = vst.msk [vmem:[#allocation4 + $0xc] sm:$0xf] %vm375, %v4747
        %4842 = vst.msk [vmem:[#allocation4 + $0x14] sm:$0xf] %vm375, %v4761
        %4843 = vst.msk [vmem:[#allocation4 + $0x1c] sm:$0xf] %vm375, %v4775
        %4844 = vst.msk [vmem:[#allocation4 + $0x24] sm:$0xf] %vm375, %v4789
        %4845 = vst.msk [vmem:[#allocation4 + $0x2c] sm:$0xf] %vm375, %v4803
        %4846 = vst.msk [vmem:[#allocation4 + $0x34] sm:$0xf] %vm375, %v4817
        %4847 = vst.msk [vmem:[#allocation4 + $0x3c] sm:$0xf] %vm375, %v4831
        %v4848 = vld [vmem:[#allocation4] sm:$0xff]
        %v4849 = vld [vmem:[#allocation4 + $0x8] sm:$0xff]
        %v4850 = vld [vmem:[#allocation4 + $0x10] sm:$0xff]
        %v4851 = vld [vmem:[#allocation4 + $0x18] sm:$0xff]
        %v4852 = vld [vmem:[#allocation4 + $0x20] sm:$0xff]
        %v4853 = vld [vmem:[#allocation4 + $0x28] sm:$0xff]
        %v4854 = vld [vmem:[#allocation4 + $0x30] sm:$0xff]
        %v4855 = vld [vmem:[#allocation4 + $0x38] sm:$0xff]
        %v4856 = vld [vmem:[%s7] sm:$0xf]
        %v4857 = vld [vmem:[%s7 + $0x4] sm:$0xf]
        %v4858 = vld [vmem:[%s7 + $0x8] sm:$0xf]
        %v4859 = vld [vmem:[%s7 + $0xc] sm:$0xf]
        %v4860 = vld [vmem:[%s7 + $0x10] sm:$0xf]
        %v4861 = vld [vmem:[%s7 + $0x14] sm:$0xf]
        %v4862 = vld [vmem:[%s7 + $0x18] sm:$0xf]
        %v4863 = vld [vmem:[%s7 + $0x1c] sm:$0xf]
        %v4864 = vld [vmem:[%s7 + $0x20] sm:$0xf]
        %v4865 = vld [vmem:[%s7 + $0x24] sm:$0xf]
        %v4866 = vld [vmem:[%s7 + $0x28] sm:$0xf]
        %v4867 = vld [vmem:[%s7 + $0x2c] sm:$0xf]
        %v4868 = vld [vmem:[%s7 + $0x30] sm:$0xf]
        %v4869 = vld [vmem:[%s7 + $0x34] sm:$0xf]
        %v4870 = vld [vmem:[%s7 + $0x38] sm:$0xf]
        %v4871 = vld [vmem:[%s7 + $0x3c] sm:$0xf]
        %v4872 = vld [vmem:[%s7 + $0x40] sm:$0xf]
        %v4873 = vld [vmem:[%s7 + $0x44] sm:$0xf]
        %v4882 = vunpack.c.l.b16 %v4848
        %v4883 = vunpack.c.h.b16 %v4848
        %v4884 = vunpack.c.l.b16 %v4849
        %v4885 = vunpack.c.h.b16 %v4849
        %v4886 = vunpack.c.l.b16 %v4850
        %v4887 = vunpack.c.h.b16 %v4850
        %v4888 = vunpack.c.l.b16 %v4851
        %v4889 = vunpack.c.h.b16 %v4851
        %v4890 = vunpack.c.l.b16 %v4852
        %v4891 = vunpack.c.h.b16 %v4852
        %v4892 = vunpack.c.l.b16 %v4853
        %v4893 = vunpack.c.h.b16 %v4853
        %v4894 = vunpack.c.l.b16 %v4854
        %v4895 = vunpack.c.h.b16 %v4854
        %v4896 = vunpack.c.l.b16 %v4855
        %v4897 = vunpack.c.h.b16 %v4855
        %v4898 = vpack.c.b16 %v4884, %v4882
        %v4899 = vpack.c.b16 %v4885, %v4883
        %v4900 = vpack.c.b16 %v4888, %v4886
        %v4901 = vpack.c.b16 %v4889, %v4887
        %v4902 = vpack.c.b16 %v4892, %v4890
        %v4903 = vpack.c.b16 %v4893, %v4891
        %v4904 = vpack.c.b16 %v4896, %v4894
        %v4905 = vpack.c.b16 %v4897, %v4895
        %v4928 = vunpack.c.l.b16 %v4856
        %v4929 = vunpack.c.l.b16 %v4857
        %v4930 = vunpack.c.l.b16 %v4858
        %v4931 = vunpack.c.l.b16 %v4859
        %v4932 = vunpack.c.l.b16 %v4860
        %v4933 = vunpack.c.l.b16 %v4861
        %v4934 = vunpack.c.l.b16 %v4862
        %v4935 = vunpack.c.l.b16 %v4863
        %v4936 = vunpack.c.l.b16 %v4864
        %v4937 = vunpack.c.l.b16 %v4865
        %v4938 = vunpack.c.l.b16 %v4866
        %v4939 = vunpack.c.l.b16 %v4867
        %v4940 = vunpack.c.l.b16 %v4868
        %v4941 = vunpack.c.l.b16 %v4869
        %v4942 = vunpack.c.l.b16 %v4870
        %v4943 = vunpack.c.l.b16 %v4871
        %v4944 = vunpack.c.l.b16 %v4872
        %v4945 = vunpack.c.l.b16 %v4873
        %v4946 = vpack.c.b16 %v4929, %v4928
        %v4947 = vpack.c.b16 %v4931, %v4930
        %v4948 = vpack.c.b16 %v4933, %v4932
        %v4949 = vpack.c.b16 %v4935, %v4934
        %v4950 = vpack.c.b16 %v4937, %v4936
        %v4951 = vpack.c.b16 %v4939, %v4938
        %v4952 = vpack.c.b16 %v4941, %v4940
        %v4953 = vpack.c.b16 %v4943, %v4942
        %v4954 = vpack.c.b16 %v4945, %v4944
        %v4965 = vsel %vm493, %v4899, 0
        %v4968 = vsel %vm493, %v4901, 0
        %v4971 = vsel %vm493, %v4903, 0
        %v4974 = vsel %vm493, %v4905, 0
        %4976 = vmatpush.bf16.msra.mxu0 %v4953
        %4977 = vmatpush.bf16.msra.mxu0 %v4952
        %4978 = vmatpush.bf16.msra.mxu0 %v4951
        %4979 = vmatpush.bf16.msra.mxu0 %v4950
        %4980 = vmatpush.bf16.msra.mxu0 %v4949
        %4981 = vmatpush.bf16.msra.mxu0 %v4948
        %4982 = vmatpush.bf16.msra.mxu0 %v4947
        %4983 = vmatpush.bf16.msra.mxu0 %v4946
        %4984 = vmatmul.bf16.gmra.mxu0 %v4898
        %v4985 = vpop.f32.mrf.mxu0
        %v4986 = vadd.f32 0.0, %v4985
        %v4987 = vpop.f32.mrf.mxu0
        %v4988 = vadd.f32 0.0, %v4987
        %4989 = vmatmul.bf16.gmra.mxu0 %v4900
        %v4990 = vpop.f32.mrf.mxu0
        %v4991 = vadd.f32 0.0, %v4990
        %v4992 = vpop.f32.mrf.mxu0
        %v4993 = vadd.f32 0.0, %v4992
        %4994 = vmatmul.bf16.gmra.mxu0 %v4902
        %v4995 = vpop.f32.mrf.mxu0
        %v4996 = vadd.f32 0.0, %v4995
        %v4997 = vpop.f32.mrf.mxu0
        %v4998 = vadd.f32 0.0, %v4997
        %4999 = vmatmul.bf16.gmra.mxu0 %v4904
        %v5000 = vpop.f32.mrf.mxu0
        %v5001 = vadd.f32 0.0, %v5000
        %v5002 = vpop.f32.mrf.mxu0
        %v5003 = vadd.f32 0.0, %v5002
        %5004 = vdwg.mxu0
        %5005 = vmatpush.bf16.msra.mxu0 0
        %5006 = vmatpush.bf16.msra.mxu0 0
        %5007 = vmatpush.bf16.msra.mxu0 0
        %5008 = vmatpush.bf16.msra.mxu0 0
        %5009 = vmatpush.bf16.msra.mxu0 0
        %5010 = vmatpush.bf16.msra.mxu0 0
        %5011 = vmatpush.bf16.msra.mxu0 0
        %5012 = vmatpush.bf16.msra.mxu0 %v4954
        %5013 = vmatmul.bf16.gmra.mxu0 %v4965
        %v5014 = vpop.f32.mrf.mxu0
        %v5015 = vadd.f32 %v4986, %v5014
        %v5016 = vpop.f32.mrf.mxu0
        %v5017 = vadd.f32 %v4988, %v5016
        %5018 = vmatmul.bf16.gmra.mxu0 %v4968
        %v5019 = vpop.f32.mrf.mxu0
        %v5020 = vadd.f32 %v4991, %v5019
        %v5021 = vpop.f32.mrf.mxu0
        %v5022 = vadd.f32 %v4993, %v5021
        %5023 = vmatmul.bf16.gmra.mxu0 %v4971
        %v5024 = vpop.f32.mrf.mxu0
        %v5025 = vadd.f32 %v4996, %v5024
        %v5026 = vpop.f32.mrf.mxu0
        %v5027 = vadd.f32 %v4998, %v5026
        %5028 = vmatmul.bf16.gmra.mxu0 %v4974
        %v5029 = vpop.f32.mrf.mxu0
        %v5030 = vadd.f32 %v5001, %v5029
        %v5031 = vpop.f32.mrf.mxu0
        %v5032 = vadd.f32 %v5003, %v5031
        %5033 = vdwg.mxu0
        %v5034 = vmax.f32 %v5015, 0.0
        %v5035 = vmax.f32 %v5017, 0.0
        %v5036 = vmax.f32 %v5020, 0.0
        %v5037 = vmax.f32 %v5022, 0.0
        %v5038 = vmax.f32 %v5025, 0.0
        %v5039 = vmax.f32 %v5027, 0.0
        %v5040 = vmax.f32 %v5030, 0.0
        %v5041 = vmax.f32 %v5032, 0.0
        %v5042 = vld [vmem:[%s8] sm:$0xf]
        %v5043 = vld [vmem:[%s8 + $0x4] sm:$0xf]
        %v5046 = vunpack.c.l.b16 %v5042
        %v5047 = vunpack.c.l.b16 %v5043
        %v5048 = vpack.c.b16 %v5047, %v5046
        %5050 = vmatpush.bf16.msra.mxu0 0
        %5051 = vmatpush.bf16.msra.mxu0 0
        %5052 = vmatpush.bf16.msra.mxu0 0
        %5053 = vmatpush.bf16.msra.mxu0 0
        %5054 = vmatpush.bf16.msra.mxu0 0
        %5055 = vmatpush.bf16.msra.mxu0 0
        %5056 = vmatpush.bf16.msra.mxu0 0
        %5057 = vmatpush.bf16.msra.mxu0 %v5048
        %5058 = vmatmul.bf16.gmra.mxu0 %v3691
        %v5059 = vpop.f32.mrf.mxu0
        %v5060 = vadd.f32 0.0, %v5059
        %v5061 = vpop.f32.mrf.mxu0
        %v5062 = vadd.f32 0.0, %v5061
        %5063 = vmatmul.bf16.gmra.mxu0 %v3694
        %v5064 = vpop.f32.mrf.mxu0
        %v5065 = vadd.f32 0.0, %v5064
        %v5066 = vpop.f32.mrf.mxu0
        %v5067 = vadd.f32 0.0, %v5066
        %5068 = vmatmul.bf16.gmra.mxu0 %v3697
        %v5069 = vpop.f32.mrf.mxu0
        %v5070 = vadd.f32 0.0, %v5069
        %v5071 = vpop.f32.mrf.mxu0
        %v5072 = vadd.f32 0.0, %v5071
        %5073 = vmatmul.bf16.gmra.mxu0 %v3700
        %v5074 = vpop.f32.mrf.mxu0
        %v5075 = vadd.f32 0.0, %v5074
        %v5076 = vpop.f32.mrf.mxu0
        %v5077 = vadd.f32 0.0, %v5076
        %5078 = vdwg.mxu0
        %v5079 = vadd.f32 %v5034, %v5060
        %v5080 = vadd.f32 %v5035, %v5062
        %v5081 = vadd.f32 %v5036, %v5065
        %v5082 = vadd.f32 %v5037, %v5067
        %v5083 = vadd.f32 %v5038, %v5070
        %v5084 = vadd.f32 %v5039, %v5072
        %v5085 = vadd.f32 %v5040, %v5075
        %v5086 = vadd.f32 %v5041, %v5077
        %5087 = vst.msk [vmem:[%s373] sm:$0xff] %vm493, %v5079
        %5088 = vst.msk [vmem:[%s373 + $0x8] sm:$0xff] %vm493, %v5080
        %5089 = vst.msk [vmem:[%s373 + $0x10] sm:$0xff] %vm493, %v5081
        %5090 = vst.msk [vmem:[%s373 + $0x18] sm:$0xff] %vm493, %v5082
        %5091 = vst.msk [vmem:[%s373 + $0x20] sm:$0xff] %vm493, %v5083
        %5092 = vst.msk [vmem:[%s373 + $0x28] sm:$0xff] %vm493, %v5084
        %5093 = vst.msk [vmem:[%s373 + $0x30] sm:$0xff] %vm493, %v5085
        %5094 = vst.msk [vmem:[%s373 + $0x38] sm:$0xff] %vm493, %v5086
        %p5095 = scmp.lt.s32.totalorder %s22, 1
        %s5096 = scalar_select %p5095, %s22, 1
        %s5097 = smul.addr %s5096, 8
        %s5098 = smul.addr %s5097, 8
        %s5099 = scalar_lea.vmem %s10, %s5098
        // Predicated region
        $region65: #{wavelet_block_forward.1} parent=59 // pred_check
          %p5100 = pneg %p255
        $region66: #{wavelet_block_forward.1} parent=59 // pred_check_branch
          %5102 = sbr.rel (%p5100) target = $region68
        $region67: #{wavelet_block_forward.1} parent=59 // pred_region
          _
        $region68: #{wavelet_block_forward.1} parent=59 // pred_fallthru
          _
      $region60: #{wavelet_block_forward.1} parent=5 // pred_fallthru
        _
      %p5103 = scmp.le.s32.totalorder 2, %s17
      // Predicated region
      $region69: #{wavelet_block_forward.1} parent=5 // pred_check
        %p5104 = pneg %p5103
      $region70: #{wavelet_block_forward.1} parent=5 // pred_check_branch
        %5106 = sbr.rel (%p5104) target = $region72
      $region71: #{wavelet_block_forward.1} parent=5 // pred_region
        %s5107 = ssub.s32 %s17, 2
        // Predicated region
        $region73: #{wavelet_block_forward.1} parent=71 // pred_check
          %p5108 = pneg %p261
        $region74: #{wavelet_block_forward.1} parent=71 // pred_check_branch
          %5110 = sbr.rel (%p5108) target = $region76
        $region75: #{wavelet_block_forward.1} parent=71 // pred_region
          %p5111 = scmp.lt.s32.totalorder %s23, 1
          %s5112 = scalar_select %p5111, %s23, 1
          %s5113 = smul.addr %s5112, 8
          %s5114 = smul.addr %s5113, 8
          %s5115 = scalar_lea.vmem %s10, %s5114
        $region76: #{wavelet_block_forward.1} parent=71 // pred_fallthru
          _
      $region72: #{wavelet_block_forward.1} parent=5 // pred_fallthru
        _
    $region6: #{wavelet_block_forward.1} parent=1 // loop_footer
      %s21 = sadd.s32 1, %s17
    $region7: #{wavelet_block_forward.1} parent=1 // loop_footer_branch
      %16 = sbr.rel target = $region3
    $region8: #{wavelet_block_forward.1} parent=1 // loop_exit
      _
    %5116 = vsyncpa [#allocation8], 1
    %s5117 = scalar_lea.sflag [#allocation8], 1
    %5118 = vsyncpa %s5117, 1

</llo_original>
